<compile_context>
chip_gen: v7x
topology: tpu7x:2x2x1
jax: 0.10.0
libtpu: 0.0.40
codegen_flags: <defaults>
</compile_context>

<pallas_src>
import jax
import jax.numpy as jnp
from jax.experimental import pallas as pl
from jax.experimental.pallas import tpu as pltpu


def _default_vmem_limit():
    # v5e/v6e have 128 MiB physical VMEM, v7x only 64 MiB: budget 3/4 of what
    # the chip reports so v5e/v6e get big tiles / deep pipelining while v7x
    # stays inside its smaller scratchpad.
    try:
        cap = int(pltpu.get_tpu_info().vmem_capacity_bytes)
    except Exception:
        cap = 64 * 1024 * 1024
    return (cap * 3) // 4


_VMEM_LIMIT = _default_vmem_limit()


# ---------------------------------------------------------------------------
# Conv 3x3 (padding=1) + bias + ReLU on flat padded activations,
# optionally with a fused per-pair L1 partial reduction.
# ---------------------------------------------------------------------------
def _make_conv3x3_kernel(H, W, nb, fuse_l1):
    W2 = W + 2
    M = H * W2 - 2                 # flat accumulator rows (last 2 wrap rows dropped)
    tail_start = (H + 1) * W2 - 1  # start of the bottom halo strip

    def kernel(x_ref, w_ref, b_ref, mask_ref, *rest):
        # x_ref:    (nb, (H+2)*(W+2), Cin)  bf16 flat zero-bordered input
        # w_ref:    (3, 3, Cin, TCO)        bf16 weights
        # b_ref:    (1, TCO)                f32 bias tile
        # mask_ref: (M, 1)                  f32 1.0 on real cols, 0.0 on wrap cols
        # o_ref:    (nb, (H+2)*(W+2), TCO)  bf16 flat zero-bordered output
        # l1_ref:   (1, 1, TCO)             f32 per-(pair, Cout-tile) L1 partial
        # acc_ref:  (nb, M, TCO)            f32 scratch accumulator
        if fuse_l1:
            o_ref, l1_ref, acc_ref = rest
        else:
            o_ref, acc_ref = rest
        TCO = o_ref.shape[-1]

        # 9-tap accumulation: every tap LHS is a zero-copy sublane-offset slice
        # of the flat padded input; 3 tap products are summed in vregs per
        # accumulator pass (3 acc write-backs instead of 9).
        for b in range(nb):
            for dy in range(3):
                c = None
                for dx in range(3):
                    lhs = x_ref[b, pl.ds(dy * W2 + dx, M), :]
                    d = jnp.dot(lhs, w_ref[dy, dx],
                                preferred_element_type=jnp.float32)
                    c = d if c is None else c + d
                if dy == 0:
                    acc_ref[b] = c
                else:
                    acc_ref[b] += c

        # Epilogue: bias + ReLU, zero the 2 wrap columns per row via the mask,
        # store the body at a constant flat offset, and write only the two
        # halo strips as zeros (every output element is stored exactly once).
        halo = jnp.zeros((W2 + 1, TCO), o_ref.dtype)
        outs = []
        for b in range(nb):
            out = jnp.maximum(acc_ref[b] + b_ref[...], 0.0) * mask_ref[...]
            o_ref[b, pl.ds(W2 + 1, M), :] = out.astype(o_ref.dtype)
            o_ref[b, 0:W2 + 1, :] = halo
            o_ref[b, pl.ds(tail_start, W2 + 1), :] = halo
            outs.append(out)

        if fuse_l1:
            # Halo/wrap entries are zero in both streams -> contribute nothing.
            l1_ref[0] = jnp.sum(jnp.abs(outs[0] - outs[1]), axis=0,
                                keepdims=True)

    return kernel


def conv3x3_relu_flat(xp, w, b, H, W, *, fuse_l1=False):
    """xp: (NB, (H+2)*(W+2), Cin) bf16 flat zero-bordered activations.
    w: (3, 3, Cin, Cout) bf16;  b: (Cout,) f32.
    Returns the flat zero-bordered bf16 output, plus per-pair per-channel L1
    partial sums (N_pairs, 1, Cout) when fuse_l1=True."""
    NB, L, Cin = xp.shape
    Cout = w.shape[-1]
    assert L == (H + 2) * (W + 2)
    TCO = min(Cout, 256)
    assert Cout % TCO == 0
    n_co = Cout // TCO
    W2 = W + 2
    M = H * W2 - 2
    nb = 2 if fuse_l1 else 1
    assert NB % nb == 0
    n_b = NB // nb

    # 1.0 on real interior columns, 0.0 on the 2 per-row wrap columns.
    mask = ((jnp.arange(M, dtype=jnp.int32) % W2) < W)
    mask = mask.astype(jnp.float32).reshape(M, 1)

    kernel = _make_conv3x3_kernel(H, W, nb, fuse_l1)

    in_specs = [
        pl.BlockSpec((nb, L, Cin), lambda co, n: (n, 0, 0)),
        pl.BlockSpec((3, 3, Cin, TCO), lambda co, n: (0, 0, 0, co)),
        pl.BlockSpec((1, TCO), lambda co, n: (0, co)),
        pl.BlockSpec((M, 1), lambda co, n: (0, 0)),
    ]
    out_shape = jax.ShapeDtypeStruct((NB, L, Cout), jnp.bfloat16)
    out_spec = pl.BlockSpec((nb, L, TCO), lambda co, n: (n, 0, co))
    if fuse_l1:
        out_shape = (out_shape,
                     jax.ShapeDtypeStruct((n_b, 1, Cout), jnp.float32))
        out_spec = (out_spec,
                    pl.BlockSpec((1, 1, TCO), lambda co, n: (n, 0, co)))

    return pl.pallas_call(
        kernel,
        out_shape=out_shape,
        # Cout tile outermost so the (large) weight tile stays resident across
        # the inner batch axis; batch innermost.
        grid=(n_co, n_b),
        in_specs=in_specs,
        out_specs=out_spec,
        scratch_shapes=[pltpu.VMEM((nb, M, TCO), jnp.float32)],
        compiler_params=pltpu.CompilerParams(
            dimension_semantics=("parallel", "parallel"),
            vmem_limit_bytes=_VMEM_LIMIT),
    )(xp, w, b.reshape(1, Cout), mask)


# ---------------------------------------------------------------------------
# MaxPool 2x2, stride 2, on flat padded activations (in-kernel tap extraction)
# ---------------------------------------------------------------------------
def _make_maxpool_kernel(H, W, C):
    W2 = W + 2
    Hh, Wh = H // 2, W // 2
    Wp2 = Wh + 2
    span = H * W2 - 2

    def kernel(x_ref, o_ref):
        # 4 window taps as zero-copy sublane-offset slices of the flat input.
        t00 = x_ref[0, pl.ds(W2 + 1, span), :]
        t01 = x_ref[0, pl.ds(W2 + 2, span), :]
        t10 = x_ref[0, pl.ds(2 * W2 + 1, span), :]
        t11 = x_ref[0, pl.ds(2 * W2 + 2, span), :]
        m4 = jnp.maximum(jnp.maximum(t00, t01), jnp.maximum(t10, t11))
        # Stride-2 selection of the window maxima anchored at odd (row, col).
        m4 = jnp.concatenate([m4, jnp.zeros((2, C), m4.dtype)], axis=0)
        m4 = m4.reshape(Hh, 2, W2, C)[:, 0]              # even anchor rows
        m4 = m4.reshape(Hh, W2 // 2, 2, C)[:, :, 0]      # even anchor cols
        m = m4[:, :Wh, :]                                # (Hh, Wh, C)
        # Re-pad with the 1-px zero column halo and store the body flat.
        zc = jnp.zeros((Hh, 1, C), m.dtype)
        body = jnp.concatenate([zc, m, zc], axis=1).reshape(Hh * Wp2, C)
        o_ref[0, pl.ds(Wp2, Hh * Wp2), :] = body
        zrow = jnp.zeros((Wp2, C), o_ref.dtype)
        o_ref[0, 0:Wp2, :] = zrow
        o_ref[0, pl.ds((Hh + 1) * Wp2, Wp2), :] = zrow

    return kernel


def maxpool2x2_flat(xp, H, W):
    """xp: (NB, (H+2)*(W+2), C) bf16 flat zero-bordered
    -> (NB, (H//2+2)*(W//2+2), C) bf16 flat zero-bordered."""
    # TODO(synk): PyTorch MaxPool2d(2,2) floors odd spatial dims; odd sizes are
    # rejected here instead of silently diverging.
    assert H % 2 == 0 and W % 2 == 0, "maxpool2x2 requires even spatial dims"
    NB, L, C = xp.shape
    assert L == (H + 2) * (W + 2)
    Hh, Wh = H // 2, W // 2
    Lout = (Hh + 2) * (Wh + 2)
    return pl.pallas_call(
        _make_maxpool_kernel(H, W, C),
        out_shape=jax.ShapeDtypeStruct((NB, Lout, C), xp.dtype),
        grid=(NB,),
        in_specs=[pl.BlockSpec((1, L, C), lambda n: (n, 0, 0))],
        out_specs=pl.BlockSpec((1, Lout, C), lambda n: (n, 0, 0)),
        compiler_params=pltpu.CompilerParams(
            dimension_semantics=("parallel",),
            vmem_limit_bytes=_VMEM_LIMIT),
    )(xp)


# ---------------------------------------------------------------------------
# VGG16 feature blocks (synthetic deterministic weights, same shapes as vgg16)
# ---------------------------------------------------------------------------
_VGG_CFG = (
    (False, ((3, 64), (64, 64))),                    # features[:4]
    (True,  ((64, 128), (128, 128))),                # features[4:9]
    (True,  ((128, 256), (256, 256), (256, 256))),   # features[9:16]
    (True,  ((256, 512), (512, 512), (512, 512))),   # features[16:23]
)


def init_vgg_params(key):
    params = []
    for pool, convs in _VGG_CFG:
        layer_params = []
        for cin, cout in convs:
            key, kw, kb = jax.random.split(key, 3)
            w = jax.random.normal(kw, (3, 3, cin, cout), jnp.float32)
            w = (w * (2.0 / (9.0 * cin)) ** 0.5).astype(jnp.bfloat16)
            b = 0.01 * jax.random.normal(kb, (cout,), jnp.float32)
            layer_params.append((w, b))
        params.append((pool, layer_params))
    return params


_MEAN = jnp.array([0.485, 0.456, 0.406], jnp.float32).reshape(1, 3, 1, 1)
_STD = jnp.array([0.229, 0.224, 0.225], jnp.float32).reshape(1, 3, 1, 1)


def vgg_perceptual_loss(inp, tgt, params, resize=False):
    """inp, tgt: (N, C, H, W) float32 (NCHW, like the PyTorch module)."""
    if inp.shape[1] != 3:
        # Mirrors the module's `repeat(1, 3, 1, 1)` for non-3-channel inputs.
        inp = jnp.tile(inp, (1, 3, 1, 1))
        tgt = jnp.tile(tgt, (1, 3, 1, 1))
    x = (inp - _MEAN) / _STD
    y = (tgt - _MEAN) / _STD
    del resize  # TODO(synk): resize=True bilinear path not implemented.

    N = x.shape[0]
    H, W = x.shape[2], x.shape[3]
    # Interleave the two streams as (x0, y0, x1, y1, ...) so the fused-L1 conv
    # sees each matching pair in a single (2, ...) batch block; pad once and
    # keep every activation as a flat, persistently 1-px-padded bf16 buffer.
    z = jnp.stack([x, y], axis=1).reshape(2 * N, 3, H, W)
    z = jnp.transpose(z, (0, 2, 3, 1))                       # NCHW -> NHWC
    zp = jnp.pad(z, ((0, 0), (1, 1), (1, 1), (0, 0)))
    zp = zp.reshape(2 * N, (H + 2) * (W + 2), 3).astype(jnp.bfloat16)

    loss = jnp.float32(0.0)
    for pool, convs in params:
        if pool:
            zp = maxpool2x2_flat(zp, H, W)
            H, W = H // 2, W // 2
        for li, (w, b) in enumerate(convs):
            if li == len(convs) - 1:
                # Last conv of the block: fuse the per-channel |x - y| partial
                # sums into the conv epilogue (features already in VMEM).
                zp, l1 = conv3x3_relu_flat(zp, w, b, H, W, fuse_l1=True)
                Cb = w.shape[-1]
                loss = loss + jnp.sum(l1) / jnp.float32(N * H * W * Cb)
            else:
                zp = conv3x3_relu_flat(zp, w, b, H, W, fuse_l1=False)
    return loss


if __name__ == "__main__":
    key = jax.random.PRNGKey(0)
    k_in, k_tgt, k_par = jax.random.split(key, 3)

    # Small example consistent with the module: NCHW, 3 channels, 16x16 spatial.
    inp = jax.random.uniform(k_in, (2, 3, 16, 16), jnp.float32)
    tgt = jax.random.uniform(k_tgt, (2, 3, 16, 16), jnp.float32)
    params = init_vgg_params(k_par)

    loss = vgg_perceptual_loss(inp, tgt, params)
    loss = jax.block_until_ready(loss)
    assert loss.shape == () and bool(jnp.isfinite(loss))
    print("KERNEL_OK")
</pallas_src>

<mosaic_0001>
module attributes {stable_mosaic.version = 11 : i64} {
  func.func @kernel(%arg0: i32, %arg1: i32, %arg2: memref<1x324x3xbf16, #tpu.memory_space<vmem>>, %arg3: memref<3x3x3x64xbf16, #tpu.memory_space<vmem>>, %arg4: memref<1x64xf32, #tpu.memory_space<vmem>>, %arg5: memref<286x1xf32, #tpu.memory_space<vmem>>, %arg6: memref<1x324x64xbf16, #tpu.memory_space<vmem>>, %arg7: memref<1x286x64xf32, #tpu.memory_space<vmem>>) attributes {dimension_semantics = [#tpu.dimension_semantics<parallel>, #tpu.dimension_semantics<parallel>], iteration_bounds = array<i64: 1, 4>, scalar_prefetch = 0 : i64, scratch_operands = 1 : i64, tpu.core_type = #tpu.core_type<tc>, window_params = [{transform_indices = @transform_0, window_bounds = array<i64: 1, 324, 3>}, {transform_indices = @transform_1, window_bounds = array<i64: 3, 3, 3, 64>}, {transform_indices = @transform_2, window_bounds = array<i64: 1, 64>}, {pipeline_mode = #tpu.pipeline_mode<synchronous>, transform_indices = @transform_3, window_bounds = array<i64: 286, 1>}, {transform_indices = @transform_4, window_bounds = array<i64: 1, 324, 64>}]} {
    %c0 = arith.constant 0 : index
    %c0_0 = arith.constant 0 : index
    %c0_1 = arith.constant 0 : index
    %0 = vector.load %arg2[%c0, %c0_0, %c0_1] : memref<1x324x3xbf16, #tpu.memory_space<vmem>>, vector<1x286x3xbf16>
    %1 = vector.shape_cast %0 : vector<1x286x3xbf16> to vector<286x3xbf16>
    %c0_2 = arith.constant 0 : index
    %c0_3 = arith.constant 0 : index
    %c0_4 = arith.constant 0 : index
    %c0_5 = arith.constant 0 : index
    %2 = vector.load %arg3[%c0_2, %c0_3, %c0_4, %c0_5] : memref<3x3x3x64xbf16, #tpu.memory_space<vmem>>, vector<1x1x3x64xbf16>
    %3 = vector.shape_cast %2 : vector<1x1x3x64xbf16> to vector<3x64xbf16>
    %cst = arith.constant dense<0.000000e+00> : vector<286x64xf32>
    %4 = tpu.matmul %1, %3, %cst {dimension_numbers = #tpu.dot_dimension_numbers<[1], [0], [0], [1], [0, 0, 1, 1], [], []>} : vector<286x3xbf16>, vector<3x64xbf16>, vector<286x64xf32> -> vector<286x64xf32>
    %c0_6 = arith.constant 0 : index
    %c1 = arith.constant 1 : index
    %c0_7 = arith.constant 0 : index
    %5 = vector.load %arg2[%c0_6, %c1, %c0_7] : memref<1x324x3xbf16, #tpu.memory_space<vmem>>, vector<1x286x3xbf16>
    %6 = vector.shape_cast %5 : vector<1x286x3xbf16> to vector<286x3xbf16>
    %c0_8 = arith.constant 0 : index
    %c1_9 = arith.constant 1 : index
    %c0_10 = arith.constant 0 : index
    %c0_11 = arith.constant 0 : index
    %7 = vector.load %arg3[%c0_8, %c1_9, %c0_10, %c0_11] : memref<3x3x3x64xbf16, #tpu.memory_space<vmem>>, vector<1x1x3x64xbf16>
    %8 = vector.shape_cast %7 : vector<1x1x3x64xbf16> to vector<3x64xbf16>
    %cst_12 = arith.constant dense<0.000000e+00> : vector<286x64xf32>
    %9 = tpu.matmul %6, %8, %cst_12 {dimension_numbers = #tpu.dot_dimension_numbers<[1], [0], [0], [1], [0, 0, 1, 1], [], []>} : vector<286x3xbf16>, vector<3x64xbf16>, vector<286x64xf32> -> vector<286x64xf32>
    %10 = arith.addf %4, %9 : vector<286x64xf32>
    %c0_13 = arith.constant 0 : index
    %c2 = arith.constant 2 : index
    %c0_14 = arith.constant 0 : index
    %11 = vector.load %arg2[%c0_13, %c2, %c0_14] : memref<1x324x3xbf16, #tpu.memory_space<vmem>>, vector<1x286x3xbf16>
    %12 = vector.shape_cast %11 : vector<1x286x3xbf16> to vector<286x3xbf16>
    %c0_15 = arith.constant 0 : index
    %c2_16 = arith.constant 2 : index
    %c0_17 = arith.constant 0 : index
    %c0_18 = arith.constant 0 : index
    %13 = vector.load %arg3[%c0_15, %c2_16, %c0_17, %c0_18] : memref<3x3x3x64xbf16, #tpu.memory_space<vmem>>, vector<1x1x3x64xbf16>
    %14 = vector.shape_cast %13 : vector<1x1x3x64xbf16> to vector<3x64xbf16>
    %cst_19 = arith.constant dense<0.000000e+00> : vector<286x64xf32>
    %15 = tpu.matmul %12, %14, %cst_19 {dimension_numbers = #tpu.dot_dimension_numbers<[1], [0], [0], [1], [0, 0, 1, 1], [], []>} : vector<286x3xbf16>, vector<3x64xbf16>, vector<286x64xf32> -> vector<286x64xf32>
    %16 = arith.addf %10, %15 : vector<286x64xf32>
    %c0_20 = arith.constant 0 : index
    %c0_21 = arith.constant 0 : index
    %c0_22 = arith.constant 0 : index
    %17 = vector.load %arg7[%c0_20, %c0_21, %c0_22] : memref<1x286x64xf32, #tpu.memory_space<vmem>>, vector<1x286x64xf32>
    %18 = vector.shape_cast %17 : vector<1x286x64xf32> to vector<286x64xf32>
    %19 = vector.shape_cast %16 : vector<286x64xf32> to vector<1x286x64xf32>
    tpu.vector_store %arg7[%c0_20, %c0_21, %c0_22], %19 {strides = array<i32>} : memref<1x286x64xf32, #tpu.memory_space<vmem>>, vector<1x286x64xf32>,
    %c0_23 = arith.constant 0 : index
    %c18 = arith.constant 18 : index
    %c0_24 = arith.constant 0 : index
    %20 = vector.load %arg2[%c0_23, %c18, %c0_24] : memref<1x324x3xbf16, #tpu.memory_space<vmem>>, vector<1x286x3xbf16>
    %21 = vector.shape_cast %20 : vector<1x286x3xbf16> to vector<286x3xbf16>
    %c1_25 = arith.constant 1 : index
    %c0_26 = arith.constant 0 : index
    %c0_27 = arith.constant 0 : index
    %c0_28 = arith.constant 0 : index
    %22 = vector.load %arg3[%c1_25, %c0_26, %c0_27, %c0_28] : memref<3x3x3x64xbf16, #tpu.memory_space<vmem>>, vector<1x1x3x64xbf16>
    %23 = vector.shape_cast %22 : vector<1x1x3x64xbf16> to vector<3x64xbf16>
    %cst_29 = arith.constant dense<0.000000e+00> : vector<286x64xf32>
    %24 = tpu.matmul %21, %23, %cst_29 {dimension_numbers = #tpu.dot_dimension_numbers<[1], [0], [0], [1], [0, 0, 1, 1], [], []>} : vector<286x3xbf16>, vector<3x64xbf16>, vector<286x64xf32> -> vector<286x64xf32>
    %c0_30 = arith.constant 0 : index
    %c19 = arith.constant 19 : index
    %c0_31 = arith.constant 0 : index
    %25 = vector.load %arg2[%c0_30, %c19, %c0_31] : memref<1x324x3xbf16, #tpu.memory_space<vmem>>, vector<1x286x3xbf16>
    %26 = vector.shape_cast %25 : vector<1x286x3xbf16> to vector<286x3xbf16>
    %c1_32 = arith.constant 1 : index
    %c1_33 = arith.constant 1 : index
    %c0_34 = arith.constant 0 : index
    %c0_35 = arith.constant 0 : index
    %27 = vector.load %arg3[%c1_32, %c1_33, %c0_34, %c0_35] : memref<3x3x3x64xbf16, #tpu.memory_space<vmem>>, vector<1x1x3x64xbf16>
    %28 = vector.shape_cast %27 : vector<1x1x3x64xbf16> to vector<3x64xbf16>
    %cst_36 = arith.constant dense<0.000000e+00> : vector<286x64xf32>
    %29 = tpu.matmul %26, %28, %cst_36 {dimension_numbers = #tpu.dot_dimension_numbers<[1], [0], [0], [1], [0, 0, 1, 1], [], []>} : vector<286x3xbf16>, vector<3x64xbf16>, vector<286x64xf32> -> vector<286x64xf32>
    %30 = arith.addf %24, %29 : vector<286x64xf32>
    %c0_37 = arith.constant 0 : index
    %c20 = arith.constant 20 : index
    %c0_38 = arith.constant 0 : index
    %31 = vector.load %arg2[%c0_37, %c20, %c0_38] : memref<1x324x3xbf16, #tpu.memory_space<vmem>>, vector<1x286x3xbf16>
    %32 = vector.shape_cast %31 : vector<1x286x3xbf16> to vector<286x3xbf16>
    %c1_39 = arith.constant 1 : index
    %c2_40 = arith.constant 2 : index
    %c0_41 = arith.constant 0 : index
    %c0_42 = arith.constant 0 : index
    %33 = vector.load %arg3[%c1_39, %c2_40, %c0_41, %c0_42] : memref<3x3x3x64xbf16, #tpu.memory_space<vmem>>, vector<1x1x3x64xbf16>
    %34 = vector.shape_cast %33 : vector<1x1x3x64xbf16> to vector<3x64xbf16>
    %cst_43 = arith.constant dense<0.000000e+00> : vector<286x64xf32>
    %35 = tpu.matmul %32, %34, %cst_43 {dimension_numbers = #tpu.dot_dimension_numbers<[1], [0], [0], [1], [0, 0, 1, 1], [], []>} : vector<286x3xbf16>, vector<3x64xbf16>, vector<286x64xf32> -> vector<286x64xf32>
    %36 = arith.addf %30, %35 : vector<286x64xf32>
    %c0_44 = arith.constant 0 : index
    %c0_45 = arith.constant 0 : index
    %c0_46 = arith.constant 0 : index
    %37 = vector.load %arg7[%c0_44, %c0_45, %c0_46] : memref<1x286x64xf32, #tpu.memory_space<vmem>>, vector<1x286x64xf32>
    %38 = vector.shape_cast %37 : vector<1x286x64xf32> to vector<286x64xf32>
    %39 = arith.addf %38, %36 : vector<286x64xf32>
    %c0_47 = arith.constant 0 : index
    %c0_48 = arith.constant 0 : index
    %c0_49 = arith.constant 0 : index
    %40 = vector.load %arg7[%c0_47, %c0_48, %c0_49] : memref<1x286x64xf32, #tpu.memory_space<vmem>>, vector<1x286x64xf32>
    %41 = vector.shape_cast %40 : vector<1x286x64xf32> to vector<286x64xf32>
    %42 = vector.shape_cast %39 : vector<286x64xf32> to vector<1x286x64xf32>
    tpu.vector_store %arg7[%c0_47, %c0_48, %c0_49], %42 {strides = array<i32>} : memref<1x286x64xf32, #tpu.memory_space<vmem>>, vector<1x286x64xf32>,
    %c0_50 = arith.constant 0 : index
    %c36 = arith.constant 36 : index
    %c0_51 = arith.constant 0 : index
    %43 = vector.load %arg2[%c0_50, %c36, %c0_51] : memref<1x324x3xbf16, #tpu.memory_space<vmem>>, vector<1x286x3xbf16>
    %44 = vector.shape_cast %43 : vector<1x286x3xbf16> to vector<286x3xbf16>
    %c2_52 = arith.constant 2 : index
    %c0_53 = arith.constant 0 : index
    %c0_54 = arith.constant 0 : index
    %c0_55 = arith.constant 0 : index
    %45 = vector.load %arg3[%c2_52, %c0_53, %c0_54, %c0_55] : memref<3x3x3x64xbf16, #tpu.memory_space<vmem>>, vector<1x1x3x64xbf16>
    %46 = vector.shape_cast %45 : vector<1x1x3x64xbf16> to vector<3x64xbf16>
    %cst_56 = arith.constant dense<0.000000e+00> : vector<286x64xf32>
    %47 = tpu.matmul %44, %46, %cst_56 {dimension_numbers = #tpu.dot_dimension_numbers<[1], [0], [0], [1], [0, 0, 1, 1], [], []>} : vector<286x3xbf16>, vector<3x64xbf16>, vector<286x64xf32> -> vector<286x64xf32>
    %c0_57 = arith.constant 0 : index
    %c37 = arith.constant 37 : index
    %c0_58 = arith.constant 0 : index
    %48 = vector.load %arg2[%c0_57, %c37, %c0_58] : memref<1x324x3xbf16, #tpu.memory_space<vmem>>, vector<1x286x3xbf16>
    %49 = vector.shape_cast %48 : vector<1x286x3xbf16> to vector<286x3xbf16>
    %c2_59 = arith.constant 2 : index
    %c1_60 = arith.constant 1 : index
    %c0_61 = arith.constant 0 : index
    %c0_62 = arith.constant 0 : index
    %50 = vector.load %arg3[%c2_59, %c1_60, %c0_61, %c0_62] : memref<3x3x3x64xbf16, #tpu.memory_space<vmem>>, vector<1x1x3x64xbf16>
    %51 = vector.shape_cast %50 : vector<1x1x3x64xbf16> to vector<3x64xbf16>
    %cst_63 = arith.constant dense<0.000000e+00> : vector<286x64xf32>
    %52 = tpu.matmul %49, %51, %cst_63 {dimension_numbers = #tpu.dot_dimension_numbers<[1], [0], [0], [1], [0, 0, 1, 1], [], []>} : vector<286x3xbf16>, vector<3x64xbf16>, vector<286x64xf32> -> vector<286x64xf32>
    %53 = arith.addf %47, %52 : vector<286x64xf32>
    %c0_64 = arith.constant 0 : index
    %c38 = arith.constant 38 : index
    %c0_65 = arith.constant 0 : index
    %54 = vector.load %arg2[%c0_64, %c38, %c0_65] : memref<1x324x3xbf16, #tpu.memory_space<vmem>>, vector<1x286x3xbf16>
    %55 = vector.shape_cast %54 : vector<1x286x3xbf16> to vector<286x3xbf16>
    %c2_66 = arith.constant 2 : index
    %c2_67 = arith.constant 2 : index
    %c0_68 = arith.constant 0 : index
    %c0_69 = arith.constant 0 : index
    %56 = vector.load %arg3[%c2_66, %c2_67, %c0_68, %c0_69] : memref<3x3x3x64xbf16, #tpu.memory_space<vmem>>, vector<1x1x3x64xbf16>
    %57 = vector.shape_cast %56 : vector<1x1x3x64xbf16> to vector<3x64xbf16>
    %cst_70 = arith.constant dense<0.000000e+00> : vector<286x64xf32>
    %58 = tpu.matmul %55, %57, %cst_70 {dimension_numbers = #tpu.dot_dimension_numbers<[1], [0], [0], [1], [0, 0, 1, 1], [], []>} : vector<286x3xbf16>, vector<3x64xbf16>, vector<286x64xf32> -> vector<286x64xf32>
    %59 = arith.addf %53, %58 : vector<286x64xf32>
    %c0_71 = arith.constant 0 : index
    %c0_72 = arith.constant 0 : index
    %c0_73 = arith.constant 0 : index
    %60 = vector.load %arg7[%c0_71, %c0_72, %c0_73] : memref<1x286x64xf32, #tpu.memory_space<vmem>>, vector<1x286x64xf32>
    %61 = vector.shape_cast %60 : vector<1x286x64xf32> to vector<286x64xf32>
    %62 = arith.addf %61, %59 : vector<286x64xf32>
    %c0_74 = arith.constant 0 : index
    %c0_75 = arith.constant 0 : index
    %c0_76 = arith.constant 0 : index
    %63 = vector.load %arg7[%c0_74, %c0_75, %c0_76] : memref<1x286x64xf32, #tpu.memory_space<vmem>>, vector<1x286x64xf32>
    %64 = vector.shape_cast %63 : vector<1x286x64xf32> to vector<286x64xf32>
    %65 = vector.shape_cast %62 : vector<286x64xf32> to vector<1x286x64xf32>
    tpu.vector_store %arg7[%c0_74, %c0_75, %c0_76], %65 {strides = array<i32>} : memref<1x286x64xf32, #tpu.memory_space<vmem>>, vector<1x286x64xf32>,
    %cst_77 = arith.constant 0.000000e+00 : bf16
    %66 = vector.broadcast %cst_77 : bf16 to vector<19x64xbf16>
    %c0_78 = arith.constant 0 : index
    %c0_79 = arith.constant 0 : index
    %c0_80 = arith.constant 0 : index
    %67 = vector.load %arg7[%c0_78, %c0_79, %c0_80] : memref<1x286x64xf32, #tpu.memory_space<vmem>>, vector<1x286x64xf32>
    %68 = vector.shape_cast %67 : vector<1x286x64xf32> to vector<286x64xf32>
    %c0_81 = arith.constant 0 : index
    %c0_82 = arith.constant 0 : index
    %69 = vector.load %arg4[%c0_81, %c0_82] : memref<1x64xf32, #tpu.memory_space<vmem>>, vector<1x64xf32>
    %70 = vector.broadcast %69 : vector<1x64xf32> to vector<286x64xf32>
    %71 = arith.addf %68, %70 : vector<286x64xf32>
    %cst_83 = arith.constant 0.000000e+00 : f32
    %72 = vector.broadcast %cst_83 : f32 to vector<286x64xf32>
    %73 = arith.maximumf %71, %72 : vector<286x64xf32>
    %c0_84 = arith.constant 0 : index
    %c0_85 = arith.constant 0 : index
    %74 = vector.load %arg5[%c0_84, %c0_85] : memref<286x1xf32, #tpu.memory_space<vmem>>, vector<286x1xf32>
    %75 = vector.broadcast %74 : vector<286x1xf32> to vector<286x64xf32>
    %76 = arith.mulf %73, %75 : vector<286x64xf32>
    %77 = arith.truncf %76 : vector<286x64xf32> to vector<286x64xbf16>
    %c0_86 = arith.constant 0 : index
    %c19_87 = arith.constant 19 : index
    %c0_88 = arith.constant 0 : index
    %78 = vector.load %arg6[%c0_86, %c19_87, %c0_88] : memref<1x324x64xbf16, #tpu.memory_space<vmem>>, vector<1x286x64xbf16>
    %79 = vector.shape_cast %78 : vector<1x286x64xbf16> to vector<286x64xbf16>
    %80 = vector.shape_cast %77 : vector<286x64xbf16> to vector<1x286x64xbf16>
    tpu.vector_store %arg6[%c0_86, %c19_87, %c0_88], %80 {strides = array<i32>} : memref<1x324x64xbf16, #tpu.memory_space<vmem>>, vector<1x286x64xbf16>,
    %c0_89 = arith.constant 0 : index
    %c0_90 = arith.constant 0 : index
    %c0_91 = arith.constant 0 : index
    %81 = vector.load %arg6[%c0_89, %c0_90, %c0_91] : memref<1x324x64xbf16, #tpu.memory_space<vmem>>, vector<1x19x64xbf16>
    %82 = vector.shape_cast %81 : vector<1x19x64xbf16> to vector<19x64xbf16>
    %83 = vector.shape_cast %66 : vector<19x64xbf16> to vector<1x19x64xbf16>
    tpu.vector_store %arg6[%c0_89, %c0_90, %c0_91], %83 {strides = array<i32>} : memref<1x324x64xbf16, #tpu.memory_space<vmem>>, vector<1x19x64xbf16>,
    %c0_92 = arith.constant 0 : index
    %c305 = arith.constant 305 : index
    %c0_93 = arith.constant 0 : index
    %84 = vector.load %arg6[%c0_92, %c305, %c0_93] : memref<1x324x64xbf16, #tpu.memory_space<vmem>>, vector<1x19x64xbf16>
    %85 = vector.shape_cast %84 : vector<1x19x64xbf16> to vector<19x64xbf16>
    %86 = vector.shape_cast %66 : vector<19x64xbf16> to vector<1x19x64xbf16>
    tpu.vector_store %arg6[%c0_92, %c305, %c0_93], %86 {strides = array<i32>} : memref<1x324x64xbf16, #tpu.memory_space<vmem>>, vector<1x19x64xbf16>,
    return
  }
  func.func @transform_0(%arg0: i32, %arg1: i32) -> (i32, i32, i32) {
    %c0_i32 = arith.constant 0 : i32
    %c0_i32_0 = arith.constant 0 : i32
    %c0_i32_1 = arith.constant 0 : i32
    return %arg1, %c0_i32, %c0_i32_0 : i32, i32, i32
  }
  func.func @transform_1(%arg0: i32, %arg1: i32) -> (i32, i32, i32, i32) {
    %c0_i32 = arith.constant 0 : i32
    %c0_i32_0 = arith.constant 0 : i32
    %c0_i32_1 = arith.constant 0 : i32
    %c0_i32_2 = arith.constant 0 : i32
    return %c0_i32, %c0_i32_0, %c0_i32_1, %arg0 : i32, i32, i32, i32
  }
  func.func @transform_2(%arg0: i32, %arg1: i32) -> (i32, i32) {
    %c0_i32 = arith.constant 0 : i32
    %c0_i32_0 = arith.constant 0 : i32
    return %c0_i32, %arg0 : i32, i32
  }
  func.func @transform_3(%arg0: i32, %arg1: i32) -> (i32, i32) {
    %c0_i32 = arith.constant 0 : i32
    %c0_i32_0 = arith.constant 0 : i32
    %c0_i32_1 = arith.constant 0 : i32
    return %c0_i32, %c0_i32_0 : i32, i32
  }
  func.func @transform_4(%arg0: i32, %arg1: i32) -> (i32, i32, i32) {
    %c0_i32 = arith.constant 0 : i32
    %c0_i32_0 = arith.constant 0 : i32
    return %arg1, %c0_i32, %arg0 : i32, i32, i32
  }
}

</mosaic_0001>

<llo_original>
// kernel: tpu_custom_call.1
$region0: #{tpu_custom_call.1}
  #allocation0 [shape = 'u32[]', space=smem, size = 0x4, offset = 0x4, fixed_abs, tag = 'smem constant byte address 0x4 - core index']
  #allocation1 [shape = 'u32[144,128]{1,0:T(1,128)}', space=vmem, size = 0x12000, scoped, tag = 'internal scratch']
  #allocation2 [shape = 'f32[1,286,64]{2,1,0:T(8,128)}', space=vmem, size = 0x24000, scoped, tag = 'scratch operand']
  %s0 = inlined_call_operand.vmem [shape: bf16[4,324,3], index: 0, kind: input, shape index: {}]
  %s1 = inlined_call_operand.vmem [shape: bf16[3,3,3,64], index: 1, kind: input, shape index: {}]
  %s2 = inlined_call_operand.vmem [shape: f32[1,64], index: 2, kind: input, shape index: {}]
  %s3 = inlined_call_operand.vmem [shape: f32[286,1], index: 3, kind: input, shape index: {}]
  %s4 = inlined_call_operand.vmem [shape: bf16[4,324,64], index: 4, kind: output, shape index: {}]
  %s5 = sld [smem:[#allocation0]]
  $region49: #{tpu_custom_call.1} parent=0
    _
  %s7 = ssub.s32 1, %s5
  %s8 = scalar_select 0, %s7, %s5
  loop: start=0, step=1, limit=6
  $region2: #{tpu_custom_call.1} parent=0 // loop_pre_header
    _
  $region3: #{tpu_custom_call.1} parent=0 // loop_header
    %s10 = sphi 0, %s14
    %p11 = scmp.ge.s32.totalorder %s10, 6
    %s17 = sphi 0, %s29
    %s18 = sphi 0, %s25
    %s19 = sphi 0, %s17
    %s20 = sphi 0, %s18
    %s21 = sphi 0, %s19
    %s22 = sphi 0, %s20
    %s32 = sphi 0, %s34
    %s35 = sphi 0, %s32
    %s36 = sphi 0, %s35
    %s52 = sphi 0, %s36
    %s58 = sphi 0, %s60
    %s61 = sphi 0, %s58
    %s62 = sphi 0, %s61
    %s78 = sphi 0, %s62
    %s84 = sphi 0, %s86
    %s87 = sphi 0, %s84
    %s88 = sphi 0, %s87
    %s104 = sphi 0, %s88
    %s108 = sphi 0, %s108
    %s110 = sphi 0, %s108
    %s111 = sphi 0, %s110
    %s125 = sphi 0, %s111
    %s133 = sphi 0, %s135
    %s136 = sphi 0, %s133
    %s137 = sphi 0, %s136
    %s153 = sphi 0, %s137
  $region4: #{tpu_custom_call.1} parent=0 // loop_header_branch
    %13 = sbr.rel (%p11) target = $region8
  $region5: #{tpu_custom_call.1} parent=0 // loop_body
    %s15 = ssub.s32 %s10, 1
    %s16 = ssub.s32 %s10, 2
    %s23 = sadd.s32 1, %s18
    %p24 = scmp.ge.s32.totalorder %s23, 4
    %s25 = scalar_select %p24, 0, %s23
    %s26 = sadd.s32 1, %s17
    %s27 = scalar_select %p24, %s26, %s17
    %p28 = scmp.ge.s32.totalorder %s27, 1
    %s29 = scalar_select %p28, 0, %s27
    %s30 = ssub.s32 %s18, %s25
    %p31 = scmp.eq.s32.totalorder %s30, 0
    %s33 = sadd.s32 %s32, 1
    %s34 = scalar_select %p31, %s32, %s33
    %p37 = pneg %p31
    %p38 = scmp.eq.s32.totalorder %s10, 3
    %p39 = por %p37, %p38
    %p40 = scmp.ne.s32.totalorder %s32, %s35
    %p41 = scmp.eq.s32.totalorder %s10, 0
    %p42 = por %p40, %p41
    %p43 = scmp.ne.s32.totalorder %s32, %s35
    %p44 = scmp.eq.s32.totalorder %s15, 3
    %p45 = por %p43, %p44
    %p46 = scmp.ne.s32.totalorder %s35, %s36
    %p47 = scmp.eq.s32.totalorder %s15, 0
    %p48 = por %p46, %p47
    %p49 = scmp.ne.s32.totalorder %s35, %s36
    %p50 = scmp.eq.s32.totalorder %s16, 3
    %p51 = por %p49, %p50
    %p53 = scmp.ne.s32.totalorder %s36, %s52
    %p54 = scmp.eq.s32.totalorder %s16, 0
    %p55 = por %p53, %p54
    %s56 = ssub.s32 %s17, %s29
    %p57 = scmp.eq.s32.totalorder %s56, 0
    %s59 = sadd.s32 %s58, 1
    %s60 = scalar_select %p57, %s58, %s59
    %p63 = pneg %p57
    %p64 = scmp.eq.s32.totalorder %s10, 3
    %p65 = por %p63, %p64
    %p66 = scmp.ne.s32.totalorder %s58, %s61
    %p67 = scmp.eq.s32.totalorder %s10, 0
    %p68 = por %p66, %p67
    %p69 = scmp.ne.s32.totalorder %s58, %s61
    %p70 = scmp.eq.s32.totalorder %s15, 3
    %p71 = por %p69, %p70
    %p72 = scmp.ne.s32.totalorder %s61, %s62
    %p73 = scmp.eq.s32.totalorder %s15, 0
    %p74 = por %p72, %p73
    %p75 = scmp.ne.s32.totalorder %s61, %s62
    %p76 = scmp.eq.s32.totalorder %s16, 3
    %p77 = por %p75, %p76
    %p79 = scmp.ne.s32.totalorder %s62, %s78
    %p80 = scmp.eq.s32.totalorder %s16, 0
    %p81 = por %p79, %p80
    %s82 = ssub.s32 %s17, %s29
    %p83 = scmp.eq.s32.totalorder %s82, 0
    %s85 = sadd.s32 %s84, 1
    %s86 = scalar_select %p83, %s84, %s85
    %p89 = pneg %p83
    %p90 = scmp.eq.s32.totalorder %s10, 3
    %p91 = por %p89, %p90
    %p92 = scmp.ne.s32.totalorder %s84, %s87
    %p93 = scmp.eq.s32.totalorder %s10, 0
    %p94 = por %p92, %p93
    %p95 = scmp.ne.s32.totalorder %s84, %s87
    %p96 = scmp.eq.s32.totalorder %s15, 3
    %p97 = por %p95, %p96
    %p98 = scmp.ne.s32.totalorder %s87, %s88
    %p99 = scmp.eq.s32.totalorder %s15, 0
    %p100 = por %p98, %p99
    %p101 = scmp.ne.s32.totalorder %s87, %s88
    %p102 = scmp.eq.s32.totalorder %s16, 3
    %p103 = por %p101, %p102
    %p105 = scmp.ne.s32.totalorder %s88, %s104
    %p106 = scmp.eq.s32.totalorder %s16, 0
    %p107 = por %p105, %p106
    %s109 = sadd.s32 %s108, 1
    %p112 = scmp.eq.s32.totalorder %s10, 3
    %p113 = scmp.ne.s32.totalorder %s108, %s110
    %p114 = scmp.eq.s32.totalorder %s10, 0
    %p115 = por %p113, %p114
    %p116 = scmp.ne.s32.totalorder %s108, %s110
    %p117 = scmp.eq.s32.totalorder %s15, 3
    %p118 = por %p116, %p117
    %p119 = scmp.ne.s32.totalorder %s110, %s111
    %p120 = scmp.eq.s32.totalorder %s15, 0
    %p121 = por %p119, %p120
    %p122 = scmp.ne.s32.totalorder %s110, %s111
    %p123 = scmp.eq.s32.totalorder %s16, 3
    %p124 = por %p122, %p123
    %p126 = scmp.ne.s32.totalorder %s111, %s125
    %p127 = scmp.eq.s32.totalorder %s16, 0
    %p128 = por %p126, %p127
    %s129 = ssub.s32 %s18, %s25
    %s130 = ssub.s32 %s17, %s29
    %s131 = sor.u32 %s129, %s130
    %p132 = scmp.eq.s32.totalorder %s131, 0
    %s134 = sadd.s32 %s133, 1
    %s135 = scalar_select %p132, %s133, %s134
    %p138 = pneg %p132
    %p139 = scmp.eq.s32.totalorder %s10, 3
    %p140 = por %p138, %p139
    %p141 = scmp.ne.s32.totalorder %s133, %s136
    %p142 = scmp.eq.s32.totalorder %s10, 0
    %p143 = por %p141, %p142
    %p144 = scmp.ne.s32.totalorder %s133, %s136
    %p145 = scmp.eq.s32.totalorder %s15, 3
    %p146 = por %p144, %p145
    %p147 = scmp.ne.s32.totalorder %s136, %s137
    %p148 = scmp.eq.s32.totalorder %s15, 0
    %p149 = por %p147, %p148
    %p150 = scmp.ne.s32.totalorder %s136, %s137
    %p151 = scmp.eq.s32.totalorder %s16, 3
    %p152 = por %p150, %p151
    %p154 = scmp.ne.s32.totalorder %s137, %s153
    %p155 = scmp.eq.s32.totalorder %s16, 0
    %p156 = por %p154, %p155
    %p157 = scmp.le.s32.totalorder 1, %s10
    %p158 = scmp.lt.s32.totalorder %s10, 5
    %p159 = pnand %p157, %p158
    %p160 = pneg %p159
    // Predicated region
    $region9: #{tpu_custom_call.1} parent=5 // pred_check
      _
    $region10: #{tpu_custom_call.1} parent=5 // pred_check_branch
      %162 = sbr.rel (%p159) target = $region12
    $region11: #{tpu_custom_call.1} parent=5 // pred_region
      %s163 = ssub.s32 %s10, 1
      // Predicated region
      $region13: #{tpu_custom_call.1} parent=11 // pred_check
        %p164 = pneg %p74
      $region14: #{tpu_custom_call.1} parent=11 // pred_check_branch
        %166 = sbr.rel (%p164) target = $region16
      $region15: #{tpu_custom_call.1} parent=11 // pred_region
        %p167 = scmp.lt.s32.totalorder %s19, 0
        %s168 = scalar_select %p167, %s19, 0
        %s169 = smul.addr %s168, 2
        %s170 = scalar_lea.vmem %s1, %s169
      $region16: #{tpu_custom_call.1} parent=11 // pred_fallthru
        _
      // Predicated region
      $region17: #{tpu_custom_call.1} parent=11 // pred_check
        %p171 = pneg %p100
      $region18: #{tpu_custom_call.1} parent=11 // pred_check_branch
        %173 = sbr.rel (%p171) target = $region20
      $region19: #{tpu_custom_call.1} parent=11 // pred_region
        %p174 = scmp.lt.s32.totalorder %s19, 0
        %s175 = scalar_select %p174, %s19, 0
        %s176 = scalar_lea.vmem %s2, %s175
      $region20: #{tpu_custom_call.1} parent=11 // pred_fallthru
        _
      // Predicated region
      $region21: #{tpu_custom_call.1} parent=11 // pred_check
        %p177 = pneg %p121
      $region22: #{tpu_custom_call.1} parent=11 // pred_check_branch
        %179 = sbr.rel (%p177) target = $region24
      $region23: #{tpu_custom_call.1} parent=11 // pred_region
        _
      $region24: #{tpu_custom_call.1} parent=11 // pred_fallthru
        _
    $region12: #{tpu_custom_call.1} parent=5 // pred_fallthru
      _
    %p180 = scmp.lt.s32.totalorder %s10, 4
    // Predicated region
    $region25: #{tpu_custom_call.1} parent=5 // pred_check
      %p181 = pneg %p180
    $region26: #{tpu_custom_call.1} parent=5 // pred_check_branch
      %183 = sbr.rel (%p181) target = $region28
    $region27: #{tpu_custom_call.1} parent=5 // pred_region
      // Predicated region
      $region29: #{tpu_custom_call.1} parent=27 // pred_check
        %p184 = pneg %p42
      $region30: #{tpu_custom_call.1} parent=27 // pred_check_branch
        %186 = sbr.rel (%p184) target = $region32
      $region31: #{tpu_custom_call.1} parent=27 // pred_region
        %p187 = scmp.lt.s32.totalorder %s18, 3
        %s188 = scalar_select %p187, %s18, 3
        %s189 = smul.addr %s188, 41
        %s190 = smul.addr %s189, 4
        %s191 = scalar_lea.vmem %s0, %s190
      $region32: #{tpu_custom_call.1} parent=27 // pred_fallthru
        _
    $region28: #{tpu_custom_call.1} parent=5 // pred_fallthru
      _
    %p192 = scmp.le.s32.totalorder 1, %s10
    %p193 = scmp.lt.s32.totalorder %s10, 5
    %p194 = pnand %p192, %p193
    %p195 = pneg %p194
    // Predicated region
    $region33: #{tpu_custom_call.1} parent=5 // pred_check
      _
    $region34: #{tpu_custom_call.1} parent=5 // pred_check_branch
      %197 = sbr.rel (%p194) target = $region36
    $region35: #{tpu_custom_call.1} parent=5 // pred_region
      %s198 = ssub.s32 %s10, 1
      %p199 = scmp.lt.s32.totalorder %s20, 3
      %s200 = scalar_select %p199, %s20, 3
      %s201 = smul.addr %s200, 41
      %s202 = smul.addr %s201, 4
      %s203 = scalar_lea.vmem %s0, %s202
      %p204 = pneg %p48
      %p205 = pneg %p45
      %p206 = scmp.lt.s32.totalorder %s19, 0
      %s207 = scalar_select %p206, %s19, 0
      %s208 = smul.addr %s207, 2
      %s209 = scalar_lea.vmem %s1, %s208
      %p210 = pneg %p74
      %p211 = pneg %p71
      %p212 = scmp.lt.s32.totalorder %s19, 0
      %s213 = scalar_select %p212, %s19, 0
      %s214 = scalar_lea.vmem %s2, %s213
      %p215 = pneg %p100
      %p216 = pneg %p97
      %p217 = pneg %p121
      %p218 = pneg %p118
      %p219 = pneg %p149
      %p220 = pneg %p146
      %p221 = scmp.lt.s32.totalorder %s20, 3
      %s222 = scalar_select %p221, %s20, 3
      %p223 = scmp.lt.s32.totalorder %s19, 0
      %s224 = scalar_select %p223, %s19, 0
      %s225 = smul.addr %s222, 41
      %s226 = sadd.s32 %s224, %s225
      %s227 = smul.addr %s226, 4
      %s228 = scalar_lea.vmem %s4, %s227
      %p229 = scmp.lt.s32.totalorder %s20, 3
      %s230 = scalar_select %p229, %s20, 3
      %s231 = smul.addr %s230, 41
      %s232 = smul.addr %s231, 4
      %s233 = scalar_lea.vmem %s0, %s232
      %p234 = scmp.lt.s32.totalorder %s19, 0
      %s235 = scalar_select %p234, %s19, 0
      %s236 = smul.addr %s235, 2
      %s237 = scalar_lea.vmem %s1, %s236
      %p238 = scmp.lt.s32.totalorder %s19, 0
      %s239 = scalar_select %p238, %s19, 0
      %s240 = scalar_lea.vmem %s2, %s239
      %p241 = scmp.lt.s32.totalorder %s20, 3
      %s242 = scalar_select %p241, %s20, 3
      %p243 = scmp.lt.s32.totalorder %s19, 0
      %s244 = scalar_select %p243, %s19, 0
      %s245 = smul.addr %s242, 41
      %s246 = sadd.s32 %s244, %s245
      %s247 = smul.addr %s246, 4
      %s248 = scalar_lea.vmem %s4, %s247
      %v250 = vld [vmem:[%s233] sm:$0xf]
      %v251 = vld [vmem:[%s233 + $0x4] sm:$0xf]
      %v252 = vld [vmem:[%s233 + $0x8] sm:$0xf]
      %v253 = vld [vmem:[%s233 + $0xc] sm:$0xf]
      %v254 = vld [vmem:[%s233 + $0x10] sm:$0xf]
      %v255 = vld [vmem:[%s233 + $0x14] sm:$0xf]
      %v256 = vld [vmem:[%s233 + $0x18] sm:$0xf]
      %v257 = vld [vmem:[%s233 + $0x1c] sm:$0xf]
      %v258 = vld [vmem:[%s233 + $0x20] sm:$0xf]
      %v259 = vld [vmem:[%s233 + $0x24] sm:$0xf]
      %v260 = vld [vmem:[%s233 + $0x28] sm:$0xf]
      %v261 = vld [vmem:[%s233 + $0x2c] sm:$0xf]
      %v262 = vld [vmem:[%s233 + $0x30] sm:$0xf]
      %v263 = vld [vmem:[%s233 + $0x34] sm:$0xf]
      %v264 = vld [vmem:[%s233 + $0x38] sm:$0xf]
      %v265 = vld [vmem:[%s233 + $0x3c] sm:$0xf]
      %v266 = vld [vmem:[%s233 + $0x40] sm:$0xf]
      %v267 = vld [vmem:[%s233 + $0x44] sm:$0xf]
      %v268 = vld [vmem:[%s233 + $0x48] sm:$0xf]
      %v269 = vld [vmem:[%s233 + $0x4c] sm:$0xf]
      %v270 = vld [vmem:[%s233 + $0x50] sm:$0xf]
      %v271 = vld [vmem:[%s233 + $0x54] sm:$0xf]
      %v272 = vld [vmem:[%s233 + $0x58] sm:$0xf]
      %v273 = vld [vmem:[%s233 + $0x5c] sm:$0xf]
      %v274 = vld [vmem:[%s233 + $0x60] sm:$0xf]
      %v275 = vld [vmem:[%s233 + $0x64] sm:$0xf]
      %v276 = vld [vmem:[%s233 + $0x68] sm:$0xf]
      %v277 = vld [vmem:[%s233 + $0x6c] sm:$0xf]
      %v278 = vld [vmem:[%s233 + $0x70] sm:$0xf]
      %v279 = vld [vmem:[%s233 + $0x74] sm:$0xf]
      %v280 = vld [vmem:[%s233 + $0x78] sm:$0xf]
      %v281 = vld [vmem:[%s233 + $0x7c] sm:$0xf]
      %v282 = vld [vmem:[%s233 + $0x80] sm:$0xf]
      %v283 = vld [vmem:[%s233 + $0x84] sm:$0xf]
      %v284 = vld [vmem:[%s233 + $0x88] sm:$0xf]
      %v285 = vld [vmem:[%s233 + $0x8c] sm:$0x7]
      %v286 = vld [vmem:[%s237] sm:$0x3]
      %v287 = vld [vmem:[%s233 + $0x8c] sm:$0xf]
      %s288 = scalar_lea.vmem %s237, 2
      %v289 = vld [vmem:[%s288] sm:$0x3]
      %v326 = vunpack.c.l.b16 %v250
      %v327 = vunpack.c.l.b16 %v251
      %v328 = vunpack.c.l.b16 %v252
      %v329 = vunpack.c.l.b16 %v253
      %v330 = vunpack.c.l.b16 %v254
      %v331 = vunpack.c.l.b16 %v255
      %v332 = vunpack.c.l.b16 %v256
      %v333 = vunpack.c.l.b16 %v257
      %v334 = vunpack.c.l.b16 %v258
      %v335 = vunpack.c.l.b16 %v259
      %v336 = vunpack.c.l.b16 %v260
      %v337 = vunpack.c.l.b16 %v261
      %v338 = vunpack.c.l.b16 %v262
      %v339 = vunpack.c.l.b16 %v263
      %v340 = vunpack.c.l.b16 %v264
      %v341 = vunpack.c.l.b16 %v265
      %v342 = vunpack.c.l.b16 %v266
      %v343 = vunpack.c.l.b16 %v267
      %v344 = vunpack.c.l.b16 %v268
      %v345 = vunpack.c.l.b16 %v269
      %v346 = vunpack.c.l.b16 %v270
      %v347 = vunpack.c.l.b16 %v271
      %v348 = vunpack.c.l.b16 %v272
      %v349 = vunpack.c.l.b16 %v273
      %v350 = vunpack.c.l.b16 %v274
      %v351 = vunpack.c.l.b16 %v275
      %v352 = vunpack.c.l.b16 %v276
      %v353 = vunpack.c.l.b16 %v277
      %v354 = vunpack.c.l.b16 %v278
      %v355 = vunpack.c.l.b16 %v279
      %v356 = vunpack.c.l.b16 %v280
      %v357 = vunpack.c.l.b16 %v281
      %v358 = vunpack.c.l.b16 %v282
      %v359 = vunpack.c.l.b16 %v283
      %v360 = vunpack.c.l.b16 %v284
      %v361 = vunpack.c.l.b16 %v287
      %v362 = vpack.c.b16 %v327, %v326
      %v363 = vpack.c.b16 %v329, %v328
      %v364 = vpack.c.b16 %v331, %v330
      %v365 = vpack.c.b16 %v333, %v332
      %v366 = vpack.c.b16 %v335, %v334
      %v367 = vpack.c.b16 %v337, %v336
      %v368 = vpack.c.b16 %v339, %v338
      %v369 = vpack.c.b16 %v341, %v340
      %v370 = vpack.c.b16 %v343, %v342
      %v371 = vpack.c.b16 %v345, %v344
      %v372 = vpack.c.b16 %v347, %v346
      %v373 = vpack.c.b16 %v349, %v348
      %v374 = vpack.c.b16 %v351, %v350
      %v375 = vpack.c.b16 %v353, %v352
      %v376 = vpack.c.b16 %v355, %v354
      %v377 = vpack.c.b16 %v357, %v356
      %v378 = vpack.c.b16 %v359, %v358
      %v379 = vpack.c.b16 %v361, %v360
      %vm380 = vsmask.f32 7424
      %v382 = vshrl.u32 %v362, 16
      %v384 = vshll.u32 %v362, 16
      %v386 = vrot.slane %v384, 1
      %v387 = vor.u32 %v382, %v386
      %v389 = vshll.u32 %v363, 16
      %v391 = vrot.slane %v389, 1
      %v392 = vsel %vm380, %v387, %v391
      %v393 = vshrl.u32 %v363, 16
      %v395 = vor.u32 %v393, %v391
      %v397 = vshll.u32 %v364, 16
      %v399 = vrot.slane %v397, 1
      %v400 = vsel %vm380, %v395, %v399
      %v401 = vshrl.u32 %v364, 16
      %v403 = vor.u32 %v401, %v399
      %v405 = vshll.u32 %v365, 16
      %v407 = vrot.slane %v405, 1
      %v408 = vsel %vm380, %v403, %v407
      %v409 = vshrl.u32 %v365, 16
      %v411 = vor.u32 %v409, %v407
      %v413 = vshll.u32 %v366, 16
      %v415 = vrot.slane %v413, 1
      %v416 = vsel %vm380, %v411, %v415
      %v417 = vshrl.u32 %v366, 16
      %v419 = vor.u32 %v417, %v415
      %v421 = vshll.u32 %v367, 16
      %v423 = vrot.slane %v421, 1
      %v424 = vsel %vm380, %v419, %v423
      %v425 = vshrl.u32 %v367, 16
      %v427 = vor.u32 %v425, %v423
      %v429 = vshll.u32 %v368, 16
      %v431 = vrot.slane %v429, 1
      %v432 = vsel %vm380, %v427, %v431
      %v433 = vshrl.u32 %v368, 16
      %v435 = vor.u32 %v433, %v431
      %v437 = vshll.u32 %v369, 16
      %v439 = vrot.slane %v437, 1
      %v440 = vsel %vm380, %v435, %v439
      %v441 = vshrl.u32 %v369, 16
      %v443 = vor.u32 %v441, %v439
      %v445 = vshll.u32 %v370, 16
      %v447 = vrot.slane %v445, 1
      %v448 = vsel %vm380, %v443, %v447
      %v449 = vshrl.u32 %v370, 16
      %v451 = vor.u32 %v449, %v447
      %v453 = vshll.u32 %v371, 16
      %v455 = vrot.slane %v453, 1
      %v456 = vsel %vm380, %v451, %v455
      %v457 = vshrl.u32 %v371, 16
      %v459 = vor.u32 %v457, %v455
      %v461 = vshll.u32 %v372, 16
      %v463 = vrot.slane %v461, 1
      %v464 = vsel %vm380, %v459, %v463
      %v465 = vshrl.u32 %v372, 16
      %v467 = vor.u32 %v465, %v463
      %v469 = vshll.u32 %v373, 16
      %v471 = vrot.slane %v469, 1
      %v472 = vsel %vm380, %v467, %v471
      %v473 = vshrl.u32 %v373, 16
      %v475 = vor.u32 %v473, %v471
      %v477 = vshll.u32 %v374, 16
      %v479 = vrot.slane %v477, 1
      %v480 = vsel %vm380, %v475, %v479
      %v481 = vshrl.u32 %v374, 16
      %v483 = vor.u32 %v481, %v479
      %v485 = vshll.u32 %v375, 16
      %v487 = vrot.slane %v485, 1
      %v488 = vsel %vm380, %v483, %v487
      %v489 = vshrl.u32 %v375, 16
      %v491 = vor.u32 %v489, %v487
      %v493 = vshll.u32 %v376, 16
      %v495 = vrot.slane %v493, 1
      %v496 = vsel %vm380, %v491, %v495
      %v497 = vshrl.u32 %v376, 16
      %v499 = vor.u32 %v497, %v495
      %v501 = vshll.u32 %v377, 16
      %v503 = vrot.slane %v501, 1
      %v504 = vsel %vm380, %v499, %v503
      %v505 = vshrl.u32 %v377, 16
      %v507 = vor.u32 %v505, %v503
      %v509 = vshll.u32 %v378, 16
      %v511 = vrot.slane %v509, 1
      %v512 = vsel %vm380, %v507, %v511
      %v513 = vshrl.u32 %v378, 16
      %v515 = vor.u32 %v513, %v511
      %v517 = vshll.u32 %v379, 16
      %v519 = vrot.slane %v517, 1
      %v520 = vsel %vm380, %v515, %v519
      %v521 = vshrl.u32 %v379, 16
      %v523 = vor.u32 %v521, %v519
      %vm524 = vcmask 23552
      %v526 = vsel %vm524, %v392, 0
      %v529 = vsel %vm524, %v400, 0
      %v532 = vsel %vm524, %v408, 0
      %v535 = vsel %vm524, %v416, 0
      %v538 = vsel %vm524, %v424, 0
      %v541 = vsel %vm524, %v432, 0
      %v544 = vsel %vm524, %v440, 0
      %v547 = vsel %vm524, %v448, 0
      %v550 = vsel %vm524, %v456, 0
      %v553 = vsel %vm524, %v464, 0
      %v556 = vsel %vm524, %v472, 0
      %v559 = vsel %vm524, %v480, 0
      %v562 = vsel %vm524, %v488, 0
      %v565 = vsel %vm524, %v496, 0
      %v568 = vsel %vm524, %v504, 0
      %v571 = vsel %vm524, %v512, 0
      %v574 = vsel %vm524, %v520, 0
      %v577 = vsel %vm524, %v523, 0
      %vm579 = vcmask 1040384
      %vm580 = vcmask 1041408
      %v581 = vsel %vm579, 4294967295, 65535
      %v582 = vsel %vm580, %v581, 0
      %v584 = vand.u32 %v289, %v582
      %586 = vmatprep.subr.bf16.mxu0 0
      %587 = vmatpush1.bf16.msra.mxu0 %v584
      %588 = vmatprep.subr.bf16.mxu0 0
      %589 = vmatpush1.bf16.msra.mxu0 0
      %590 = vmatprep.subr.bf16.mxu0 0
      %591 = vmatpush1.bf16.msra.mxu0 0
      %592 = vmatprep.subr.bf16.mxu0 0
      %593 = vmatpush1.bf16.msra.mxu0 0
      %594 = vmatprep.subr.bf16.mxu0 0
      %595 = vmatpush1.bf16.msra.mxu0 0
      %596 = vmatprep.subr.bf16.mxu0 0
      %597 = vmatpush1.bf16.msra.mxu0 0
      %598 = vmatprep.subr.bf16.mxu0 0
      %599 = vmatpush1.bf16.msra.mxu0 0
      %600 = vmatprep.subr.bf16.mxu0 0
      %601 = vmatpush1.bf16.msra.mxu0 0
      %602 = vmatprep.subr.bf16.mxu0 0
      %603 = vmatpush1.bf16.msra.mxu0 0
      %604 = vmatprep.subr.bf16.mxu0 0
      %605 = vmatpush1.bf16.msra.mxu0 0
      %606 = vmatprep.subr.bf16.mxu0 0
      %607 = vmatpush1.bf16.msra.mxu0 0
      %608 = vmatprep.subr.bf16.mxu0 0
      %609 = vmatpush1.bf16.msra.mxu0 0
      %610 = vmatprep.subr.bf16.mxu0 0
      %611 = vmatpush1.bf16.msra.mxu0 0
      %612 = vmatprep.subr.bf16.mxu0 0
      %613 = vmatpush1.bf16.msra.mxu0 0
      %614 = vmatprep.subr.bf16.mxu0 0
      %615 = vmatpush1.bf16.msra.mxu0 0
      %616 = vmatprep.subr.bf16.mxu0 0
      %617 = vmatpush1.bf16.msra.mxu0 0
      %618 = vmatprep.mubr.bf16.mxu0 0
      %619 = vmatmul.mubr.bf16.gmra.mrb[0].mxu0 %v526
      %v620 = vpop.f32.mrb[0].mxu0
      %v621 = vadd.f32 0.0, %v620
      %v622 = vpop.f32.mrb[0].mxu0
      %v623 = vpop.f32.mrb[0].mxu0
      %v624 = vadd.f32 0.0, %v623
      %v625 = vpop.f32.mrb[0].mxu0
      %626 = vmatprep.mubr.bf16.mxu0 0
      %627 = vmatmul.mubr.bf16.gmra.mrb[0].mxu0 %v529
      %v628 = vpop.f32.mrb[0].mxu0
      %v629 = vadd.f32 0.0, %v628
      %v630 = vpop.f32.mrb[0].mxu0
      %v631 = vpop.f32.mrb[0].mxu0
      %v632 = vadd.f32 0.0, %v631
      %v633 = vpop.f32.mrb[0].mxu0
      %634 = vmatprep.mubr.bf16.mxu0 0
      %635 = vmatmul.mubr.bf16.gmra.mrb[0].mxu0 %v532
      %v636 = vpop.f32.mrb[0].mxu0
      %v637 = vadd.f32 0.0, %v636
      %v638 = vpop.f32.mrb[0].mxu0
      %v639 = vpop.f32.mrb[0].mxu0
      %v640 = vadd.f32 0.0, %v639
      %v641 = vpop.f32.mrb[0].mxu0
      %642 = vmatprep.mubr.bf16.mxu0 0
      %643 = vmatmul.mubr.bf16.gmra.mrb[0].mxu0 %v535
      %v644 = vpop.f32.mrb[0].mxu0
      %v645 = vadd.f32 0.0, %v644
      %v646 = vpop.f32.mrb[0].mxu0
      %v647 = vpop.f32.mrb[0].mxu0
      %v648 = vadd.f32 0.0, %v647
      %v649 = vpop.f32.mrb[0].mxu0
      %650 = vmatprep.mubr.bf16.mxu0 0
      %651 = vmatmul.mubr.bf16.gmra.mrb[0].mxu0 %v538
      %v652 = vpop.f32.mrb[0].mxu0
      %v653 = vadd.f32 0.0, %v652
      %v654 = vpop.f32.mrb[0].mxu0
      %v655 = vpop.f32.mrb[0].mxu0
      %v656 = vadd.f32 0.0, %v655
      %v657 = vpop.f32.mrb[0].mxu0
      %658 = vmatprep.mubr.bf16.mxu0 0
      %659 = vmatmul.mubr.bf16.gmra.mrb[0].mxu0 %v541
      %v660 = vpop.f32.mrb[0].mxu0
      %v661 = vadd.f32 0.0, %v660
      %v662 = vpop.f32.mrb[0].mxu0
      %v663 = vpop.f32.mrb[0].mxu0
      %v664 = vadd.f32 0.0, %v663
      %v665 = vpop.f32.mrb[0].mxu0
      %666 = vmatprep.mubr.bf16.mxu0 0
      %667 = vmatmul.mubr.bf16.gmra.mrb[0].mxu0 %v544
      %v668 = vpop.f32.mrb[0].mxu0
      %v669 = vadd.f32 0.0, %v668
      %v670 = vpop.f32.mrb[0].mxu0
      %v671 = vpop.f32.mrb[0].mxu0
      %v672 = vadd.f32 0.0, %v671
      %v673 = vpop.f32.mrb[0].mxu0
      %674 = vmatprep.mubr.bf16.mxu0 0
      %675 = vmatmul.mubr.bf16.gmra.mrb[0].mxu0 %v547
      %v676 = vpop.f32.mrb[0].mxu0
      %v677 = vadd.f32 0.0, %v676
      %v678 = vpop.f32.mrb[0].mxu0
      %v679 = vpop.f32.mrb[0].mxu0
      %v680 = vadd.f32 0.0, %v679
      %v681 = vpop.f32.mrb[0].mxu0
      %682 = vmatprep.mubr.bf16.mxu0 0
      %683 = vmatmul.mubr.bf16.gmra.mrb[0].mxu0 %v550
      %v684 = vpop.f32.mrb[0].mxu0
      %v685 = vadd.f32 0.0, %v684
      %v686 = vpop.f32.mrb[0].mxu0
      %v687 = vpop.f32.mrb[0].mxu0
      %v688 = vadd.f32 0.0, %v687
      %v689 = vpop.f32.mrb[0].mxu0
      %690 = vmatprep.mubr.bf16.mxu0 0
      %691 = vmatmul.mubr.bf16.gmra.mrb[0].mxu0 %v553
      %v692 = vpop.f32.mrb[0].mxu0
      %v693 = vadd.f32 0.0, %v692
      %v694 = vpop.f32.mrb[0].mxu0
      %v695 = vpop.f32.mrb[0].mxu0
      %v696 = vadd.f32 0.0, %v695
      %v697 = vpop.f32.mrb[0].mxu0
      %698 = vmatprep.mubr.bf16.mxu0 0
      %699 = vmatmul.mubr.bf16.gmra.mrb[0].mxu0 %v556
      %v700 = vpop.f32.mrb[0].mxu0
      %v701 = vadd.f32 0.0, %v700
      %v702 = vpop.f32.mrb[0].mxu0
      %v703 = vpop.f32.mrb[0].mxu0
      %v704 = vadd.f32 0.0, %v703
      %v705 = vpop.f32.mrb[0].mxu0
      %706 = vmatprep.mubr.bf16.mxu0 0
      %707 = vmatmul.mubr.bf16.gmra.mrb[0].mxu0 %v559
      %v708 = vpop.f32.mrb[0].mxu0
      %v709 = vadd.f32 0.0, %v708
      %v710 = vpop.f32.mrb[0].mxu0
      %v711 = vpop.f32.mrb[0].mxu0
      %v712 = vadd.f32 0.0, %v711
      %v713 = vpop.f32.mrb[0].mxu0
      %714 = vmatprep.mubr.bf16.mxu0 0
      %715 = vmatmul.mubr.bf16.gmra.mrb[0].mxu0 %v562
      %v716 = vpop.f32.mrb[0].mxu0
      %v717 = vadd.f32 0.0, %v716
      %v718 = vpop.f32.mrb[0].mxu0
      %v719 = vpop.f32.mrb[0].mxu0
      %v720 = vadd.f32 0.0, %v719
      %v721 = vpop.f32.mrb[0].mxu0
      %722 = vmatprep.mubr.bf16.mxu0 0
      %723 = vmatmul.mubr.bf16.gmra.mrb[0].mxu0 %v565
      %v724 = vpop.f32.mrb[0].mxu0
      %v725 = vadd.f32 0.0, %v724
      %v726 = vpop.f32.mrb[0].mxu0
      %v727 = vpop.f32.mrb[0].mxu0
      %v728 = vadd.f32 0.0, %v727
      %v729 = vpop.f32.mrb[0].mxu0
      %730 = vmatprep.mubr.bf16.mxu0 0
      %731 = vmatmul.mubr.bf16.gmra.mrb[0].mxu0 %v568
      %v732 = vpop.f32.mrb[0].mxu0
      %v733 = vadd.f32 0.0, %v732
      %v734 = vpop.f32.mrb[0].mxu0
      %v735 = vpop.f32.mrb[0].mxu0
      %v736 = vadd.f32 0.0, %v735
      %v737 = vpop.f32.mrb[0].mxu0
      %738 = vmatprep.mubr.bf16.mxu0 0
      %739 = vmatmul.mubr.bf16.gmra.mrb[0].mxu0 %v571
      %v740 = vpop.f32.mrb[0].mxu0
      %v741 = vadd.f32 0.0, %v740
      %v742 = vpop.f32.mrb[0].mxu0
      %v743 = vpop.f32.mrb[0].mxu0
      %v744 = vadd.f32 0.0, %v743
      %v745 = vpop.f32.mrb[0].mxu0
      %746 = vmatprep.mubr.bf16.mxu0 0
      %747 = vmatmul.mubr.bf16.gmra.mrb[0].mxu0 %v574
      %v748 = vpop.f32.mrb[0].mxu0
      %v749 = vadd.f32 0.0, %v748
      %v750 = vpop.f32.mrb[0].mxu0
      %v751 = vpop.f32.mrb[0].mxu0
      %v752 = vadd.f32 0.0, %v751
      %v753 = vpop.f32.mrb[0].mxu0
      %754 = vmatprep.mubr.bf16.mxu0 0
      %755 = vmatmul.mubr.bf16.gmra.mrb[0].mxu0 %v577
      %v756 = vpop.f32.mrb[0].mxu0
      %v757 = vadd.f32 0.0, %v756
      %v758 = vpop.f32.mrb[0].mxu0
      %v759 = vpop.f32.mrb[0].mxu0
      %v760 = vadd.f32 0.0, %v759
      %v761 = vpop.f32.mrb[0].mxu0
      %762 = vdwg.mxu0
      %v764 = vunpack.c.l.b16 %v285
      %v765 = vpack.c.b16 %v764, %v360
      %v766 = vsel %vm524, %v362, 0
      %v768 = vsel %vm524, %v363, 0
      %v770 = vsel %vm524, %v364, 0
      %v772 = vsel %vm524, %v365, 0
      %v774 = vsel %vm524, %v366, 0
      %v776 = vsel %vm524, %v367, 0
      %v778 = vsel %vm524, %v368, 0
      %v780 = vsel %vm524, %v369, 0
      %v782 = vsel %vm524, %v370, 0
      %v784 = vsel %vm524, %v371, 0
      %v786 = vsel %vm524, %v372, 0
      %v788 = vsel %vm524, %v373, 0
      %v790 = vsel %vm524, %v374, 0
      %v792 = vsel %vm524, %v375, 0
      %v794 = vsel %vm524, %v376, 0
      %v796 = vsel %vm524, %v377, 0
      %v798 = vsel %vm524, %v378, 0
      %v801 = vsel %vm524, %v765, 0
      %v804 = vand.u32 %v286, %v582
      %806 = vmatprep.subr.bf16.mxu0 0
      %807 = vmatpush1.bf16.msra.mxu0 %v804
      %808 = vmatprep.subr.bf16.mxu0 0
      %809 = vmatpush1.bf16.msra.mxu0 0
      %810 = vmatprep.subr.bf16.mxu0 0
      %811 = vmatpush1.bf16.msra.mxu0 0
      %812 = vmatprep.subr.bf16.mxu0 0
      %813 = vmatpush1.bf16.msra.mxu0 0
      %814 = vmatprep.subr.bf16.mxu0 0
      %815 = vmatpush1.bf16.msra.mxu0 0
      %816 = vmatprep.subr.bf16.mxu0 0
      %817 = vmatpush1.bf16.msra.mxu0 0
      %818 = vmatprep.subr.bf16.mxu0 0
      %819 = vmatpush1.bf16.msra.mxu0 0
      %820 = vmatprep.subr.bf16.mxu0 0
      %821 = vmatpush1.bf16.msra.mxu0 0
      %822 = vmatprep.subr.bf16.mxu0 0
      %823 = vmatpush1.bf16.msra.mxu0 0
      %824 = vmatprep.subr.bf16.mxu0 0
      %825 = vmatpush1.bf16.msra.mxu0 0
      %826 = vmatprep.subr.bf16.mxu0 0
      %827 = vmatpush1.bf16.msra.mxu0 0
      %828 = vmatprep.subr.bf16.mxu0 0
      %829 = vmatpush1.bf16.msra.mxu0 0
      %830 = vmatprep.subr.bf16.mxu0 0
      %831 = vmatpush1.bf16.msra.mxu0 0
      %832 = vmatprep.subr.bf16.mxu0 0
      %833 = vmatpush1.bf16.msra.mxu0 0
      %834 = vmatprep.subr.bf16.mxu0 0
      %835 = vmatpush1.bf16.msra.mxu0 0
      %836 = vmatprep.subr.bf16.mxu0 0
      %837 = vmatpush1.bf16.msra.mxu0 0
      %838 = vmatprep.mubr.bf16.mxu0 0
      %839 = vmatmul.mubr.bf16.gmra.mrb[0].mxu0 %v766
      %v840 = vpop.f32.mrb[0].mxu0
      %v841 = vadd.f32 %v621, %v840
      %v842 = vpop.f32.mrb[0].mxu0
      %v843 = vpop.f32.mrb[0].mxu0
      %v844 = vadd.f32 %v624, %v843
      %v845 = vpop.f32.mrb[0].mxu0
      %846 = vmatprep.mubr.bf16.mxu0 0
      %847 = vmatmul.mubr.bf16.gmra.mrb[0].mxu0 %v768
      %v848 = vpop.f32.mrb[0].mxu0
      %v849 = vadd.f32 %v629, %v848
      %v850 = vpop.f32.mrb[0].mxu0
      %v851 = vpop.f32.mrb[0].mxu0
      %v852 = vadd.f32 %v632, %v851
      %v853 = vpop.f32.mrb[0].mxu0
      %854 = vmatprep.mubr.bf16.mxu0 0
      %855 = vmatmul.mubr.bf16.gmra.mrb[0].mxu0 %v770
      %v856 = vpop.f32.mrb[0].mxu0
      %v857 = vadd.f32 %v637, %v856
      %v858 = vpop.f32.mrb[0].mxu0
      %v859 = vpop.f32.mrb[0].mxu0
      %v860 = vadd.f32 %v640, %v859
      %v861 = vpop.f32.mrb[0].mxu0
      %862 = vmatprep.mubr.bf16.mxu0 0
      %863 = vmatmul.mubr.bf16.gmra.mrb[0].mxu0 %v772
      %v864 = vpop.f32.mrb[0].mxu0
      %v865 = vadd.f32 %v645, %v864
      %v866 = vpop.f32.mrb[0].mxu0
      %v867 = vpop.f32.mrb[0].mxu0
      %v868 = vadd.f32 %v648, %v867
      %v869 = vpop.f32.mrb[0].mxu0
      %870 = vmatprep.mubr.bf16.mxu0 0
      %871 = vmatmul.mubr.bf16.gmra.mrb[0].mxu0 %v774
      %v872 = vpop.f32.mrb[0].mxu0
      %v873 = vadd.f32 %v653, %v872
      %v874 = vpop.f32.mrb[0].mxu0
      %v875 = vpop.f32.mrb[0].mxu0
      %v876 = vadd.f32 %v656, %v875
      %v877 = vpop.f32.mrb[0].mxu0
      %878 = vmatprep.mubr.bf16.mxu0 0
      %879 = vmatmul.mubr.bf16.gmra.mrb[0].mxu0 %v776
      %v880 = vpop.f32.mrb[0].mxu0
      %v881 = vadd.f32 %v661, %v880
      %v882 = vpop.f32.mrb[0].mxu0
      %v883 = vpop.f32.mrb[0].mxu0
      %v884 = vadd.f32 %v664, %v883
      %v885 = vpop.f32.mrb[0].mxu0
      %886 = vmatprep.mubr.bf16.mxu0 0
      %887 = vmatmul.mubr.bf16.gmra.mrb[0].mxu0 %v778
      %v888 = vpop.f32.mrb[0].mxu0
      %v889 = vadd.f32 %v669, %v888
      %v890 = vpop.f32.mrb[0].mxu0
      %v891 = vpop.f32.mrb[0].mxu0
      %v892 = vadd.f32 %v672, %v891
      %v893 = vpop.f32.mrb[0].mxu0
      %894 = vmatprep.mubr.bf16.mxu0 0
      %895 = vmatmul.mubr.bf16.gmra.mrb[0].mxu0 %v780
      %v896 = vpop.f32.mrb[0].mxu0
      %v897 = vadd.f32 %v677, %v896
      %v898 = vpop.f32.mrb[0].mxu0
      %v899 = vpop.f32.mrb[0].mxu0
      %v900 = vadd.f32 %v680, %v899
      %v901 = vpop.f32.mrb[0].mxu0
      %902 = vmatprep.mubr.bf16.mxu0 0
      %903 = vmatmul.mubr.bf16.gmra.mrb[0].mxu0 %v782
      %v904 = vpop.f32.mrb[0].mxu0
      %v905 = vadd.f32 %v685, %v904
      %v906 = vpop.f32.mrb[0].mxu0
      %v907 = vpop.f32.mrb[0].mxu0
      %v908 = vadd.f32 %v688, %v907
      %v909 = vpop.f32.mrb[0].mxu0
      %910 = vmatprep.mubr.bf16.mxu0 0
      %911 = vmatmul.mubr.bf16.gmra.mrb[0].mxu0 %v784
      %v912 = vpop.f32.mrb[0].mxu0
      %v913 = vadd.f32 %v693, %v912
      %v914 = vpop.f32.mrb[0].mxu0
      %v915 = vpop.f32.mrb[0].mxu0
      %v916 = vadd.f32 %v696, %v915
      %v917 = vpop.f32.mrb[0].mxu0
      %918 = vmatprep.mubr.bf16.mxu0 0
      %919 = vmatmul.mubr.bf16.gmra.mrb[0].mxu0 %v786
      %v920 = vpop.f32.mrb[0].mxu0
      %v921 = vadd.f32 %v701, %v920
      %v922 = vpop.f32.mrb[0].mxu0
      %v923 = vpop.f32.mrb[0].mxu0
      %v924 = vadd.f32 %v704, %v923
      %v925 = vpop.f32.mrb[0].mxu0
      %926 = vmatprep.mubr.bf16.mxu0 0
      %927 = vmatmul.mubr.bf16.gmra.mrb[0].mxu0 %v788
      %v928 = vpop.f32.mrb[0].mxu0
      %v929 = vadd.f32 %v709, %v928
      %v930 = vpop.f32.mrb[0].mxu0
      %v931 = vpop.f32.mrb[0].mxu0
      %v932 = vadd.f32 %v712, %v931
      %v933 = vpop.f32.mrb[0].mxu0
      %934 = vmatprep.mubr.bf16.mxu0 0
      %935 = vmatmul.mubr.bf16.gmra.mrb[0].mxu0 %v790
      %v936 = vpop.f32.mrb[0].mxu0
      %v937 = vadd.f32 %v717, %v936
      %v938 = vpop.f32.mrb[0].mxu0
      %v939 = vpop.f32.mrb[0].mxu0
      %v940 = vadd.f32 %v720, %v939
      %v941 = vpop.f32.mrb[0].mxu0
      %942 = vmatprep.mubr.bf16.mxu0 0
      %943 = vmatmul.mubr.bf16.gmra.mrb[0].mxu0 %v792
      %v944 = vpop.f32.mrb[0].mxu0
      %v945 = vadd.f32 %v725, %v944
      %v946 = vpop.f32.mrb[0].mxu0
      %v947 = vpop.f32.mrb[0].mxu0
      %v948 = vadd.f32 %v728, %v947
      %v949 = vpop.f32.mrb[0].mxu0
      %950 = vmatprep.mubr.bf16.mxu0 0
      %951 = vmatmul.mubr.bf16.gmra.mrb[0].mxu0 %v794
      %v952 = vpop.f32.mrb[0].mxu0
      %v953 = vadd.f32 %v733, %v952
      %v954 = vpop.f32.mrb[0].mxu0
      %v955 = vpop.f32.mrb[0].mxu0
      %v956 = vadd.f32 %v736, %v955
      %v957 = vpop.f32.mrb[0].mxu0
      %958 = vmatprep.mubr.bf16.mxu0 0
      %959 = vmatmul.mubr.bf16.gmra.mrb[0].mxu0 %v796
      %v960 = vpop.f32.mrb[0].mxu0
      %v961 = vadd.f32 %v741, %v960
      %v962 = vpop.f32.mrb[0].mxu0
      %v963 = vpop.f32.mrb[0].mxu0
      %v964 = vadd.f32 %v744, %v963
      %v965 = vpop.f32.mrb[0].mxu0
      %966 = vmatprep.mubr.bf16.mxu0 0
      %967 = vmatmul.mubr.bf16.gmra.mrb[0].mxu0 %v798
      %v968 = vpop.f32.mrb[0].mxu0
      %v969 = vadd.f32 %v749, %v968
      %v970 = vpop.f32.mrb[0].mxu0
      %v971 = vpop.f32.mrb[0].mxu0
      %v972 = vadd.f32 %v752, %v971
      %v973 = vpop.f32.mrb[0].mxu0
      %974 = vmatprep.mubr.bf16.mxu0 0
      %975 = vmatmul.mubr.bf16.gmra.mrb[0].mxu0 %v801
      %v976 = vpop.f32.mrb[0].mxu0
      %v977 = vadd.f32 %v757, %v976
      %v978 = vpop.f32.mrb[0].mxu0
      %v979 = vpop.f32.mrb[0].mxu0
      %v980 = vadd.f32 %v760, %v979
      %v981 = vpop.f32.mrb[0].mxu0
      %982 = vdwg.mxu0
      %v983 = vld [vmem:[%s233] sm:$0xe]
      %s984 = scalar_lea.vmem %s237, 4
      %v985 = vld [vmem:[%s984] sm:$0x3]
      %v987 = vunpack.c.l.b16 %v983
      %v988 = vpack.c.b16 %v327, %v987
      %vm989 = vcmask 1046528
      %v990 = vrot.slane %v988, 1
      %v991 = vrot.slane %v363, 1
      %v992 = vsel %vm989, %v990, %v991
      %v993 = vrot.slane %v364, 1
      %v994 = vsel %vm989, %v991, %v993
      %v995 = vrot.slane %v365, 1
      %v996 = vsel %vm989, %v993, %v995
      %v997 = vrot.slane %v366, 1
      %v998 = vsel %vm989, %v995, %v997
      %v999 = vrot.slane %v367, 1
      %v1000 = vsel %vm989, %v997, %v999
      %v1001 = vrot.slane %v368, 1
      %v1002 = vsel %vm989, %v999, %v1001
      %v1003 = vrot.slane %v369, 1
      %v1004 = vsel %vm989, %v1001, %v1003
      %v1005 = vrot.slane %v370, 1
      %v1006 = vsel %vm989, %v1003, %v1005
      %v1007 = vrot.slane %v371, 1
      %v1008 = vsel %vm989, %v1005, %v1007
      %v1009 = vrot.slane %v372, 1
      %v1010 = vsel %vm989, %v1007, %v1009
      %v1011 = vrot.slane %v373, 1
      %v1012 = vsel %vm989, %v1009, %v1011
      %v1013 = vrot.slane %v374, 1
      %v1014 = vsel %vm989, %v1011, %v1013
      %v1015 = vrot.slane %v375, 1
      %v1016 = vsel %vm989, %v1013, %v1015
      %v1017 = vrot.slane %v376, 1
      %v1018 = vsel %vm989, %v1015, %v1017
      %v1019 = vrot.slane %v377, 1
      %v1020 = vsel %vm989, %v1017, %v1019
      %v1021 = vrot.slane %v378, 1
      %v1022 = vsel %vm989, %v1019, %v1021
      %v1023 = vrot.slane %v379, 1
      %v1024 = vsel %vm989, %v1021, %v1023
      %v1026 = vsel %vm524, %v992, 0
      %v1029 = vsel %vm524, %v994, 0
      %v1032 = vsel %vm524, %v996, 0
      %v1035 = vsel %vm524, %v998, 0
      %v1038 = vsel %vm524, %v1000, 0
      %v1041 = vsel %vm524, %v1002, 0
      %v1044 = vsel %vm524, %v1004, 0
      %v1047 = vsel %vm524, %v1006, 0
      %v1050 = vsel %vm524, %v1008, 0
      %v1053 = vsel %vm524, %v1010, 0
      %v1056 = vsel %vm524, %v1012, 0
      %v1059 = vsel %vm524, %v1014, 0
      %v1062 = vsel %vm524, %v1016, 0
      %v1065 = vsel %vm524, %v1018, 0
      %v1068 = vsel %vm524, %v1020, 0
      %v1071 = vsel %vm524, %v1022, 0
      %v1074 = vsel %vm524, %v1024, 0
      %v1077 = vsel %vm524, %v1023, 0
      %v1080 = vand.u32 %v985, %v582
      %1082 = vmatprep.subr.bf16.mxu0 0
      %1083 = vmatpush1.bf16.msra.mxu0 %v1080
      %1084 = vmatprep.subr.bf16.mxu0 0
      %1085 = vmatpush1.bf16.msra.mxu0 0
      %1086 = vmatprep.subr.bf16.mxu0 0
      %1087 = vmatpush1.bf16.msra.mxu0 0
      %1088 = vmatprep.subr.bf16.mxu0 0
      %1089 = vmatpush1.bf16.msra.mxu0 0
      %1090 = vmatprep.subr.bf16.mxu0 0
      %1091 = vmatpush1.bf16.msra.mxu0 0
      %1092 = vmatprep.subr.bf16.mxu0 0
      %1093 = vmatpush1.bf16.msra.mxu0 0
      %1094 = vmatprep.subr.bf16.mxu0 0
      %1095 = vmatpush1.bf16.msra.mxu0 0
      %1096 = vmatprep.subr.bf16.mxu0 0
      %1097 = vmatpush1.bf16.msra.mxu0 0
      %1098 = vmatprep.subr.bf16.mxu0 0
      %1099 = vmatpush1.bf16.msra.mxu0 0
      %1100 = vmatprep.subr.bf16.mxu0 0
      %1101 = vmatpush1.bf16.msra.mxu0 0
      %1102 = vmatprep.subr.bf16.mxu0 0
      %1103 = vmatpush1.bf16.msra.mxu0 0
      %1104 = vmatprep.subr.bf16.mxu0 0
      %1105 = vmatpush1.bf16.msra.mxu0 0
      %1106 = vmatprep.subr.bf16.mxu0 0
      %1107 = vmatpush1.bf16.msra.mxu0 0
      %1108 = vmatprep.subr.bf16.mxu0 0
      %1109 = vmatpush1.bf16.msra.mxu0 0
      %1110 = vmatprep.subr.bf16.mxu0 0
      %1111 = vmatpush1.bf16.msra.mxu0 0
      %1112 = vmatprep.subr.bf16.mxu0 0
      %1113 = vmatpush1.bf16.msra.mxu0 0
      %1114 = vmatprep.mubr.bf16.mxu0 0
      %1115 = vmatmul.mubr.bf16.gmra.mrb[0].mxu0 %v1026
      %v1116 = vpop.f32.mrb[0].mxu0
      %v1117 = vadd.f32 0.0, %v1116
      %v1118 = vpop.f32.mrb[0].mxu0
      %v1119 = vpop.f32.mrb[0].mxu0
      %v1120 = vadd.f32 0.0, %v1119
      %v1121 = vpop.f32.mrb[0].mxu0
      %1122 = vmatprep.mubr.bf16.mxu0 0
      %1123 = vmatmul.mubr.bf16.gmra.mrb[0].mxu0 %v1029
      %v1124 = vpop.f32.mrb[0].mxu0
      %v1125 = vadd.f32 0.0, %v1124
      %v1126 = vpop.f32.mrb[0].mxu0
      %v1127 = vpop.f32.mrb[0].mxu0
      %v1128 = vadd.f32 0.0, %v1127
      %v1129 = vpop.f32.mrb[0].mxu0
      %1130 = vmatprep.mubr.bf16.mxu0 0
      %1131 = vmatmul.mubr.bf16.gmra.mrb[0].mxu0 %v1032
      %v1132 = vpop.f32.mrb[0].mxu0
      %v1133 = vadd.f32 0.0, %v1132
      %v1134 = vpop.f32.mrb[0].mxu0
      %v1135 = vpop.f32.mrb[0].mxu0
      %v1136 = vadd.f32 0.0, %v1135
      %v1137 = vpop.f32.mrb[0].mxu0
      %1138 = vmatprep.mubr.bf16.mxu0 0
      %1139 = vmatmul.mubr.bf16.gmra.mrb[0].mxu0 %v1035
      %v1140 = vpop.f32.mrb[0].mxu0
      %v1141 = vadd.f32 0.0, %v1140
      %v1142 = vpop.f32.mrb[0].mxu0
      %v1143 = vpop.f32.mrb[0].mxu0
      %v1144 = vadd.f32 0.0, %v1143
      %v1145 = vpop.f32.mrb[0].mxu0
      %1146 = vmatprep.mubr.bf16.mxu0 0
      %1147 = vmatmul.mubr.bf16.gmra.mrb[0].mxu0 %v1038
      %v1148 = vpop.f32.mrb[0].mxu0
      %v1149 = vadd.f32 0.0, %v1148
      %v1150 = vpop.f32.mrb[0].mxu0
      %v1151 = vpop.f32.mrb[0].mxu0
      %v1152 = vadd.f32 0.0, %v1151
      %v1153 = vpop.f32.mrb[0].mxu0
      %1154 = vmatprep.mubr.bf16.mxu0 0
      %1155 = vmatmul.mubr.bf16.gmra.mrb[0].mxu0 %v1041
      %v1156 = vpop.f32.mrb[0].mxu0
      %v1157 = vadd.f32 0.0, %v1156
      %v1158 = vpop.f32.mrb[0].mxu0
      %v1159 = vpop.f32.mrb[0].mxu0
      %v1160 = vadd.f32 0.0, %v1159
      %v1161 = vpop.f32.mrb[0].mxu0
      %1162 = vmatprep.mubr.bf16.mxu0 0
      %1163 = vmatmul.mubr.bf16.gmra.mrb[0].mxu0 %v1044
      %v1164 = vpop.f32.mrb[0].mxu0
      %v1165 = vadd.f32 0.0, %v1164
      %v1166 = vpop.f32.mrb[0].mxu0
      %v1167 = vpop.f32.mrb[0].mxu0
      %v1168 = vadd.f32 0.0, %v1167
      %v1169 = vpop.f32.mrb[0].mxu0
      %1170 = vmatprep.mubr.bf16.mxu0 0
      %1171 = vmatmul.mubr.bf16.gmra.mrb[0].mxu0 %v1047
      %v1172 = vpop.f32.mrb[0].mxu0
      %v1173 = vadd.f32 0.0, %v1172
      %v1174 = vpop.f32.mrb[0].mxu0
      %v1175 = vpop.f32.mrb[0].mxu0
      %v1176 = vadd.f32 0.0, %v1175
      %v1177 = vpop.f32.mrb[0].mxu0
      %1178 = vmatprep.mubr.bf16.mxu0 0
      %1179 = vmatmul.mubr.bf16.gmra.mrb[0].mxu0 %v1050
      %v1180 = vpop.f32.mrb[0].mxu0
      %v1181 = vadd.f32 0.0, %v1180
      %v1182 = vpop.f32.mrb[0].mxu0
      %v1183 = vpop.f32.mrb[0].mxu0
      %v1184 = vadd.f32 0.0, %v1183
      %v1185 = vpop.f32.mrb[0].mxu0
      %1186 = vmatprep.mubr.bf16.mxu0 0
      %1187 = vmatmul.mubr.bf16.gmra.mrb[0].mxu0 %v1053
      %v1188 = vpop.f32.mrb[0].mxu0
      %v1189 = vadd.f32 0.0, %v1188
      %v1190 = vpop.f32.mrb[0].mxu0
      %v1191 = vpop.f32.mrb[0].mxu0
      %v1192 = vadd.f32 0.0, %v1191
      %v1193 = vpop.f32.mrb[0].mxu0
      %1194 = vmatprep.mubr.bf16.mxu0 0
      %1195 = vmatmul.mubr.bf16.gmra.mrb[0].mxu0 %v1056
      %v1196 = vpop.f32.mrb[0].mxu0
      %v1197 = vadd.f32 0.0, %v1196
      %v1198 = vpop.f32.mrb[0].mxu0
      %v1199 = vpop.f32.mrb[0].mxu0
      %v1200 = vadd.f32 0.0, %v1199
      %v1201 = vpop.f32.mrb[0].mxu0
      %1202 = vmatprep.mubr.bf16.mxu0 0
      %1203 = vmatmul.mubr.bf16.gmra.mrb[0].mxu0 %v1059
      %v1204 = vpop.f32.mrb[0].mxu0
      %v1205 = vadd.f32 0.0, %v1204
      %v1206 = vpop.f32.mrb[0].mxu0
      %v1207 = vpop.f32.mrb[0].mxu0
      %v1208 = vadd.f32 0.0, %v1207
      %v1209 = vpop.f32.mrb[0].mxu0
      %1210 = vmatprep.mubr.bf16.mxu0 0
      %1211 = vmatmul.mubr.bf16.gmra.mrb[0].mxu0 %v1062
      %v1212 = vpop.f32.mrb[0].mxu0
      %v1213 = vadd.f32 0.0, %v1212
      %v1214 = vpop.f32.mrb[0].mxu0
      %v1215 = vpop.f32.mrb[0].mxu0
      %v1216 = vadd.f32 0.0, %v1215
      %v1217 = vpop.f32.mrb[0].mxu0
      %1218 = vmatprep.mubr.bf16.mxu0 0
      %1219 = vmatmul.mubr.bf16.gmra.mrb[0].mxu0 %v1065
      %v1220 = vpop.f32.mrb[0].mxu0
      %v1221 = vadd.f32 0.0, %v1220
      %v1222 = vpop.f32.mrb[0].mxu0
      %v1223 = vpop.f32.mrb[0].mxu0
      %v1224 = vadd.f32 0.0, %v1223
      %v1225 = vpop.f32.mrb[0].mxu0
      %1226 = vmatprep.mubr.bf16.mxu0 0
      %1227 = vmatmul.mubr.bf16.gmra.mrb[0].mxu0 %v1068
      %v1228 = vpop.f32.mrb[0].mxu0
      %v1229 = vadd.f32 0.0, %v1228
      %v1230 = vpop.f32.mrb[0].mxu0
      %v1231 = vpop.f32.mrb[0].mxu0
      %v1232 = vadd.f32 0.0, %v1231
      %v1233 = vpop.f32.mrb[0].mxu0
      %1234 = vmatprep.mubr.bf16.mxu0 0
      %1235 = vmatmul.mubr.bf16.gmra.mrb[0].mxu0 %v1071
      %v1236 = vpop.f32.mrb[0].mxu0
      %v1237 = vadd.f32 0.0, %v1236
      %v1238 = vpop.f32.mrb[0].mxu0
      %v1239 = vpop.f32.mrb[0].mxu0
      %v1240 = vadd.f32 0.0, %v1239
      %v1241 = vpop.f32.mrb[0].mxu0
      %1242 = vmatprep.mubr.bf16.mxu0 0
      %1243 = vmatmul.mubr.bf16.gmra.mrb[0].mxu0 %v1074
      %v1244 = vpop.f32.mrb[0].mxu0
      %v1245 = vadd.f32 0.0, %v1244
      %v1246 = vpop.f32.mrb[0].mxu0
      %v1247 = vpop.f32.mrb[0].mxu0
      %v1248 = vadd.f32 0.0, %v1247
      %v1249 = vpop.f32.mrb[0].mxu0
      %1250 = vmatprep.mubr.bf16.mxu0 0
      %1251 = vmatmul.mubr.bf16.gmra.mrb[0].mxu0 %v1077
      %v1252 = vpop.f32.mrb[0].mxu0
      %v1253 = vadd.f32 0.0, %v1252
      %v1254 = vpop.f32.mrb[0].mxu0
      %v1255 = vpop.f32.mrb[0].mxu0
      %v1256 = vadd.f32 0.0, %v1255
      %v1257 = vpop.f32.mrb[0].mxu0
      %1258 = vdwg.mxu0
      %v1259 = vadd.f32 %v841, %v1117
      %v1260 = vadd.f32 %v844, %v1120
      %v1261 = vadd.f32 %v849, %v1125
      %v1262 = vadd.f32 %v852, %v1128
      %v1263 = vadd.f32 %v857, %v1133
      %v1264 = vadd.f32 %v860, %v1136
      %v1265 = vadd.f32 %v865, %v1141
      %v1266 = vadd.f32 %v868, %v1144
      %v1267 = vadd.f32 %v873, %v1149
      %v1268 = vadd.f32 %v876, %v1152
      %v1269 = vadd.f32 %v881, %v1157
      %v1270 = vadd.f32 %v884, %v1160
      %v1271 = vadd.f32 %v889, %v1165
      %v1272 = vadd.f32 %v892, %v1168
      %v1273 = vadd.f32 %v897, %v1173
      %v1274 = vadd.f32 %v900, %v1176
      %v1275 = vadd.f32 %v905, %v1181
      %v1276 = vadd.f32 %v908, %v1184
      %v1277 = vadd.f32 %v913, %v1189
      %v1278 = vadd.f32 %v916, %v1192
      %v1279 = vadd.f32 %v921, %v1197
      %v1280 = vadd.f32 %v924, %v1200
      %v1281 = vadd.f32 %v929, %v1205
      %v1282 = vadd.f32 %v932, %v1208
      %v1283 = vadd.f32 %v937, %v1213
      %v1284 = vadd.f32 %v940, %v1216
      %v1285 = vadd.f32 %v945, %v1221
      %v1286 = vadd.f32 %v948, %v1224
      %v1287 = vadd.f32 %v953, %v1229
      %v1288 = vadd.f32 %v956, %v1232
      %v1289 = vadd.f32 %v961, %v1237
      %v1290 = vadd.f32 %v964, %v1240
      %v1291 = vadd.f32 %v969, %v1245
      %v1292 = vadd.f32 %v972, %v1248
      %v1293 = vadd.f32 %v977, %v1253
      %v1294 = vadd.f32 %v980, %v1256
      %vm1295 = vcmask 523264
      %1296 = vst.msk [vmem:[#allocation2] sm:$0xff] %vm1295, %v1259
      %1297 = vst.msk [vmem:[#allocation2 + $0x8] sm:$0xff] %vm1295, %v1260
      %1298 = vst.msk [vmem:[#allocation2 + $0x10] sm:$0xff] %vm1295, %v1261
      %1299 = vst.msk [vmem:[#allocation2 + $0x18] sm:$0xff] %vm1295, %v1262
      %1300 = vst.msk [vmem:[#allocation2 + $0x20] sm:$0xff] %vm1295, %v1263
      %1301 = vst.msk [vmem:[#allocation2 + $0x28] sm:$0xff] %vm1295, %v1264
      %1302 = vst.msk [vmem:[#allocation2 + $0x30] sm:$0xff] %vm1295, %v1265
      %1303 = vst.msk [vmem:[#allocation2 + $0x38] sm:$0xff] %vm1295, %v1266
      %1304 = vst.msk [vmem:[#allocation2 + $0x40] sm:$0xff] %vm1295, %v1267
      %1305 = vst.msk [vmem:[#allocation2 + $0x48] sm:$0xff] %vm1295, %v1268
      %1306 = vst.msk [vmem:[#allocation2 + $0x50] sm:$0xff] %vm1295, %v1269
      %1307 = vst.msk [vmem:[#allocation2 + $0x58] sm:$0xff] %vm1295, %v1270
      %1308 = vst.msk [vmem:[#allocation2 + $0x60] sm:$0xff] %vm1295, %v1271
      %1309 = vst.msk [vmem:[#allocation2 + $0x68] sm:$0xff] %vm1295, %v1272
      %1310 = vst.msk [vmem:[#allocation2 + $0x70] sm:$0xff] %vm1295, %v1273
      %1311 = vst.msk [vmem:[#allocation2 + $0x78] sm:$0xff] %vm1295, %v1274
      %1312 = vst.msk [vmem:[#allocation2 + $0x80] sm:$0xff] %vm1295, %v1275
      %1313 = vst.msk [vmem:[#allocation2 + $0x88] sm:$0xff] %vm1295, %v1276
      %1314 = vst.msk [vmem:[#allocation2 + $0x90] sm:$0xff] %vm1295, %v1277
      %1315 = vst.msk [vmem:[#allocation2 + $0x98] sm:$0xff] %vm1295, %v1278
      %1316 = vst.msk [vmem:[#allocation2 + $0xa0] sm:$0xff] %vm1295, %v1279
      %1317 = vst.msk [vmem:[#allocation2 + $0xa8] sm:$0xff] %vm1295, %v1280
      %1318 = vst.msk [vmem:[#allocation2 + $0xb0] sm:$0xff] %vm1295, %v1281
      %1319 = vst.msk [vmem:[#allocation2 + $0xb8] sm:$0xff] %vm1295, %v1282
      %1320 = vst.msk [vmem:[#allocation2 + $0xc0] sm:$0xff] %vm1295, %v1283
      %1321 = vst.msk [vmem:[#allocation2 + $0xc8] sm:$0xff] %vm1295, %v1284
      %1322 = vst.msk [vmem:[#allocation2 + $0xd0] sm:$0xff] %vm1295, %v1285
      %1323 = vst.msk [vmem:[#allocation2 + $0xd8] sm:$0xff] %vm1295, %v1286
      %1324 = vst.msk [vmem:[#allocation2 + $0xe0] sm:$0xff] %vm1295, %v1287
      %1325 = vst.msk [vmem:[#allocation2 + $0xe8] sm:$0xff] %vm1295, %v1288
      %1326 = vst.msk [vmem:[#allocation2 + $0xf0] sm:$0xff] %vm1295, %v1289
      %1327 = vst.msk [vmem:[#allocation2 + $0xf8] sm:$0xff] %vm1295, %v1290
      %1328 = vst.msk [vmem:[#allocation2 + $0x100] sm:$0xff] %vm1295, %v1291
      %1329 = vst.msk [vmem:[#allocation2 + $0x108] sm:$0xff] %vm1295, %v1292
      %1330 = vst.msk [vmem:[#allocation2 + $0x110] sm:$0xff] %vm1295, %v1293
      %vm1331 = vcmask 521216
      %1332 = vst.msk [vmem:[#allocation2 + $0x118] sm:$0x3f] %vm1331, %v1294
      %v1333 = vld [vmem:[%s233 + $0x8] sm:$0xe]
      %v1334 = vld [vmem:[%s233 + $0xc] sm:$0xf]
      %v1335 = vld [vmem:[%s233 + $0x10] sm:$0xf]
      %v1336 = vld [vmem:[%s233 + $0x14] sm:$0xf]
      %v1337 = vld [vmem:[%s233 + $0x18] sm:$0xf]
      %v1338 = vld [vmem:[%s233 + $0x1c] sm:$0xf]
      %v1339 = vld [vmem:[%s233 + $0x20] sm:$0xf]
      %v1340 = vld [vmem:[%s233 + $0x24] sm:$0xf]
      %v1341 = vld [vmem:[%s233 + $0x28] sm:$0xf]
      %v1342 = vld [vmem:[%s233 + $0x2c] sm:$0xf]
      %v1343 = vld [vmem:[%s233 + $0x30] sm:$0xf]
      %v1344 = vld [vmem:[%s233 + $0x34] sm:$0xf]
      %v1345 = vld [vmem:[%s233 + $0x38] sm:$0xf]
      %v1346 = vld [vmem:[%s233 + $0x3c] sm:$0xf]
      %v1347 = vld [vmem:[%s233 + $0x40] sm:$0xf]
      %v1348 = vld [vmem:[%s233 + $0x44] sm:$0xf]
      %v1349 = vld [vmem:[%s233 + $0x48] sm:$0xf]
      %v1350 = vld [vmem:[%s233 + $0x4c] sm:$0xf]
      %v1351 = vld [vmem:[%s233 + $0x50] sm:$0xf]
      %v1352 = vld [vmem:[%s233 + $0x54] sm:$0xf]
      %v1353 = vld [vmem:[%s233 + $0x58] sm:$0xf]
      %v1354 = vld [vmem:[%s233 + $0x5c] sm:$0xf]
      %v1355 = vld [vmem:[%s233 + $0x60] sm:$0xf]
      %v1356 = vld [vmem:[%s233 + $0x64] sm:$0xf]
      %v1357 = vld [vmem:[%s233 + $0x68] sm:$0xf]
      %v1358 = vld [vmem:[%s233 + $0x6c] sm:$0xf]
      %v1359 = vld [vmem:[%s233 + $0x70] sm:$0xf]
      %v1360 = vld [vmem:[%s233 + $0x74] sm:$0xf]
      %v1361 = vld [vmem:[%s233 + $0x78] sm:$0xf]
      %v1362 = vld [vmem:[%s233 + $0x7c] sm:$0xf]
      %v1363 = vld [vmem:[%s233 + $0x80] sm:$0xf]
      %v1364 = vld [vmem:[%s233 + $0x84] sm:$0xf]
      %v1365 = vld [vmem:[%s233 + $0x88] sm:$0xf]
      %v1366 = vld [vmem:[%s233 + $0x8c] sm:$0xf]
      %v1367 = vld [vmem:[%s233 + $0x90] sm:$0xf]
      %v1368 = vld [vmem:[%s233 + $0x94] sm:$0xf]
      %s1369 = scalar_lea.vmem %s237, 6
      %v1370 = vld [vmem:[%s1369] sm:$0x3]
      %v1371 = vld [vmem:[%s233 + $0x98] sm:$0x1]
      %s1372 = scalar_lea.vmem %s237, 8
      %v1373 = vld [vmem:[%s1372] sm:$0x3]
      %v1411 = vunpack.c.l.b16 %v1333
      %v1412 = vunpack.c.l.b16 %v1334
      %v1413 = vunpack.c.l.b16 %v1335
      %v1414 = vunpack.c.l.b16 %v1336
      %v1415 = vunpack.c.l.b16 %v1337
      %v1416 = vunpack.c.l.b16 %v1338
      %v1417 = vunpack.c.l.b16 %v1339
      %v1418 = vunpack.c.l.b16 %v1340
      %v1419 = vunpack.c.l.b16 %v1341
      %v1420 = vunpack.c.l.b16 %v1342
      %v1421 = vunpack.c.l.b16 %v1343
      %v1422 = vunpack.c.l.b16 %v1344
      %v1423 = vunpack.c.l.b16 %v1345
      %v1424 = vunpack.c.l.b16 %v1346
      %v1425 = vunpack.c.l.b16 %v1347
      %v1426 = vunpack.c.l.b16 %v1348
      %v1427 = vunpack.c.l.b16 %v1349
      %v1428 = vunpack.c.l.b16 %v1350
      %v1429 = vunpack.c.l.b16 %v1351
      %v1430 = vunpack.c.l.b16 %v1352
      %v1431 = vunpack.c.l.b16 %v1353
      %v1432 = vunpack.c.l.b16 %v1354
      %v1433 = vunpack.c.l.b16 %v1355
      %v1434 = vunpack.c.l.b16 %v1356
      %v1435 = vunpack.c.l.b16 %v1357
      %v1436 = vunpack.c.l.b16 %v1358
      %v1437 = vunpack.c.l.b16 %v1359
      %v1438 = vunpack.c.l.b16 %v1360
      %v1439 = vunpack.c.l.b16 %v1361
      %v1440 = vunpack.c.l.b16 %v1362
      %v1441 = vunpack.c.l.b16 %v1363
      %v1442 = vunpack.c.l.b16 %v1364
      %v1443 = vunpack.c.l.b16 %v1365
      %v1444 = vunpack.c.l.b16 %v1366
      %v1445 = vunpack.c.l.b16 %v1367
      %v1446 = vunpack.c.l.b16 %v1368
      %v1447 = vunpack.c.l.b16 %v1371
      %v1448 = vpack.c.b16 %v1412, %v1411
      %v1449 = vpack.c.b16 %v1414, %v1413
      %v1450 = vpack.c.b16 %v1416, %v1415
      %v1451 = vpack.c.b16 %v1418, %v1417
      %v1452 = vpack.c.b16 %v1420, %v1419
      %v1453 = vpack.c.b16 %v1422, %v1421
      %v1454 = vpack.c.b16 %v1424, %v1423
      %v1455 = vpack.c.b16 %v1426, %v1425
      %v1456 = vpack.c.b16 %v1428, %v1427
      %v1457 = vpack.c.b16 %v1430, %v1429
      %v1458 = vpack.c.b16 %v1432, %v1431
      %v1459 = vpack.c.b16 %v1434, %v1433
      %v1460 = vpack.c.b16 %v1436, %v1435
      %v1461 = vpack.c.b16 %v1438, %v1437
      %v1462 = vpack.c.b16 %v1440, %v1439
      %v1463 = vpack.c.b16 %v1442, %v1441
      %v1464 = vpack.c.b16 %v1444, %v1443
      %v1465 = vpack.c.b16 %v1446, %v1445
      %v1466 = vpack.c.b16 %v1447, %v1447
      %vm1467 = vsmask.f32 6400
      %v1469 = vshrl.u32 %v1448, 16
      %v1471 = vrot.slane %v1469, 1
      %v1472 = vshll.u32 %v1448, 16
      %v1474 = vrot.slane %v1472, 2
      %v1475 = vor.u32 %v1471, %v1474
      %v1477 = vshrl.u32 %v1449, 16
      %v1479 = vrot.slane %v1477, 1
      %v1480 = vshll.u32 %v1449, 16
      %v1482 = vrot.slane %v1480, 2
      %v1483 = vor.u32 %v1479, %v1482
      %v1484 = vsel %vm1467, %v1475, %v1483
      %v1486 = vshrl.u32 %v1450, 16
      %v1488 = vrot.slane %v1486, 1
      %v1489 = vshll.u32 %v1450, 16
      %v1491 = vrot.slane %v1489, 2
      %v1492 = vor.u32 %v1488, %v1491
      %v1493 = vsel %vm1467, %v1483, %v1492
      %v1495 = vshrl.u32 %v1451, 16
      %v1497 = vrot.slane %v1495, 1
      %v1498 = vshll.u32 %v1451, 16
      %v1500 = vrot.slane %v1498, 2
      %v1501 = vor.u32 %v1497, %v1500
      %v1502 = vsel %vm1467, %v1492, %v1501
      %v1504 = vshrl.u32 %v1452, 16
      %v1506 = vrot.slane %v1504, 1
      %v1507 = vshll.u32 %v1452, 16
      %v1509 = vrot.slane %v1507, 2
      %v1510 = vor.u32 %v1506, %v1509
      %v1511 = vsel %vm1467, %v1501, %v1510
      %v1513 = vshrl.u32 %v1453, 16
      %v1515 = vrot.slane %v1513, 1
      %v1516 = vshll.u32 %v1453, 16
      %v1518 = vrot.slane %v1516, 2
      %v1519 = vor.u32 %v1515, %v1518
      %v1520 = vsel %vm1467, %v1510, %v1519
      %v1522 = vshrl.u32 %v1454, 16
      %v1524 = vrot.slane %v1522, 1
      %v1525 = vshll.u32 %v1454, 16
      %v1527 = vrot.slane %v1525, 2
      %v1528 = vor.u32 %v1524, %v1527
      %v1529 = vsel %vm1467, %v1519, %v1528
      %v1531 = vshrl.u32 %v1455, 16
      %v1533 = vrot.slane %v1531, 1
      %v1534 = vshll.u32 %v1455, 16
      %v1536 = vrot.slane %v1534, 2
      %v1537 = vor.u32 %v1533, %v1536
      %v1538 = vsel %vm1467, %v1528, %v1537
      %v1540 = vshrl.u32 %v1456, 16
      %v1542 = vrot.slane %v1540, 1
      %v1543 = vshll.u32 %v1456, 16
      %v1545 = vrot.slane %v1543, 2
      %v1546 = vor.u32 %v1542, %v1545
      %v1547 = vsel %vm1467, %v1537, %v1546
      %v1549 = vshrl.u32 %v1457, 16
      %v1551 = vrot.slane %v1549, 1
      %v1552 = vshll.u32 %v1457, 16
      %v1554 = vrot.slane %v1552, 2
      %v1555 = vor.u32 %v1551, %v1554
      %v1556 = vsel %vm1467, %v1546, %v1555
      %v1558 = vshrl.u32 %v1458, 16
      %v1560 = vrot.slane %v1558, 1
      %v1561 = vshll.u32 %v1458, 16
      %v1563 = vrot.slane %v1561, 2
      %v1564 = vor.u32 %v1560, %v1563
      %v1565 = vsel %vm1467, %v1555, %v1564
      %v1567 = vshrl.u32 %v1459, 16
      %v1569 = vrot.slane %v1567, 1
      %v1570 = vshll.u32 %v1459, 16
      %v1572 = vrot.slane %v1570, 2
      %v1573 = vor.u32 %v1569, %v1572
      %v1574 = vsel %vm1467, %v1564, %v1573
      %v1576 = vshrl.u32 %v1460, 16
      %v1578 = vrot.slane %v1576, 1
      %v1579 = vshll.u32 %v1460, 16
      %v1581 = vrot.slane %v1579, 2
      %v1582 = vor.u32 %v1578, %v1581
      %v1583 = vsel %vm1467, %v1573, %v1582
      %v1585 = vshrl.u32 %v1461, 16
      %v1587 = vrot.slane %v1585, 1
      %v1588 = vshll.u32 %v1461, 16
      %v1590 = vrot.slane %v1588, 2
      %v1591 = vor.u32 %v1587, %v1590
      %v1592 = vsel %vm1467, %v1582, %v1591
      %v1594 = vshrl.u32 %v1462, 16
      %v1596 = vrot.slane %v1594, 1
      %v1597 = vshll.u32 %v1462, 16
      %v1599 = vrot.slane %v1597, 2
      %v1600 = vor.u32 %v1596, %v1599
      %v1601 = vsel %vm1467, %v1591, %v1600
      %v1603 = vshrl.u32 %v1463, 16
      %v1605 = vrot.slane %v1603, 1
      %v1606 = vshll.u32 %v1463, 16
      %v1608 = vrot.slane %v1606, 2
      %v1609 = vor.u32 %v1605, %v1608
      %v1610 = vsel %vm1467, %v1600, %v1609
      %v1612 = vshrl.u32 %v1464, 16
      %v1614 = vrot.slane %v1612, 1
      %v1615 = vshll.u32 %v1464, 16
      %v1617 = vrot.slane %v1615, 2
      %v1618 = vor.u32 %v1614, %v1617
      %v1619 = vsel %vm1467, %v1609, %v1618
      %v1621 = vshrl.u32 %v1465, 16
      %v1623 = vrot.slane %v1621, 1
      %v1624 = vshll.u32 %v1465, 16
      %v1626 = vrot.slane %v1624, 2
      %v1627 = vor.u32 %v1623, %v1626
      %v1628 = vsel %vm1467, %v1618, %v1627
      %v1630 = vshll.u32 %v1466, 16
      %v1632 = vrot.slane %v1630, 2
      %v1633 = vsel %vm1467, %v1627, %v1632
      %v1635 = vsel %vm524, %v1484, 0
      %v1638 = vsel %vm524, %v1493, 0
      %v1641 = vsel %vm524, %v1502, 0
      %v1644 = vsel %vm524, %v1511, 0
      %v1647 = vsel %vm524, %v1520, 0
      %v1650 = vsel %vm524, %v1529, 0
      %v1653 = vsel %vm524, %v1538, 0
      %v1656 = vsel %vm524, %v1547, 0
      %v1659 = vsel %vm524, %v1556, 0
      %v1662 = vsel %vm524, %v1565, 0
      %v1665 = vsel %vm524, %v1574, 0
      %v1668 = vsel %vm524, %v1583, 0
      %v1671 = vsel %vm524, %v1592, 0
      %v1674 = vsel %vm524, %v1601, 0
      %v1677 = vsel %vm524, %v1610, 0
      %v1680 = vsel %vm524, %v1619, 0
      %v1683 = vsel %vm524, %v1628, 0
      %v1686 = vsel %vm524, %v1633, 0
      %v1689 = vand.u32 %v1373, %v582
      %1691 = vmatprep.subr.bf16.mxu0 0
      %1692 = vmatpush1.bf16.msra.mxu0 %v1689
      %1693 = vmatprep.subr.bf16.mxu0 0
      %1694 = vmatpush1.bf16.msra.mxu0 0
      %1695 = vmatprep.subr.bf16.mxu0 0
      %1696 = vmatpush1.bf16.msra.mxu0 0
      %1697 = vmatprep.subr.bf16.mxu0 0
      %1698 = vmatpush1.bf16.msra.mxu0 0
      %1699 = vmatprep.subr.bf16.mxu0 0
      %1700 = vmatpush1.bf16.msra.mxu0 0
      %1701 = vmatprep.subr.bf16.mxu0 0
      %1702 = vmatpush1.bf16.msra.mxu0 0
      %1703 = vmatprep.subr.bf16.mxu0 0
      %1704 = vmatpush1.bf16.msra.mxu0 0
      %1705 = vmatprep.subr.bf16.mxu0 0
      %1706 = vmatpush1.bf16.msra.mxu0 0
      %1707 = vmatprep.subr.bf16.mxu0 0
      %1708 = vmatpush1.bf16.msra.mxu0 0
      %1709 = vmatprep.subr.bf16.mxu0 0
      %1710 = vmatpush1.bf16.msra.mxu0 0
      %1711 = vmatprep.subr.bf16.mxu0 0
      %1712 = vmatpush1.bf16.msra.mxu0 0
      %1713 = vmatprep.subr.bf16.mxu0 0
      %1714 = vmatpush1.bf16.msra.mxu0 0
      %1715 = vmatprep.subr.bf16.mxu0 0
      %1716 = vmatpush1.bf16.msra.mxu0 0
      %1717 = vmatprep.subr.bf16.mxu0 0
      %1718 = vmatpush1.bf16.msra.mxu0 0
      %1719 = vmatprep.subr.bf16.mxu0 0
      %1720 = vmatpush1.bf16.msra.mxu0 0
      %1721 = vmatprep.subr.bf16.mxu0 0
      %1722 = vmatpush1.bf16.msra.mxu0 0
      %1723 = vmatprep.mubr.bf16.mxu0 0
      %1724 = vmatmul.mubr.bf16.gmra.mrb[0].mxu0 %v1635
      %v1725 = vpop.f32.mrb[0].mxu0
      %v1726 = vadd.f32 0.0, %v1725
      %v1727 = vpop.f32.mrb[0].mxu0
      %v1728 = vpop.f32.mrb[0].mxu0
      %v1729 = vadd.f32 0.0, %v1728
      %v1730 = vpop.f32.mrb[0].mxu0
      %1731 = vmatprep.mubr.bf16.mxu0 0
      %1732 = vmatmul.mubr.bf16.gmra.mrb[0].mxu0 %v1638
      %v1733 = vpop.f32.mrb[0].mxu0
      %v1734 = vadd.f32 0.0, %v1733
      %v1735 = vpop.f32.mrb[0].mxu0
      %v1736 = vpop.f32.mrb[0].mxu0
      %v1737 = vadd.f32 0.0, %v1736
      %v1738 = vpop.f32.mrb[0].mxu0
      %1739 = vmatprep.mubr.bf16.mxu0 0
      %1740 = vmatmul.mubr.bf16.gmra.mrb[0].mxu0 %v1641
      %v1741 = vpop.f32.mrb[0].mxu0
      %v1742 = vadd.f32 0.0, %v1741
      %v1743 = vpop.f32.mrb[0].mxu0
      %v1744 = vpop.f32.mrb[0].mxu0
      %v1745 = vadd.f32 0.0, %v1744
      %v1746 = vpop.f32.mrb[0].mxu0
      %1747 = vmatprep.mubr.bf16.mxu0 0
      %1748 = vmatmul.mubr.bf16.gmra.mrb[0].mxu0 %v1644
      %v1749 = vpop.f32.mrb[0].mxu0
      %v1750 = vadd.f32 0.0, %v1749
      %v1751 = vpop.f32.mrb[0].mxu0
      %v1752 = vpop.f32.mrb[0].mxu0
      %v1753 = vadd.f32 0.0, %v1752
      %v1754 = vpop.f32.mrb[0].mxu0
      %1755 = vmatprep.mubr.bf16.mxu0 0
      %1756 = vmatmul.mubr.bf16.gmra.mrb[0].mxu0 %v1647
      %v1757 = vpop.f32.mrb[0].mxu0
      %v1758 = vadd.f32 0.0, %v1757
      %v1759 = vpop.f32.mrb[0].mxu0
      %v1760 = vpop.f32.mrb[0].mxu0
      %v1761 = vadd.f32 0.0, %v1760
      %v1762 = vpop.f32.mrb[0].mxu0
      %1763 = vmatprep.mubr.bf16.mxu0 0
      %1764 = vmatmul.mubr.bf16.gmra.mrb[0].mxu0 %v1650
      %v1765 = vpop.f32.mrb[0].mxu0
      %v1766 = vadd.f32 0.0, %v1765
      %v1767 = vpop.f32.mrb[0].mxu0
      %v1768 = vpop.f32.mrb[0].mxu0
      %v1769 = vadd.f32 0.0, %v1768
      %v1770 = vpop.f32.mrb[0].mxu0
      %1771 = vmatprep.mubr.bf16.mxu0 0
      %1772 = vmatmul.mubr.bf16.gmra.mrb[0].mxu0 %v1653
      %v1773 = vpop.f32.mrb[0].mxu0
      %v1774 = vadd.f32 0.0, %v1773
      %v1775 = vpop.f32.mrb[0].mxu0
      %v1776 = vpop.f32.mrb[0].mxu0
      %v1777 = vadd.f32 0.0, %v1776
      %v1778 = vpop.f32.mrb[0].mxu0
      %1779 = vmatprep.mubr.bf16.mxu0 0
      %1780 = vmatmul.mubr.bf16.gmra.mrb[0].mxu0 %v1656
      %v1781 = vpop.f32.mrb[0].mxu0
      %v1782 = vadd.f32 0.0, %v1781
      %v1783 = vpop.f32.mrb[0].mxu0
      %v1784 = vpop.f32.mrb[0].mxu0
      %v1785 = vadd.f32 0.0, %v1784
      %v1786 = vpop.f32.mrb[0].mxu0
      %1787 = vmatprep.mubr.bf16.mxu0 0
      %1788 = vmatmul.mubr.bf16.gmra.mrb[0].mxu0 %v1659
      %v1789 = vpop.f32.mrb[0].mxu0
      %v1790 = vadd.f32 0.0, %v1789
      %v1791 = vpop.f32.mrb[0].mxu0
      %v1792 = vpop.f32.mrb[0].mxu0
      %v1793 = vadd.f32 0.0, %v1792
      %v1794 = vpop.f32.mrb[0].mxu0
      %1795 = vmatprep.mubr.bf16.mxu0 0
      %1796 = vmatmul.mubr.bf16.gmra.mrb[0].mxu0 %v1662
      %v1797 = vpop.f32.mrb[0].mxu0
      %v1798 = vadd.f32 0.0, %v1797
      %v1799 = vpop.f32.mrb[0].mxu0
      %v1800 = vpop.f32.mrb[0].mxu0
      %v1801 = vadd.f32 0.0, %v1800
      %v1802 = vpop.f32.mrb[0].mxu0
      %1803 = vmatprep.mubr.bf16.mxu0 0
      %1804 = vmatmul.mubr.bf16.gmra.mrb[0].mxu0 %v1665
      %v1805 = vpop.f32.mrb[0].mxu0
      %v1806 = vadd.f32 0.0, %v1805
      %v1807 = vpop.f32.mrb[0].mxu0
      %v1808 = vpop.f32.mrb[0].mxu0
      %v1809 = vadd.f32 0.0, %v1808
      %v1810 = vpop.f32.mrb[0].mxu0
      %1811 = vmatprep.mubr.bf16.mxu0 0
      %1812 = vmatmul.mubr.bf16.gmra.mrb[0].mxu0 %v1668
      %v1813 = vpop.f32.mrb[0].mxu0
      %v1814 = vadd.f32 0.0, %v1813
      %v1815 = vpop.f32.mrb[0].mxu0
      %v1816 = vpop.f32.mrb[0].mxu0
      %v1817 = vadd.f32 0.0, %v1816
      %v1818 = vpop.f32.mrb[0].mxu0
      %1819 = vmatprep.mubr.bf16.mxu0 0
      %1820 = vmatmul.mubr.bf16.gmra.mrb[0].mxu0 %v1671
      %v1821 = vpop.f32.mrb[0].mxu0
      %v1822 = vadd.f32 0.0, %v1821
      %v1823 = vpop.f32.mrb[0].mxu0
      %v1824 = vpop.f32.mrb[0].mxu0
      %v1825 = vadd.f32 0.0, %v1824
      %v1826 = vpop.f32.mrb[0].mxu0
      %1827 = vmatprep.mubr.bf16.mxu0 0
      %1828 = vmatmul.mubr.bf16.gmra.mrb[0].mxu0 %v1674
      %v1829 = vpop.f32.mrb[0].mxu0
      %v1830 = vadd.f32 0.0, %v1829
      %v1831 = vpop.f32.mrb[0].mxu0
      %v1832 = vpop.f32.mrb[0].mxu0
      %v1833 = vadd.f32 0.0, %v1832
      %v1834 = vpop.f32.mrb[0].mxu0
      %1835 = vmatprep.mubr.bf16.mxu0 0
      %1836 = vmatmul.mubr.bf16.gmra.mrb[0].mxu0 %v1677
      %v1837 = vpop.f32.mrb[0].mxu0
      %v1838 = vadd.f32 0.0, %v1837
      %v1839 = vpop.f32.mrb[0].mxu0
      %v1840 = vpop.f32.mrb[0].mxu0
      %v1841 = vadd.f32 0.0, %v1840
      %v1842 = vpop.f32.mrb[0].mxu0
      %1843 = vmatprep.mubr.bf16.mxu0 0
      %1844 = vmatmul.mubr.bf16.gmra.mrb[0].mxu0 %v1680
      %v1845 = vpop.f32.mrb[0].mxu0
      %v1846 = vadd.f32 0.0, %v1845
      %v1847 = vpop.f32.mrb[0].mxu0
      %v1848 = vpop.f32.mrb[0].mxu0
      %v1849 = vadd.f32 0.0, %v1848
      %v1850 = vpop.f32.mrb[0].mxu0
      %1851 = vmatprep.mubr.bf16.mxu0 0
      %1852 = vmatmul.mubr.bf16.gmra.mrb[0].mxu0 %v1683
      %v1853 = vpop.f32.mrb[0].mxu0
      %v1854 = vadd.f32 0.0, %v1853
      %v1855 = vpop.f32.mrb[0].mxu0
      %v1856 = vpop.f32.mrb[0].mxu0
      %v1857 = vadd.f32 0.0, %v1856
      %v1858 = vpop.f32.mrb[0].mxu0
      %1859 = vmatprep.mubr.bf16.mxu0 0
      %1860 = vmatmul.mubr.bf16.gmra.mrb[0].mxu0 %v1686
      %v1861 = vpop.f32.mrb[0].mxu0
      %v1862 = vadd.f32 0.0, %v1861
      %v1863 = vpop.f32.mrb[0].mxu0
      %v1864 = vpop.f32.mrb[0].mxu0
      %v1865 = vadd.f32 0.0, %v1864
      %v1866 = vpop.f32.mrb[0].mxu0
      %1867 = vdwg.mxu0
      %v1868 = vrot.slane %v1448, 1
      %v1869 = vrot.slane %v1449, 1
      %v1870 = vsel %vm989, %v1868, %v1869
      %v1871 = vrot.slane %v1450, 1
      %v1872 = vsel %vm989, %v1869, %v1871
      %v1873 = vrot.slane %v1451, 1
      %v1874 = vsel %vm989, %v1871, %v1873
      %v1875 = vrot.slane %v1452, 1
      %v1876 = vsel %vm989, %v1873, %v1875
      %v1877 = vrot.slane %v1453, 1
      %v1878 = vsel %vm989, %v1875, %v1877
      %v1879 = vrot.slane %v1454, 1
      %v1880 = vsel %vm989, %v1877, %v1879
      %v1881 = vrot.slane %v1455, 1
      %v1882 = vsel %vm989, %v1879, %v1881
      %v1883 = vrot.slane %v1456, 1
      %v1884 = vsel %vm989, %v1881, %v1883
      %v1885 = vrot.slane %v1457, 1
      %v1886 = vsel %vm989, %v1883, %v1885
      %v1887 = vrot.slane %v1458, 1
      %v1888 = vsel %vm989, %v1885, %v1887
      %v1889 = vrot.slane %v1459, 1
      %v1890 = vsel %vm989, %v1887, %v1889
      %v1891 = vrot.slane %v1460, 1
      %v1892 = vsel %vm989, %v1889, %v1891
      %v1893 = vrot.slane %v1461, 1
      %v1894 = vsel %vm989, %v1891, %v1893
      %v1895 = vrot.slane %v1462, 1
      %v1896 = vsel %vm989, %v1893, %v1895
      %v1897 = vrot.slane %v1463, 1
      %v1898 = vsel %vm989, %v1895, %v1897
      %v1899 = vrot.slane %v1464, 1
      %v1900 = vsel %vm989, %v1897, %v1899
      %v1901 = vrot.slane %v1465, 1
      %v1902 = vsel %vm989, %v1899, %v1901
      %v1904 = vsel %vm524, %v1870, 0
      %v1907 = vsel %vm524, %v1872, 0
      %v1910 = vsel %vm524, %v1874, 0
      %v1913 = vsel %vm524, %v1876, 0
      %v1916 = vsel %vm524, %v1878, 0
      %v1919 = vsel %vm524, %v1880, 0
      %v1922 = vsel %vm524, %v1882, 0
      %v1925 = vsel %vm524, %v1884, 0
      %v1928 = vsel %vm524, %v1886, 0
      %v1931 = vsel %vm524, %v1888, 0
      %v1934 = vsel %vm524, %v1890, 0
      %v1937 = vsel %vm524, %v1892, 0
      %v1940 = vsel %vm524, %v1894, 0
      %v1943 = vsel %vm524, %v1896, 0
      %v1946 = vsel %vm524, %v1898, 0
      %v1949 = vsel %vm524, %v1900, 0
      %v1952 = vsel %vm524, %v1902, 0
      %v1955 = vsel %vm524, %v1901, 0
      %v1958 = vand.u32 %v1370, %v582
      %1960 = vmatprep.subr.bf16.mxu0 0
      %1961 = vmatpush1.bf16.msra.mxu0 %v1958
      %1962 = vmatprep.subr.bf16.mxu0 0
      %1963 = vmatpush1.bf16.msra.mxu0 0
      %1964 = vmatprep.subr.bf16.mxu0 0
      %1965 = vmatpush1.bf16.msra.mxu0 0
      %1966 = vmatprep.subr.bf16.mxu0 0
      %1967 = vmatpush1.bf16.msra.mxu0 0
      %1968 = vmatprep.subr.bf16.mxu0 0
      %1969 = vmatpush1.bf16.msra.mxu0 0
      %1970 = vmatprep.subr.bf16.mxu0 0
      %1971 = vmatpush1.bf16.msra.mxu0 0
      %1972 = vmatprep.subr.bf16.mxu0 0
      %1973 = vmatpush1.bf16.msra.mxu0 0
      %1974 = vmatprep.subr.bf16.mxu0 0
      %1975 = vmatpush1.bf16.msra.mxu0 0
      %1976 = vmatprep.subr.bf16.mxu0 0
      %1977 = vmatpush1.bf16.msra.mxu0 0
      %1978 = vmatprep.subr.bf16.mxu0 0
      %1979 = vmatpush1.bf16.msra.mxu0 0
      %1980 = vmatprep.subr.bf16.mxu0 0
      %1981 = vmatpush1.bf16.msra.mxu0 0
      %1982 = vmatprep.subr.bf16.mxu0 0
      %1983 = vmatpush1.bf16.msra.mxu0 0
      %1984 = vmatprep.subr.bf16.mxu0 0
      %1985 = vmatpush1.bf16.msra.mxu0 0
      %1986 = vmatprep.subr.bf16.mxu0 0
      %1987 = vmatpush1.bf16.msra.mxu0 0
      %1988 = vmatprep.subr.bf16.mxu0 0
      %1989 = vmatpush1.bf16.msra.mxu0 0
      %1990 = vmatprep.subr.bf16.mxu0 0
      %1991 = vmatpush1.bf16.msra.mxu0 0
      %1992 = vmatprep.mubr.bf16.mxu0 0
      %1993 = vmatmul.mubr.bf16.gmra.mrb[0].mxu0 %v1904
      %v1994 = vpop.f32.mrb[0].mxu0
      %v1995 = vadd.f32 %v1726, %v1994
      %v1996 = vpop.f32.mrb[0].mxu0
      %v1997 = vpop.f32.mrb[0].mxu0
      %v1998 = vadd.f32 %v1729, %v1997
      %v1999 = vpop.f32.mrb[0].mxu0
      %2000 = vmatprep.mubr.bf16.mxu0 0
      %2001 = vmatmul.mubr.bf16.gmra.mrb[0].mxu0 %v1907
      %v2002 = vpop.f32.mrb[0].mxu0
      %v2003 = vadd.f32 %v1734, %v2002
      %v2004 = vpop.f32.mrb[0].mxu0
      %v2005 = vpop.f32.mrb[0].mxu0
      %v2006 = vadd.f32 %v1737, %v2005
      %v2007 = vpop.f32.mrb[0].mxu0
      %2008 = vmatprep.mubr.bf16.mxu0 0
      %2009 = vmatmul.mubr.bf16.gmra.mrb[0].mxu0 %v1910
      %v2010 = vpop.f32.mrb[0].mxu0
      %v2011 = vadd.f32 %v1742, %v2010
      %v2012 = vpop.f32.mrb[0].mxu0
      %v2013 = vpop.f32.mrb[0].mxu0
      %v2014 = vadd.f32 %v1745, %v2013
      %v2015 = vpop.f32.mrb[0].mxu0
      %2016 = vmatprep.mubr.bf16.mxu0 0
      %2017 = vmatmul.mubr.bf16.gmra.mrb[0].mxu0 %v1913
      %v2018 = vpop.f32.mrb[0].mxu0
      %v2019 = vadd.f32 %v1750, %v2018
      %v2020 = vpop.f32.mrb[0].mxu0
      %v2021 = vpop.f32.mrb[0].mxu0
      %v2022 = vadd.f32 %v1753, %v2021
      %v2023 = vpop.f32.mrb[0].mxu0
      %2024 = vmatprep.mubr.bf16.mxu0 0
      %2025 = vmatmul.mubr.bf16.gmra.mrb[0].mxu0 %v1916
      %v2026 = vpop.f32.mrb[0].mxu0
      %v2027 = vadd.f32 %v1758, %v2026
      %v2028 = vpop.f32.mrb[0].mxu0
      %v2029 = vpop.f32.mrb[0].mxu0
      %v2030 = vadd.f32 %v1761, %v2029
      %v2031 = vpop.f32.mrb[0].mxu0
      %2032 = vmatprep.mubr.bf16.mxu0 0
      %2033 = vmatmul.mubr.bf16.gmra.mrb[0].mxu0 %v1919
      %v2034 = vpop.f32.mrb[0].mxu0
      %v2035 = vadd.f32 %v1766, %v2034
      %v2036 = vpop.f32.mrb[0].mxu0
      %v2037 = vpop.f32.mrb[0].mxu0
      %v2038 = vadd.f32 %v1769, %v2037
      %v2039 = vpop.f32.mrb[0].mxu0
      %2040 = vmatprep.mubr.bf16.mxu0 0
      %2041 = vmatmul.mubr.bf16.gmra.mrb[0].mxu0 %v1922
      %v2042 = vpop.f32.mrb[0].mxu0
      %v2043 = vadd.f32 %v1774, %v2042
      %v2044 = vpop.f32.mrb[0].mxu0
      %v2045 = vpop.f32.mrb[0].mxu0
      %v2046 = vadd.f32 %v1777, %v2045
      %v2047 = vpop.f32.mrb[0].mxu0
      %2048 = vmatprep.mubr.bf16.mxu0 0
      %2049 = vmatmul.mubr.bf16.gmra.mrb[0].mxu0 %v1925
      %v2050 = vpop.f32.mrb[0].mxu0
      %v2051 = vadd.f32 %v1782, %v2050
      %v2052 = vpop.f32.mrb[0].mxu0
      %v2053 = vpop.f32.mrb[0].mxu0
      %v2054 = vadd.f32 %v1785, %v2053
      %v2055 = vpop.f32.mrb[0].mxu0
      %2056 = vmatprep.mubr.bf16.mxu0 0
      %2057 = vmatmul.mubr.bf16.gmra.mrb[0].mxu0 %v1928
      %v2058 = vpop.f32.mrb[0].mxu0
      %v2059 = vadd.f32 %v1790, %v2058
      %v2060 = vpop.f32.mrb[0].mxu0
      %v2061 = vpop.f32.mrb[0].mxu0
      %v2062 = vadd.f32 %v1793, %v2061
      %v2063 = vpop.f32.mrb[0].mxu0
      %2064 = vmatprep.mubr.bf16.mxu0 0
      %2065 = vmatmul.mubr.bf16.gmra.mrb[0].mxu0 %v1931
      %v2066 = vpop.f32.mrb[0].mxu0
      %v2067 = vadd.f32 %v1798, %v2066
      %v2068 = vpop.f32.mrb[0].mxu0
      %v2069 = vpop.f32.mrb[0].mxu0
      %v2070 = vadd.f32 %v1801, %v2069
      %v2071 = vpop.f32.mrb[0].mxu0
      %2072 = vmatprep.mubr.bf16.mxu0 0
      %2073 = vmatmul.mubr.bf16.gmra.mrb[0].mxu0 %v1934
      %v2074 = vpop.f32.mrb[0].mxu0
      %v2075 = vadd.f32 %v1806, %v2074
      %v2076 = vpop.f32.mrb[0].mxu0
      %v2077 = vpop.f32.mrb[0].mxu0
      %v2078 = vadd.f32 %v1809, %v2077
      %v2079 = vpop.f32.mrb[0].mxu0
      %2080 = vmatprep.mubr.bf16.mxu0 0
      %2081 = vmatmul.mubr.bf16.gmra.mrb[0].mxu0 %v1937
      %v2082 = vpop.f32.mrb[0].mxu0
      %v2083 = vadd.f32 %v1814, %v2082
      %v2084 = vpop.f32.mrb[0].mxu0
      %v2085 = vpop.f32.mrb[0].mxu0
      %v2086 = vadd.f32 %v1817, %v2085
      %v2087 = vpop.f32.mrb[0].mxu0
      %2088 = vmatprep.mubr.bf16.mxu0 0
      %2089 = vmatmul.mubr.bf16.gmra.mrb[0].mxu0 %v1940
      %v2090 = vpop.f32.mrb[0].mxu0
      %v2091 = vadd.f32 %v1822, %v2090
      %v2092 = vpop.f32.mrb[0].mxu0
      %v2093 = vpop.f32.mrb[0].mxu0
      %v2094 = vadd.f32 %v1825, %v2093
      %v2095 = vpop.f32.mrb[0].mxu0
      %2096 = vmatprep.mubr.bf16.mxu0 0
      %2097 = vmatmul.mubr.bf16.gmra.mrb[0].mxu0 %v1943
      %v2098 = vpop.f32.mrb[0].mxu0
      %v2099 = vadd.f32 %v1830, %v2098
      %v2100 = vpop.f32.mrb[0].mxu0
      %v2101 = vpop.f32.mrb[0].mxu0
      %v2102 = vadd.f32 %v1833, %v2101
      %v2103 = vpop.f32.mrb[0].mxu0
      %2104 = vmatprep.mubr.bf16.mxu0 0
      %2105 = vmatmul.mubr.bf16.gmra.mrb[0].mxu0 %v1946
      %v2106 = vpop.f32.mrb[0].mxu0
      %v2107 = vadd.f32 %v1838, %v2106
      %v2108 = vpop.f32.mrb[0].mxu0
      %v2109 = vpop.f32.mrb[0].mxu0
      %v2110 = vadd.f32 %v1841, %v2109
      %v2111 = vpop.f32.mrb[0].mxu0
      %2112 = vmatprep.mubr.bf16.mxu0 0
      %2113 = vmatmul.mubr.bf16.gmra.mrb[0].mxu0 %v1949
      %v2114 = vpop.f32.mrb[0].mxu0
      %v2115 = vadd.f32 %v1846, %v2114
      %v2116 = vpop.f32.mrb[0].mxu0
      %v2117 = vpop.f32.mrb[0].mxu0
      %v2118 = vadd.f32 %v1849, %v2117
      %v2119 = vpop.f32.mrb[0].mxu0
      %2120 = vmatprep.mubr.bf16.mxu0 0
      %2121 = vmatmul.mubr.bf16.gmra.mrb[0].mxu0 %v1952
      %v2122 = vpop.f32.mrb[0].mxu0
      %v2123 = vadd.f32 %v1854, %v2122
      %v2124 = vpop.f32.mrb[0].mxu0
      %v2125 = vpop.f32.mrb[0].mxu0
      %v2126 = vadd.f32 %v1857, %v2125
      %v2127 = vpop.f32.mrb[0].mxu0
      %2128 = vmatprep.mubr.bf16.mxu0 0
      %2129 = vmatmul.mubr.bf16.gmra.mrb[0].mxu0 %v1955
      %v2130 = vpop.f32.mrb[0].mxu0
      %v2131 = vadd.f32 %v1862, %v2130
      %v2132 = vpop.f32.mrb[0].mxu0
      %v2133 = vpop.f32.mrb[0].mxu0
      %v2134 = vadd.f32 %v1865, %v2133
      %v2135 = vpop.f32.mrb[0].mxu0
      %2136 = vdwg.mxu0
      %v2137 = vld [vmem:[%s233 + $0x8] sm:$0xc]
      %s2138 = scalar_lea.vmem %s237, 10
      %v2139 = vld [vmem:[%s2138] sm:$0x3]
      %v2141 = vunpack.c.l.b16 %v2137
      %v2142 = vpack.c.b16 %v1412, %v2141
      %vm2143 = vcmask 1045504
      %v2144 = vrot.slane %v2142, 2
      %v2145 = vrot.slane %v1449, 2
      %v2146 = vsel %vm2143, %v2144, %v2145
      %v2147 = vrot.slane %v1450, 2
      %v2148 = vsel %vm2143, %v2145, %v2147
      %v2149 = vrot.slane %v1451, 2
      %v2150 = vsel %vm2143, %v2147, %v2149
      %v2151 = vrot.slane %v1452, 2
      %v2152 = vsel %vm2143, %v2149, %v2151
      %v2153 = vrot.slane %v1453, 2
      %v2154 = vsel %vm2143, %v2151, %v2153
      %v2155 = vrot.slane %v1454, 2
      %v2156 = vsel %vm2143, %v2153, %v2155
      %v2157 = vrot.slane %v1455, 2
      %v2158 = vsel %vm2143, %v2155, %v2157
      %v2159 = vrot.slane %v1456, 2
      %v2160 = vsel %vm2143, %v2157, %v2159
      %v2161 = vrot.slane %v1457, 2
      %v2162 = vsel %vm2143, %v2159, %v2161
      %v2163 = vrot.slane %v1458, 2
      %v2164 = vsel %vm2143, %v2161, %v2163
      %v2165 = vrot.slane %v1459, 2
      %v2166 = vsel %vm2143, %v2163, %v2165
      %v2167 = vrot.slane %v1460, 2
      %v2168 = vsel %vm2143, %v2165, %v2167
      %v2169 = vrot.slane %v1461, 2
      %v2170 = vsel %vm2143, %v2167, %v2169
      %v2171 = vrot.slane %v1462, 2
      %v2172 = vsel %vm2143, %v2169, %v2171
      %v2173 = vrot.slane %v1463, 2
      %v2174 = vsel %vm2143, %v2171, %v2173
      %v2175 = vrot.slane %v1464, 2
      %v2176 = vsel %vm2143, %v2173, %v2175
      %v2177 = vrot.slane %v1465, 2
      %v2178 = vsel %vm2143, %v2175, %v2177
      %v2179 = vrot.slane %v1466, 2
      %v2180 = vsel %vm2143, %v2177, %v2179
      %v2182 = vsel %vm524, %v2146, 0
      %v2185 = vsel %vm524, %v2148, 0
      %v2188 = vsel %vm524, %v2150, 0
      %v2191 = vsel %vm524, %v2152, 0
      %v2194 = vsel %vm524, %v2154, 0
      %v2197 = vsel %vm524, %v2156, 0
      %v2200 = vsel %vm524, %v2158, 0
      %v2203 = vsel %vm524, %v2160, 0
      %v2206 = vsel %vm524, %v2162, 0
      %v2209 = vsel %vm524, %v2164, 0
      %v2212 = vsel %vm524, %v2166, 0
      %v2215 = vsel %vm524, %v2168, 0
      %v2218 = vsel %vm524, %v2170, 0
      %v2221 = vsel %vm524, %v2172, 0
      %v2224 = vsel %vm524, %v2174, 0
      %v2227 = vsel %vm524, %v2176, 0
      %v2230 = vsel %vm524, %v2178, 0
      %v2233 = vsel %vm524, %v2180, 0
      %v2236 = vand.u32 %v2139, %v582
      %2238 = vmatprep.subr.bf16.mxu0 0
      %2239 = vmatpush1.bf16.msra.mxu0 %v2236
      %2240 = vmatprep.subr.bf16.mxu0 0
      %2241 = vmatpush1.bf16.msra.mxu0 0
      %2242 = vmatprep.subr.bf16.mxu0 0
      %2243 = vmatpush1.bf16.msra.mxu0 0
      %2244 = vmatprep.subr.bf16.mxu0 0
      %2245 = vmatpush1.bf16.msra.mxu0 0
      %2246 = vmatprep.subr.bf16.mxu0 0
      %2247 = vmatpush1.bf16.msra.mxu0 0
      %2248 = vmatprep.subr.bf16.mxu0 0
      %2249 = vmatpush1.bf16.msra.mxu0 0
      %2250 = vmatprep.subr.bf16.mxu0 0
      %2251 = vmatpush1.bf16.msra.mxu0 0
      %2252 = vmatprep.subr.bf16.mxu0 0
      %2253 = vmatpush1.bf16.msra.mxu0 0
      %2254 = vmatprep.subr.bf16.mxu0 0
      %2255 = vmatpush1.bf16.msra.mxu0 0
      %2256 = vmatprep.subr.bf16.mxu0 0
      %2257 = vmatpush1.bf16.msra.mxu0 0
      %2258 = vmatprep.subr.bf16.mxu0 0
      %2259 = vmatpush1.bf16.msra.mxu0 0
      %2260 = vmatprep.subr.bf16.mxu0 0
      %2261 = vmatpush1.bf16.msra.mxu0 0
      %2262 = vmatprep.subr.bf16.mxu0 0
      %2263 = vmatpush1.bf16.msra.mxu0 0
      %2264 = vmatprep.subr.bf16.mxu0 0
      %2265 = vmatpush1.bf16.msra.mxu0 0
      %2266 = vmatprep.subr.bf16.mxu0 0
      %2267 = vmatpush1.bf16.msra.mxu0 0
      %2268 = vmatprep.subr.bf16.mxu0 0
      %2269 = vmatpush1.bf16.msra.mxu0 0
      %2270 = vmatprep.mubr.bf16.mxu0 0
      %2271 = vmatmul.mubr.bf16.gmra.mrb[0].mxu0 %v2182
      %v2272 = vpop.f32.mrb[0].mxu0
      %v2273 = vadd.f32 0.0, %v2272
      %v2274 = vpop.f32.mrb[0].mxu0
      %v2275 = vpop.f32.mrb[0].mxu0
      %v2276 = vadd.f32 0.0, %v2275
      %v2277 = vpop.f32.mrb[0].mxu0
      %2278 = vmatprep.mubr.bf16.mxu0 0
      %2279 = vmatmul.mubr.bf16.gmra.mrb[0].mxu0 %v2185
      %v2280 = vpop.f32.mrb[0].mxu0
      %v2281 = vadd.f32 0.0, %v2280
      %v2282 = vpop.f32.mrb[0].mxu0
      %v2283 = vpop.f32.mrb[0].mxu0
      %v2284 = vadd.f32 0.0, %v2283
      %v2285 = vpop.f32.mrb[0].mxu0
      %2286 = vmatprep.mubr.bf16.mxu0 0
      %2287 = vmatmul.mubr.bf16.gmra.mrb[0].mxu0 %v2188
      %v2288 = vpop.f32.mrb[0].mxu0
      %v2289 = vadd.f32 0.0, %v2288
      %v2290 = vpop.f32.mrb[0].mxu0
      %v2291 = vpop.f32.mrb[0].mxu0
      %v2292 = vadd.f32 0.0, %v2291
      %v2293 = vpop.f32.mrb[0].mxu0
      %2294 = vmatprep.mubr.bf16.mxu0 0
      %2295 = vmatmul.mubr.bf16.gmra.mrb[0].mxu0 %v2191
      %v2296 = vpop.f32.mrb[0].mxu0
      %v2297 = vadd.f32 0.0, %v2296
      %v2298 = vpop.f32.mrb[0].mxu0
      %v2299 = vpop.f32.mrb[0].mxu0
      %v2300 = vadd.f32 0.0, %v2299
      %v2301 = vpop.f32.mrb[0].mxu0
      %2302 = vmatprep.mubr.bf16.mxu0 0
      %2303 = vmatmul.mubr.bf16.gmra.mrb[0].mxu0 %v2194
      %v2304 = vpop.f32.mrb[0].mxu0
      %v2305 = vadd.f32 0.0, %v2304
      %v2306 = vpop.f32.mrb[0].mxu0
      %v2307 = vpop.f32.mrb[0].mxu0
      %v2308 = vadd.f32 0.0, %v2307
      %v2309 = vpop.f32.mrb[0].mxu0
      %2310 = vmatprep.mubr.bf16.mxu0 0
      %2311 = vmatmul.mubr.bf16.gmra.mrb[0].mxu0 %v2197
      %v2312 = vpop.f32.mrb[0].mxu0
      %v2313 = vadd.f32 0.0, %v2312
      %v2314 = vpop.f32.mrb[0].mxu0
      %v2315 = vpop.f32.mrb[0].mxu0
      %v2316 = vadd.f32 0.0, %v2315
      %v2317 = vpop.f32.mrb[0].mxu0
      %2318 = vmatprep.mubr.bf16.mxu0 0
      %2319 = vmatmul.mubr.bf16.gmra.mrb[0].mxu0 %v2200
      %v2320 = vpop.f32.mrb[0].mxu0
      %v2321 = vadd.f32 0.0, %v2320
      %v2322 = vpop.f32.mrb[0].mxu0
      %v2323 = vpop.f32.mrb[0].mxu0
      %v2324 = vadd.f32 0.0, %v2323
      %v2325 = vpop.f32.mrb[0].mxu0
      %2326 = vmatprep.mubr.bf16.mxu0 0
      %2327 = vmatmul.mubr.bf16.gmra.mrb[0].mxu0 %v2203
      %v2328 = vpop.f32.mrb[0].mxu0
      %v2329 = vadd.f32 0.0, %v2328
      %v2330 = vpop.f32.mrb[0].mxu0
      %v2331 = vpop.f32.mrb[0].mxu0
      %v2332 = vadd.f32 0.0, %v2331
      %v2333 = vpop.f32.mrb[0].mxu0
      %2334 = vmatprep.mubr.bf16.mxu0 0
      %2335 = vmatmul.mubr.bf16.gmra.mrb[0].mxu0 %v2206
      %v2336 = vpop.f32.mrb[0].mxu0
      %v2337 = vadd.f32 0.0, %v2336
      %v2338 = vpop.f32.mrb[0].mxu0
      %v2339 = vpop.f32.mrb[0].mxu0
      %v2340 = vadd.f32 0.0, %v2339
      %v2341 = vpop.f32.mrb[0].mxu0
      %2342 = vmatprep.mubr.bf16.mxu0 0
      %2343 = vmatmul.mubr.bf16.gmra.mrb[0].mxu0 %v2209
      %v2344 = vpop.f32.mrb[0].mxu0
      %v2345 = vadd.f32 0.0, %v2344
      %v2346 = vpop.f32.mrb[0].mxu0
      %v2347 = vpop.f32.mrb[0].mxu0
      %v2348 = vadd.f32 0.0, %v2347
      %v2349 = vpop.f32.mrb[0].mxu0
      %2350 = vmatprep.mubr.bf16.mxu0 0
      %2351 = vmatmul.mubr.bf16.gmra.mrb[0].mxu0 %v2212
      %v2352 = vpop.f32.mrb[0].mxu0
      %v2353 = vadd.f32 0.0, %v2352
      %v2354 = vpop.f32.mrb[0].mxu0
      %v2355 = vpop.f32.mrb[0].mxu0
      %v2356 = vadd.f32 0.0, %v2355
      %v2357 = vpop.f32.mrb[0].mxu0
      %2358 = vmatprep.mubr.bf16.mxu0 0
      %2359 = vmatmul.mubr.bf16.gmra.mrb[0].mxu0 %v2215
      %v2360 = vpop.f32.mrb[0].mxu0
      %v2361 = vadd.f32 0.0, %v2360
      %v2362 = vpop.f32.mrb[0].mxu0
      %v2363 = vpop.f32.mrb[0].mxu0
      %v2364 = vadd.f32 0.0, %v2363
      %v2365 = vpop.f32.mrb[0].mxu0
      %2366 = vmatprep.mubr.bf16.mxu0 0
      %2367 = vmatmul.mubr.bf16.gmra.mrb[0].mxu0 %v2218
      %v2368 = vpop.f32.mrb[0].mxu0
      %v2369 = vadd.f32 0.0, %v2368
      %v2370 = vpop.f32.mrb[0].mxu0
      %v2371 = vpop.f32.mrb[0].mxu0
      %v2372 = vadd.f32 0.0, %v2371
      %v2373 = vpop.f32.mrb[0].mxu0
      %2374 = vmatprep.mubr.bf16.mxu0 0
      %2375 = vmatmul.mubr.bf16.gmra.mrb[0].mxu0 %v2221
      %v2376 = vpop.f32.mrb[0].mxu0
      %v2377 = vadd.f32 0.0, %v2376
      %v2378 = vpop.f32.mrb[0].mxu0
      %v2379 = vpop.f32.mrb[0].mxu0
      %v2380 = vadd.f32 0.0, %v2379
      %v2381 = vpop.f32.mrb[0].mxu0
      %2382 = vmatprep.mubr.bf16.mxu0 0
      %2383 = vmatmul.mubr.bf16.gmra.mrb[0].mxu0 %v2224
      %v2384 = vpop.f32.mrb[0].mxu0
      %v2385 = vadd.f32 0.0, %v2384
      %v2386 = vpop.f32.mrb[0].mxu0
      %v2387 = vpop.f32.mrb[0].mxu0
      %v2388 = vadd.f32 0.0, %v2387
      %v2389 = vpop.f32.mrb[0].mxu0
      %2390 = vmatprep.mubr.bf16.mxu0 0
      %2391 = vmatmul.mubr.bf16.gmra.mrb[0].mxu0 %v2227
      %v2392 = vpop.f32.mrb[0].mxu0
      %v2393 = vadd.f32 0.0, %v2392
      %v2394 = vpop.f32.mrb[0].mxu0
      %v2395 = vpop.f32.mrb[0].mxu0
      %v2396 = vadd.f32 0.0, %v2395
      %v2397 = vpop.f32.mrb[0].mxu0
      %2398 = vmatprep.mubr.bf16.mxu0 0
      %2399 = vmatmul.mubr.bf16.gmra.mrb[0].mxu0 %v2230
      %v2400 = vpop.f32.mrb[0].mxu0
      %v2401 = vadd.f32 0.0, %v2400
      %v2402 = vpop.f32.mrb[0].mxu0
      %v2403 = vpop.f32.mrb[0].mxu0
      %v2404 = vadd.f32 0.0, %v2403
      %v2405 = vpop.f32.mrb[0].mxu0
      %2406 = vmatprep.mubr.bf16.mxu0 0
      %2407 = vmatmul.mubr.bf16.gmra.mrb[0].mxu0 %v2233
      %v2408 = vpop.f32.mrb[0].mxu0
      %v2409 = vadd.f32 0.0, %v2408
      %v2410 = vpop.f32.mrb[0].mxu0
      %v2411 = vpop.f32.mrb[0].mxu0
      %v2412 = vadd.f32 0.0, %v2411
      %v2413 = vpop.f32.mrb[0].mxu0
      %2414 = vdwg.mxu0
      %v2415 = vadd.f32 %v1995, %v2273
      %v2416 = vadd.f32 %v1998, %v2276
      %v2417 = vadd.f32 %v2003, %v2281
      %v2418 = vadd.f32 %v2006, %v2284
      %v2419 = vadd.f32 %v2011, %v2289
      %v2420 = vadd.f32 %v2014, %v2292
      %v2421 = vadd.f32 %v2019, %v2297
      %v2422 = vadd.f32 %v2022, %v2300
      %v2423 = vadd.f32 %v2027, %v2305
      %v2424 = vadd.f32 %v2030, %v2308
      %v2425 = vadd.f32 %v2035, %v2313
      %v2426 = vadd.f32 %v2038, %v2316
      %v2427 = vadd.f32 %v2043, %v2321
      %v2428 = vadd.f32 %v2046, %v2324
      %v2429 = vadd.f32 %v2051, %v2329
      %v2430 = vadd.f32 %v2054, %v2332
      %v2431 = vadd.f32 %v2059, %v2337
      %v2432 = vadd.f32 %v2062, %v2340
      %v2433 = vadd.f32 %v2067, %v2345
      %v2434 = vadd.f32 %v2070, %v2348
      %v2435 = vadd.f32 %v2075, %v2353
      %v2436 = vadd.f32 %v2078, %v2356
      %v2437 = vadd.f32 %v2083, %v2361
      %v2438 = vadd.f32 %v2086, %v2364
      %v2439 = vadd.f32 %v2091, %v2369
      %v2440 = vadd.f32 %v2094, %v2372
      %v2441 = vadd.f32 %v2099, %v2377
      %v2442 = vadd.f32 %v2102, %v2380
      %v2443 = vadd.f32 %v2107, %v2385
      %v2444 = vadd.f32 %v2110, %v2388
      %v2445 = vadd.f32 %v2115, %v2393
      %v2446 = vadd.f32 %v2118, %v2396
      %v2447 = vadd.f32 %v2123, %v2401
      %v2448 = vadd.f32 %v2126, %v2404
      %v2449 = vadd.f32 %v2131, %v2409
      %v2450 = vadd.f32 %v2134, %v2412
      %v2451 = vld [vmem:[#allocation2] sm:$0xff]
      %v2452 = vld [vmem:[#allocation2 + $0x8] sm:$0xff]
      %v2453 = vld [vmem:[#allocation2 + $0x10] sm:$0xff]
      %v2454 = vld [vmem:[#allocation2 + $0x18] sm:$0xff]
      %v2455 = vld [vmem:[#allocation2 + $0x20] sm:$0xff]
      %v2456 = vld [vmem:[#allocation2 + $0x28] sm:$0xff]
      %v2457 = vld [vmem:[#allocation2 + $0x30] sm:$0xff]
      %v2458 = vld [vmem:[#allocation2 + $0x38] sm:$0xff]
      %v2459 = vld [vmem:[#allocation2 + $0x40] sm:$0xff]
      %v2460 = vld [vmem:[#allocation2 + $0x48] sm:$0xff]
      %v2461 = vld [vmem:[#allocation2 + $0x50] sm:$0xff]
      %v2462 = vld [vmem:[#allocation2 + $0x58] sm:$0xff]
      %v2463 = vld [vmem:[#allocation2 + $0x60] sm:$0xff]
      %v2464 = vld [vmem:[#allocation2 + $0x68] sm:$0xff]
      %v2465 = vld [vmem:[#allocation2 + $0x70] sm:$0xff]
      %v2466 = vld [vmem:[#allocation2 + $0x78] sm:$0xff]
      %v2467 = vld [vmem:[#allocation2 + $0x80] sm:$0xff]
      %v2468 = vld [vmem:[#allocation2 + $0x88] sm:$0xff]
      %v2469 = vld [vmem:[#allocation2 + $0x90] sm:$0xff]
      %v2470 = vld [vmem:[#allocation2 + $0x98] sm:$0xff]
      %v2471 = vld [vmem:[#allocation2 + $0xa0] sm:$0xff]
      %v2472 = vld [vmem:[#allocation2 + $0xa8] sm:$0xff]
      %v2473 = vld [vmem:[#allocation2 + $0xb0] sm:$0xff]
      %v2474 = vld [vmem:[#allocation2 + $0xb8] sm:$0xff]
      %v2475 = vld [vmem:[#allocation2 + $0xc0] sm:$0xff]
      %v2476 = vld [vmem:[#allocation2 + $0xc8] sm:$0xff]
      %v2477 = vld [vmem:[#allocation2 + $0xd0] sm:$0xff]
      %v2478 = vld [vmem:[#allocation2 + $0xd8] sm:$0xff]
      %v2479 = vld [vmem:[#allocation2 + $0xe0] sm:$0xff]
      %v2480 = vld [vmem:[#allocation2 + $0xe8] sm:$0xff]
      %v2481 = vld [vmem:[#allocation2 + $0xf0] sm:$0xff]
      %v2482 = vld [vmem:[#allocation2 + $0xf8] sm:$0xff]
      %v2483 = vld [vmem:[#allocation2 + $0x100] sm:$0xff]
      %v2484 = vld [vmem:[#allocation2 + $0x108] sm:$0xff]
      %v2485 = vld [vmem:[#allocation2 + $0x110] sm:$0xff]
      %v2486 = vld [vmem:[#allocation2 + $0x118] sm:$0x3f]
      %v2487 = vadd.f32 %v2451, %v2415
      %v2488 = vadd.f32 %v2452, %v2416
      %v2489 = vadd.f32 %v2453, %v2417
      %v2490 = vadd.f32 %v2454, %v2418
      %v2491 = vadd.f32 %v2455, %v2419
      %v2492 = vadd.f32 %v2456, %v2420
      %v2493 = vadd.f32 %v2457, %v2421
      %v2494 = vadd.f32 %v2458, %v2422
      %v2495 = vadd.f32 %v2459, %v2423
      %v2496 = vadd.f32 %v2460, %v2424
      %v2497 = vadd.f32 %v2461, %v2425
      %v2498 = vadd.f32 %v2462, %v2426
      %v2499 = vadd.f32 %v2463, %v2427
      %v2500 = vadd.f32 %v2464, %v2428
      %v2501 = vadd.f32 %v2465, %v2429
      %v2502 = vadd.f32 %v2466, %v2430
      %v2503 = vadd.f32 %v2467, %v2431
      %v2504 = vadd.f32 %v2468, %v2432
      %v2505 = vadd.f32 %v2469, %v2433
      %v2506 = vadd.f32 %v2470, %v2434
      %v2507 = vadd.f32 %v2471, %v2435
      %v2508 = vadd.f32 %v2472, %v2436
      %v2509 = vadd.f32 %v2473, %v2437
      %v2510 = vadd.f32 %v2474, %v2438
      %v2511 = vadd.f32 %v2475, %v2439
      %v2512 = vadd.f32 %v2476, %v2440
      %v2513 = vadd.f32 %v2477, %v2441
      %v2514 = vadd.f32 %v2478, %v2442
      %v2515 = vadd.f32 %v2479, %v2443
      %v2516 = vadd.f32 %v2480, %v2444
      %v2517 = vadd.f32 %v2481, %v2445
      %v2518 = vadd.f32 %v2482, %v2446
      %v2519 = vadd.f32 %v2483, %v2447
      %v2520 = vadd.f32 %v2484, %v2448
      %v2521 = vadd.f32 %v2485, %v2449
      %v2522 = vadd.f32 %v2486, %v2450
      %2523 = vst.msk [vmem:[#allocation2] sm:$0xff] %vm1295, %v2487
      %2524 = vst.msk [vmem:[#allocation2 + $0x8] sm:$0xff] %vm1295, %v2488
      %2525 = vst.msk [vmem:[#allocation2 + $0x10] sm:$0xff] %vm1295, %v2489
      %2526 = vst.msk [vmem:[#allocation2 + $0x18] sm:$0xff] %vm1295, %v2490
      %2527 = vst.msk [vmem:[#allocation2 + $0x20] sm:$0xff] %vm1295, %v2491
      %2528 = vst.msk [vmem:[#allocation2 + $0x28] sm:$0xff] %vm1295, %v2492
      %2529 = vst.msk [vmem:[#allocation2 + $0x30] sm:$0xff] %vm1295, %v2493
      %2530 = vst.msk [vmem:[#allocation2 + $0x38] sm:$0xff] %vm1295, %v2494
      %2531 = vst.msk [vmem:[#allocation2 + $0x40] sm:$0xff] %vm1295, %v2495
      %2532 = vst.msk [vmem:[#allocation2 + $0x48] sm:$0xff] %vm1295, %v2496
      %2533 = vst.msk [vmem:[#allocation2 + $0x50] sm:$0xff] %vm1295, %v2497
      %2534 = vst.msk [vmem:[#allocation2 + $0x58] sm:$0xff] %vm1295, %v2498
      %2535 = vst.msk [vmem:[#allocation2 + $0x60] sm:$0xff] %vm1295, %v2499
      %2536 = vst.msk [vmem:[#allocation2 + $0x68] sm:$0xff] %vm1295, %v2500
      %2537 = vst.msk [vmem:[#allocation2 + $0x70] sm:$0xff] %vm1295, %v2501
      %2538 = vst.msk [vmem:[#allocation2 + $0x78] sm:$0xff] %vm1295, %v2502
      %2539 = vst.msk [vmem:[#allocation2 + $0x80] sm:$0xff] %vm1295, %v2503
      %2540 = vst.msk [vmem:[#allocation2 + $0x88] sm:$0xff] %vm1295, %v2504
      %2541 = vst.msk [vmem:[#allocation2 + $0x90] sm:$0xff] %vm1295, %v2505
      %2542 = vst.msk [vmem:[#allocation2 + $0x98] sm:$0xff] %vm1295, %v2506
      %2543 = vst.msk [vmem:[#allocation2 + $0xa0] sm:$0xff] %vm1295, %v2507
      %2544 = vst.msk [vmem:[#allocation2 + $0xa8] sm:$0xff] %vm1295, %v2508
      %2545 = vst.msk [vmem:[#allocation2 + $0xb0] sm:$0xff] %vm1295, %v2509
      %2546 = vst.msk [vmem:[#allocation2 + $0xb8] sm:$0xff] %vm1295, %v2510
      %2547 = vst.msk [vmem:[#allocation2 + $0xc0] sm:$0xff] %vm1295, %v2511
      %2548 = vst.msk [vmem:[#allocation2 + $0xc8] sm:$0xff] %vm1295, %v2512
      %2549 = vst.msk [vmem:[#allocation2 + $0xd0] sm:$0xff] %vm1295, %v2513
      %2550 = vst.msk [vmem:[#allocation2 + $0xd8] sm:$0xff] %vm1295, %v2514
      %2551 = vst.msk [vmem:[#allocation2 + $0xe0] sm:$0xff] %vm1295, %v2515
      %2552 = vst.msk [vmem:[#allocation2 + $0xe8] sm:$0xff] %vm1295, %v2516
      %2553 = vst.msk [vmem:[#allocation2 + $0xf0] sm:$0xff] %vm1295, %v2517
      %2554 = vst.msk [vmem:[#allocation2 + $0xf8] sm:$0xff] %vm1295, %v2518
      %2555 = vst.msk [vmem:[#allocation2 + $0x100] sm:$0xff] %vm1295, %v2519
      %2556 = vst.msk [vmem:[#allocation2 + $0x108] sm:$0xff] %vm1295, %v2520
      %2557 = vst.msk [vmem:[#allocation2 + $0x110] sm:$0xff] %vm1295, %v2521
      %2558 = vst.msk [vmem:[#allocation2 + $0x118] sm:$0x3f] %vm1331, %v2522
      %v2559 = vld [vmem:[%s233 + $0x10] sm:$0xc]
      %v2560 = vld [vmem:[%s233 + $0x14] sm:$0xf]
      %v2561 = vld [vmem:[%s233 + $0x18] sm:$0xf]
      %v2562 = vld [vmem:[%s233 + $0x1c] sm:$0xf]
      %v2563 = vld [vmem:[%s233 + $0x20] sm:$0xf]
      %v2564 = vld [vmem:[%s233 + $0x24] sm:$0xf]
      %v2565 = vld [vmem:[%s233 + $0x28] sm:$0xf]
      %v2566 = vld [vmem:[%s233 + $0x2c] sm:$0xf]
      %v2567 = vld [vmem:[%s233 + $0x30] sm:$0xf]
      %v2568 = vld [vmem:[%s233 + $0x34] sm:$0xf]
      %v2569 = vld [vmem:[%s233 + $0x38] sm:$0xf]
      %v2570 = vld [vmem:[%s233 + $0x3c] sm:$0xf]
      %v2571 = vld [vmem:[%s233 + $0x40] sm:$0xf]
      %v2572 = vld [vmem:[%s233 + $0x44] sm:$0xf]
      %v2573 = vld [vmem:[%s233 + $0x48] sm:$0xf]
      %v2574 = vld [vmem:[%s233 + $0x4c] sm:$0xf]
      %v2575 = vld [vmem:[%s233 + $0x50] sm:$0xf]
      %v2576 = vld [vmem:[%s233 + $0x54] sm:$0xf]
      %v2577 = vld [vmem:[%s233 + $0x58] sm:$0xf]
      %v2578 = vld [vmem:[%s233 + $0x5c] sm:$0xf]
      %v2579 = vld [vmem:[%s233 + $0x60] sm:$0xf]
      %v2580 = vld [vmem:[%s233 + $0x64] sm:$0xf]
      %v2581 = vld [vmem:[%s233 + $0x68] sm:$0xf]
      %v2582 = vld [vmem:[%s233 + $0x6c] sm:$0xf]
      %v2583 = vld [vmem:[%s233 + $0x70] sm:$0xf]
      %v2584 = vld [vmem:[%s233 + $0x74] sm:$0xf]
      %v2585 = vld [vmem:[%s233 + $0x78] sm:$0xf]
      %v2586 = vld [vmem:[%s233 + $0x7c] sm:$0xf]
      %v2587 = vld [vmem:[%s233 + $0x80] sm:$0xf]
      %v2588 = vld [vmem:[%s233 + $0x84] sm:$0xf]
      %v2589 = vld [vmem:[%s233 + $0x88] sm:$0xf]
      %v2590 = vld [vmem:[%s233 + $0x8c] sm:$0xf]
      %v2591 = vld [vmem:[%s233 + $0x90] sm:$0xf]
      %v2592 = vld [vmem:[%s233 + $0x94] sm:$0xf]
      %v2593 = vld [vmem:[%s233 + $0x98] sm:$0xf]
      %v2594 = vld [vmem:[%s233 + $0x9c] sm:$0xf]
      %v2595 = vld [vmem:[%s233 + $0xa0] sm:$0x1]
      %s2596 = scalar_lea.vmem %s237, 12
      %v2597 = vld [vmem:[%s2596] sm:$0x3]
      %v2598 = vld [vmem:[%s233 + $0xa0] sm:$0x3]
      %s2599 = scalar_lea.vmem %s237, 14
      %v2600 = vld [vmem:[%s2599] sm:$0x3]
      %v2638 = vunpack.c.l.b16 %v2559
      %v2639 = vunpack.c.l.b16 %v2560
      %v2640 = vunpack.c.l.b16 %v2561
      %v2641 = vunpack.c.l.b16 %v2562
      %v2642 = vunpack.c.l.b16 %v2563
      %v2643 = vunpack.c.l.b16 %v2564
      %v2644 = vunpack.c.l.b16 %v2565
      %v2645 = vunpack.c.l.b16 %v2566
      %v2646 = vunpack.c.l.b16 %v2567
      %v2647 = vunpack.c.l.b16 %v2568
      %v2648 = vunpack.c.l.b16 %v2569
      %v2649 = vunpack.c.l.b16 %v2570
      %v2650 = vunpack.c.l.b16 %v2571
      %v2651 = vunpack.c.l.b16 %v2572
      %v2652 = vunpack.c.l.b16 %v2573
      %v2653 = vunpack.c.l.b16 %v2574
      %v2654 = vunpack.c.l.b16 %v2575
      %v2655 = vunpack.c.l.b16 %v2576
      %v2656 = vunpack.c.l.b16 %v2577
      %v2657 = vunpack.c.l.b16 %v2578
      %v2658 = vunpack.c.l.b16 %v2579
      %v2659 = vunpack.c.l.b16 %v2580
      %v2660 = vunpack.c.l.b16 %v2581
      %v2661 = vunpack.c.l.b16 %v2582
      %v2662 = vunpack.c.l.b16 %v2583
      %v2663 = vunpack.c.l.b16 %v2584
      %v2664 = vunpack.c.l.b16 %v2585
      %v2665 = vunpack.c.l.b16 %v2586
      %v2666 = vunpack.c.l.b16 %v2587
      %v2667 = vunpack.c.l.b16 %v2588
      %v2668 = vunpack.c.l.b16 %v2589
      %v2669 = vunpack.c.l.b16 %v2590
      %v2670 = vunpack.c.l.b16 %v2591
      %v2671 = vunpack.c.l.b16 %v2592
      %v2672 = vunpack.c.l.b16 %v2593
      %v2673 = vunpack.c.l.b16 %v2594
      %v2674 = vunpack.c.l.b16 %v2598
      %v2675 = vpack.c.b16 %v2639, %v2638
      %v2676 = vpack.c.b16 %v2641, %v2640
      %v2677 = vpack.c.b16 %v2643, %v2642
      %v2678 = vpack.c.b16 %v2645, %v2644
      %v2679 = vpack.c.b16 %v2647, %v2646
      %v2680 = vpack.c.b16 %v2649, %v2648
      %v2681 = vpack.c.b16 %v2651, %v2650
      %v2682 = vpack.c.b16 %v2653, %v2652
      %v2683 = vpack.c.b16 %v2655, %v2654
      %v2684 = vpack.c.b16 %v2657, %v2656
      %v2685 = vpack.c.b16 %v2659, %v2658
      %v2686 = vpack.c.b16 %v2661, %v2660
      %v2687 = vpack.c.b16 %v2663, %v2662
      %v2688 = vpack.c.b16 %v2665, %v2664
      %v2689 = vpack.c.b16 %v2667, %v2666
      %v2690 = vpack.c.b16 %v2669, %v2668
      %v2691 = vpack.c.b16 %v2671, %v2670
      %v2692 = vpack.c.b16 %v2673, %v2672
      %v2693 = vpack.c.b16 %v2674, %v2674
      %vm2694 = vsmask.f32 5376
      %v2696 = vshrl.u32 %v2675, 16
      %v2698 = vrot.slane %v2696, 2
      %v2699 = vshll.u32 %v2675, 16
      %v2701 = vrot.slane %v2699, 3
      %v2702 = vor.u32 %v2698, %v2701
      %v2704 = vshrl.u32 %v2676, 16
      %v2706 = vrot.slane %v2704, 2
      %v2707 = vshll.u32 %v2676, 16
      %v2709 = vrot.slane %v2707, 3
      %v2710 = vor.u32 %v2706, %v2709
      %v2711 = vsel %vm2694, %v2702, %v2710
      %v2713 = vshrl.u32 %v2677, 16
      %v2715 = vrot.slane %v2713, 2
      %v2716 = vshll.u32 %v2677, 16
      %v2718 = vrot.slane %v2716, 3
      %v2719 = vor.u32 %v2715, %v2718
      %v2720 = vsel %vm2694, %v2710, %v2719
      %v2722 = vshrl.u32 %v2678, 16
      %v2724 = vrot.slane %v2722, 2
      %v2725 = vshll.u32 %v2678, 16
      %v2727 = vrot.slane %v2725, 3
      %v2728 = vor.u32 %v2724, %v2727
      %v2729 = vsel %vm2694, %v2719, %v2728
      %v2731 = vshrl.u32 %v2679, 16
      %v2733 = vrot.slane %v2731, 2
      %v2734 = vshll.u32 %v2679, 16
      %v2736 = vrot.slane %v2734, 3
      %v2737 = vor.u32 %v2733, %v2736
      %v2738 = vsel %vm2694, %v2728, %v2737
      %v2740 = vshrl.u32 %v2680, 16
      %v2742 = vrot.slane %v2740, 2
      %v2743 = vshll.u32 %v2680, 16
      %v2745 = vrot.slane %v2743, 3
      %v2746 = vor.u32 %v2742, %v2745
      %v2747 = vsel %vm2694, %v2737, %v2746
      %v2749 = vshrl.u32 %v2681, 16
      %v2751 = vrot.slane %v2749, 2
      %v2752 = vshll.u32 %v2681, 16
      %v2754 = vrot.slane %v2752, 3
      %v2755 = vor.u32 %v2751, %v2754
      %v2756 = vsel %vm2694, %v2746, %v2755
      %v2758 = vshrl.u32 %v2682, 16
      %v2760 = vrot.slane %v2758, 2
      %v2761 = vshll.u32 %v2682, 16
      %v2763 = vrot.slane %v2761, 3
      %v2764 = vor.u32 %v2760, %v2763
      %v2765 = vsel %vm2694, %v2755, %v2764
      %v2767 = vshrl.u32 %v2683, 16
      %v2769 = vrot.slane %v2767, 2
      %v2770 = vshll.u32 %v2683, 16
      %v2772 = vrot.slane %v2770, 3
      %v2773 = vor.u32 %v2769, %v2772
      %v2774 = vsel %vm2694, %v2764, %v2773
      %v2776 = vshrl.u32 %v2684, 16
      %v2778 = vrot.slane %v2776, 2
      %v2779 = vshll.u32 %v2684, 16
      %v2781 = vrot.slane %v2779, 3
      %v2782 = vor.u32 %v2778, %v2781
      %v2783 = vsel %vm2694, %v2773, %v2782
      %v2785 = vshrl.u32 %v2685, 16
      %v2787 = vrot.slane %v2785, 2
      %v2788 = vshll.u32 %v2685, 16
      %v2790 = vrot.slane %v2788, 3
      %v2791 = vor.u32 %v2787, %v2790
      %v2792 = vsel %vm2694, %v2782, %v2791
      %v2794 = vshrl.u32 %v2686, 16
      %v2796 = vrot.slane %v2794, 2
      %v2797 = vshll.u32 %v2686, 16
      %v2799 = vrot.slane %v2797, 3
      %v2800 = vor.u32 %v2796, %v2799
      %v2801 = vsel %vm2694, %v2791, %v2800
      %v2803 = vshrl.u32 %v2687, 16
      %v2805 = vrot.slane %v2803, 2
      %v2806 = vshll.u32 %v2687, 16
      %v2808 = vrot.slane %v2806, 3
      %v2809 = vor.u32 %v2805, %v2808
      %v2810 = vsel %vm2694, %v2800, %v2809
      %v2812 = vshrl.u32 %v2688, 16
      %v2814 = vrot.slane %v2812, 2
      %v2815 = vshll.u32 %v2688, 16
      %v2817 = vrot.slane %v2815, 3
      %v2818 = vor.u32 %v2814, %v2817
      %v2819 = vsel %vm2694, %v2809, %v2818
      %v2821 = vshrl.u32 %v2689, 16
      %v2823 = vrot.slane %v2821, 2
      %v2824 = vshll.u32 %v2689, 16
      %v2826 = vrot.slane %v2824, 3
      %v2827 = vor.u32 %v2823, %v2826
      %v2828 = vsel %vm2694, %v2818, %v2827
      %v2830 = vshrl.u32 %v2690, 16
      %v2832 = vrot.slane %v2830, 2
      %v2833 = vshll.u32 %v2690, 16
      %v2835 = vrot.slane %v2833, 3
      %v2836 = vor.u32 %v2832, %v2835
      %v2837 = vsel %vm2694, %v2827, %v2836
      %v2839 = vshrl.u32 %v2691, 16
      %v2841 = vrot.slane %v2839, 2
      %v2842 = vshll.u32 %v2691, 16
      %v2844 = vrot.slane %v2842, 3
      %v2845 = vor.u32 %v2841, %v2844
      %v2846 = vsel %vm2694, %v2836, %v2845
      %v2848 = vshrl.u32 %v2692, 16
      %v2850 = vrot.slane %v2848, 2
      %v2851 = vshll.u32 %v2692, 16
      %v2853 = vrot.slane %v2851, 3
      %v2854 = vor.u32 %v2850, %v2853
      %v2855 = vsel %vm2694, %v2845, %v2854
      %v2857 = vshrl.u32 %v2693, 16
      %v2859 = vrot.slane %v2857, 2
      %v2860 = vshll.u32 %v2693, 16
      %v2862 = vrot.slane %v2860, 3
      %v2863 = vor.u32 %v2859, %v2862
      %v2864 = vsel %vm2694, %v2854, %v2863
      %v2866 = vsel %vm524, %v2711, 0
      %v2869 = vsel %vm524, %v2720, 0
      %v2872 = vsel %vm524, %v2729, 0
      %v2875 = vsel %vm524, %v2738, 0
      %v2878 = vsel %vm524, %v2747, 0
      %v2881 = vsel %vm524, %v2756, 0
      %v2884 = vsel %vm524, %v2765, 0
      %v2887 = vsel %vm524, %v2774, 0
      %v2890 = vsel %vm524, %v2783, 0
      %v2893 = vsel %vm524, %v2792, 0
      %v2896 = vsel %vm524, %v2801, 0
      %v2899 = vsel %vm524, %v2810, 0
      %v2902 = vsel %vm524, %v2819, 0
      %v2905 = vsel %vm524, %v2828, 0
      %v2908 = vsel %vm524, %v2837, 0
      %v2911 = vsel %vm524, %v2846, 0
      %v2914 = vsel %vm524, %v2855, 0
      %v2917 = vsel %vm524, %v2864, 0
      %v2920 = vand.u32 %v2600, %v582
      %2922 = vmatprep.subr.bf16.mxu0 0
      %2923 = vmatpush1.bf16.msra.mxu0 %v2920
      %2924 = vmatprep.subr.bf16.mxu0 0
      %2925 = vmatpush1.bf16.msra.mxu0 0
      %2926 = vmatprep.subr.bf16.mxu0 0
      %2927 = vmatpush1.bf16.msra.mxu0 0
      %2928 = vmatprep.subr.bf16.mxu0 0
      %2929 = vmatpush1.bf16.msra.mxu0 0
      %2930 = vmatprep.subr.bf16.mxu0 0
      %2931 = vmatpush1.bf16.msra.mxu0 0
      %2932 = vmatprep.subr.bf16.mxu0 0
      %2933 = vmatpush1.bf16.msra.mxu0 0
      %2934 = vmatprep.subr.bf16.mxu0 0
      %2935 = vmatpush1.bf16.msra.mxu0 0
      %2936 = vmatprep.subr.bf16.mxu0 0
      %2937 = vmatpush1.bf16.msra.mxu0 0
      %2938 = vmatprep.subr.bf16.mxu0 0
      %2939 = vmatpush1.bf16.msra.mxu0 0
      %2940 = vmatprep.subr.bf16.mxu0 0
      %2941 = vmatpush1.bf16.msra.mxu0 0
      %2942 = vmatprep.subr.bf16.mxu0 0
      %2943 = vmatpush1.bf16.msra.mxu0 0
      %2944 = vmatprep.subr.bf16.mxu0 0
      %2945 = vmatpush1.bf16.msra.mxu0 0
      %2946 = vmatprep.subr.bf16.mxu0 0
      %2947 = vmatpush1.bf16.msra.mxu0 0
      %2948 = vmatprep.subr.bf16.mxu0 0
      %2949 = vmatpush1.bf16.msra.mxu0 0
      %2950 = vmatprep.subr.bf16.mxu0 0
      %2951 = vmatpush1.bf16.msra.mxu0 0
      %2952 = vmatprep.subr.bf16.mxu0 0
      %2953 = vmatpush1.bf16.msra.mxu0 0
      %2954 = vmatprep.mubr.bf16.mxu0 0
      %2955 = vmatmul.mubr.bf16.gmra.mrb[0].mxu0 %v2866
      %v2956 = vpop.f32.mrb[0].mxu0
      %v2957 = vadd.f32 0.0, %v2956
      %v2958 = vpop.f32.mrb[0].mxu0
      %v2959 = vpop.f32.mrb[0].mxu0
      %v2960 = vadd.f32 0.0, %v2959
      %v2961 = vpop.f32.mrb[0].mxu0
      %2962 = vmatprep.mubr.bf16.mxu0 0
      %2963 = vmatmul.mubr.bf16.gmra.mrb[0].mxu0 %v2869
      %v2964 = vpop.f32.mrb[0].mxu0
      %v2965 = vadd.f32 0.0, %v2964
      %v2966 = vpop.f32.mrb[0].mxu0
      %v2967 = vpop.f32.mrb[0].mxu0
      %v2968 = vadd.f32 0.0, %v2967
      %v2969 = vpop.f32.mrb[0].mxu0
      %2970 = vmatprep.mubr.bf16.mxu0 0
      %2971 = vmatmul.mubr.bf16.gmra.mrb[0].mxu0 %v2872
      %v2972 = vpop.f32.mrb[0].mxu0
      %v2973 = vadd.f32 0.0, %v2972
      %v2974 = vpop.f32.mrb[0].mxu0
      %v2975 = vpop.f32.mrb[0].mxu0
      %v2976 = vadd.f32 0.0, %v2975
      %v2977 = vpop.f32.mrb[0].mxu0
      %2978 = vmatprep.mubr.bf16.mxu0 0
      %2979 = vmatmul.mubr.bf16.gmra.mrb[0].mxu0 %v2875
      %v2980 = vpop.f32.mrb[0].mxu0
      %v2981 = vadd.f32 0.0, %v2980
      %v2982 = vpop.f32.mrb[0].mxu0
      %v2983 = vpop.f32.mrb[0].mxu0
      %v2984 = vadd.f32 0.0, %v2983
      %v2985 = vpop.f32.mrb[0].mxu0
      %2986 = vmatprep.mubr.bf16.mxu0 0
      %2987 = vmatmul.mubr.bf16.gmra.mrb[0].mxu0 %v2878
      %v2988 = vpop.f32.mrb[0].mxu0
      %v2989 = vadd.f32 0.0, %v2988
      %v2990 = vpop.f32.mrb[0].mxu0
      %v2991 = vpop.f32.mrb[0].mxu0
      %v2992 = vadd.f32 0.0, %v2991
      %v2993 = vpop.f32.mrb[0].mxu0
      %2994 = vmatprep.mubr.bf16.mxu0 0
      %2995 = vmatmul.mubr.bf16.gmra.mrb[0].mxu0 %v2881
      %v2996 = vpop.f32.mrb[0].mxu0
      %v2997 = vadd.f32 0.0, %v2996
      %v2998 = vpop.f32.mrb[0].mxu0
      %v2999 = vpop.f32.mrb[0].mxu0
      %v3000 = vadd.f32 0.0, %v2999
      %v3001 = vpop.f32.mrb[0].mxu0
      %3002 = vmatprep.mubr.bf16.mxu0 0
      %3003 = vmatmul.mubr.bf16.gmra.mrb[0].mxu0 %v2884
      %v3004 = vpop.f32.mrb[0].mxu0
      %v3005 = vadd.f32 0.0, %v3004
      %v3006 = vpop.f32.mrb[0].mxu0
      %v3007 = vpop.f32.mrb[0].mxu0
      %v3008 = vadd.f32 0.0, %v3007
      %v3009 = vpop.f32.mrb[0].mxu0
      %3010 = vmatprep.mubr.bf16.mxu0 0
      %3011 = vmatmul.mubr.bf16.gmra.mrb[0].mxu0 %v2887
      %v3012 = vpop.f32.mrb[0].mxu0
      %v3013 = vadd.f32 0.0, %v3012
      %v3014 = vpop.f32.mrb[0].mxu0
      %v3015 = vpop.f32.mrb[0].mxu0
      %v3016 = vadd.f32 0.0, %v3015
      %v3017 = vpop.f32.mrb[0].mxu0
      %3018 = vmatprep.mubr.bf16.mxu0 0
      %3019 = vmatmul.mubr.bf16.gmra.mrb[0].mxu0 %v2890
      %v3020 = vpop.f32.mrb[0].mxu0
      %v3021 = vadd.f32 0.0, %v3020
      %v3022 = vpop.f32.mrb[0].mxu0
      %v3023 = vpop.f32.mrb[0].mxu0
      %v3024 = vadd.f32 0.0, %v3023
      %v3025 = vpop.f32.mrb[0].mxu0
      %3026 = vmatprep.mubr.bf16.mxu0 0
      %3027 = vmatmul.mubr.bf16.gmra.mrb[0].mxu0 %v2893
      %v3028 = vpop.f32.mrb[0].mxu0
      %v3029 = vadd.f32 0.0, %v3028
      %v3030 = vpop.f32.mrb[0].mxu0
      %v3031 = vpop.f32.mrb[0].mxu0
      %v3032 = vadd.f32 0.0, %v3031
      %v3033 = vpop.f32.mrb[0].mxu0
      %3034 = vmatprep.mubr.bf16.mxu0 0
      %3035 = vmatmul.mubr.bf16.gmra.mrb[0].mxu0 %v2896
      %v3036 = vpop.f32.mrb[0].mxu0
      %v3037 = vadd.f32 0.0, %v3036
      %v3038 = vpop.f32.mrb[0].mxu0
      %v3039 = vpop.f32.mrb[0].mxu0
      %v3040 = vadd.f32 0.0, %v3039
      %v3041 = vpop.f32.mrb[0].mxu0
      %3042 = vmatprep.mubr.bf16.mxu0 0
      %3043 = vmatmul.mubr.bf16.gmra.mrb[0].mxu0 %v2899
      %v3044 = vpop.f32.mrb[0].mxu0
      %v3045 = vadd.f32 0.0, %v3044
      %v3046 = vpop.f32.mrb[0].mxu0
      %v3047 = vpop.f32.mrb[0].mxu0
      %v3048 = vadd.f32 0.0, %v3047
      %v3049 = vpop.f32.mrb[0].mxu0
      %3050 = vmatprep.mubr.bf16.mxu0 0
      %3051 = vmatmul.mubr.bf16.gmra.mrb[0].mxu0 %v2902
      %v3052 = vpop.f32.mrb[0].mxu0
      %v3053 = vadd.f32 0.0, %v3052
      %v3054 = vpop.f32.mrb[0].mxu0
      %v3055 = vpop.f32.mrb[0].mxu0
      %v3056 = vadd.f32 0.0, %v3055
      %v3057 = vpop.f32.mrb[0].mxu0
      %3058 = vmatprep.mubr.bf16.mxu0 0
      %3059 = vmatmul.mubr.bf16.gmra.mrb[0].mxu0 %v2905
      %v3060 = vpop.f32.mrb[0].mxu0
      %v3061 = vadd.f32 0.0, %v3060
      %v3062 = vpop.f32.mrb[0].mxu0
      %v3063 = vpop.f32.mrb[0].mxu0
      %v3064 = vadd.f32 0.0, %v3063
      %v3065 = vpop.f32.mrb[0].mxu0
      %3066 = vmatprep.mubr.bf16.mxu0 0
      %3067 = vmatmul.mubr.bf16.gmra.mrb[0].mxu0 %v2908
      %v3068 = vpop.f32.mrb[0].mxu0
      %v3069 = vadd.f32 0.0, %v3068
      %v3070 = vpop.f32.mrb[0].mxu0
      %v3071 = vpop.f32.mrb[0].mxu0
      %v3072 = vadd.f32 0.0, %v3071
      %v3073 = vpop.f32.mrb[0].mxu0
      %3074 = vmatprep.mubr.bf16.mxu0 0
      %3075 = vmatmul.mubr.bf16.gmra.mrb[0].mxu0 %v2911
      %v3076 = vpop.f32.mrb[0].mxu0
      %v3077 = vadd.f32 0.0, %v3076
      %v3078 = vpop.f32.mrb[0].mxu0
      %v3079 = vpop.f32.mrb[0].mxu0
      %v3080 = vadd.f32 0.0, %v3079
      %v3081 = vpop.f32.mrb[0].mxu0
      %3082 = vmatprep.mubr.bf16.mxu0 0
      %3083 = vmatmul.mubr.bf16.gmra.mrb[0].mxu0 %v2914
      %v3084 = vpop.f32.mrb[0].mxu0
      %v3085 = vadd.f32 0.0, %v3084
      %v3086 = vpop.f32.mrb[0].mxu0
      %v3087 = vpop.f32.mrb[0].mxu0
      %v3088 = vadd.f32 0.0, %v3087
      %v3089 = vpop.f32.mrb[0].mxu0
      %3090 = vmatprep.mubr.bf16.mxu0 0
      %3091 = vmatmul.mubr.bf16.gmra.mrb[0].mxu0 %v2917
      %v3092 = vpop.f32.mrb[0].mxu0
      %v3093 = vadd.f32 0.0, %v3092
      %v3094 = vpop.f32.mrb[0].mxu0
      %v3095 = vpop.f32.mrb[0].mxu0
      %v3096 = vadd.f32 0.0, %v3095
      %v3097 = vpop.f32.mrb[0].mxu0
      %3098 = vdwg.mxu0
      %v3100 = vunpack.c.l.b16 %v2595
      %v3101 = vpack.c.b16 %v3100, %v3100
      %v3102 = vrot.slane %v2675, 2
      %v3103 = vrot.slane %v2676, 2
      %v3104 = vsel %vm2143, %v3102, %v3103
      %v3105 = vrot.slane %v2677, 2
      %v3106 = vsel %vm2143, %v3103, %v3105
      %v3107 = vrot.slane %v2678, 2
      %v3108 = vsel %vm2143, %v3105, %v3107
      %v3109 = vrot.slane %v2679, 2
      %v3110 = vsel %vm2143, %v3107, %v3109
      %v3111 = vrot.slane %v2680, 2
      %v3112 = vsel %vm2143, %v3109, %v3111
      %v3113 = vrot.slane %v2681, 2
      %v3114 = vsel %vm2143, %v3111, %v3113
      %v3115 = vrot.slane %v2682, 2
      %v3116 = vsel %vm2143, %v3113, %v3115
      %v3117 = vrot.slane %v2683, 2
      %v3118 = vsel %vm2143, %v3115, %v3117
      %v3119 = vrot.slane %v2684, 2
      %v3120 = vsel %vm2143, %v3117, %v3119
      %v3121 = vrot.slane %v2685, 2
      %v3122 = vsel %vm2143, %v3119, %v3121
      %v3123 = vrot.slane %v2686, 2
      %v3124 = vsel %vm2143, %v3121, %v3123
      %v3125 = vrot.slane %v2687, 2
      %v3126 = vsel %vm2143, %v3123, %v3125
      %v3127 = vrot.slane %v2688, 2
      %v3128 = vsel %vm2143, %v3125, %v3127
      %v3129 = vrot.slane %v2689, 2
      %v3130 = vsel %vm2143, %v3127, %v3129
      %v3131 = vrot.slane %v2690, 2
      %v3132 = vsel %vm2143, %v3129, %v3131
      %v3133 = vrot.slane %v2691, 2
      %v3134 = vsel %vm2143, %v3131, %v3133
      %v3135 = vrot.slane %v2692, 2
      %v3136 = vsel %vm2143, %v3133, %v3135
      %v3137 = vrot.slane %v3101, 2
      %v3138 = vsel %vm2143, %v3135, %v3137
      %v3140 = vsel %vm524, %v3104, 0
      %v3143 = vsel %vm524, %v3106, 0
      %v3146 = vsel %vm524, %v3108, 0
      %v3149 = vsel %vm524, %v3110, 0
      %v3152 = vsel %vm524, %v3112, 0
      %v3155 = vsel %vm524, %v3114, 0
      %v3158 = vsel %vm524, %v3116, 0
      %v3161 = vsel %vm524, %v3118, 0
      %v3164 = vsel %vm524, %v3120, 0
      %v3167 = vsel %vm524, %v3122, 0
      %v3170 = vsel %vm524, %v3124, 0
      %v3173 = vsel %vm524, %v3126, 0
      %v3176 = vsel %vm524, %v3128, 0
      %v3179 = vsel %vm524, %v3130, 0
      %v3182 = vsel %vm524, %v3132, 0
      %v3185 = vsel %vm524, %v3134, 0
      %v3188 = vsel %vm524, %v3136, 0
      %v3191 = vsel %vm524, %v3138, 0
      %v3194 = vand.u32 %v2597, %v582
      %3196 = vmatprep.subr.bf16.mxu0 0
      %3197 = vmatpush1.bf16.msra.mxu0 %v3194
      %3198 = vmatprep.subr.bf16.mxu0 0
      %3199 = vmatpush1.bf16.msra.mxu0 0
      %3200 = vmatprep.subr.bf16.mxu0 0
      %3201 = vmatpush1.bf16.msra.mxu0 0
      %3202 = vmatprep.subr.bf16.mxu0 0
      %3203 = vmatpush1.bf16.msra.mxu0 0
      %3204 = vmatprep.subr.bf16.mxu0 0
      %3205 = vmatpush1.bf16.msra.mxu0 0
      %3206 = vmatprep.subr.bf16.mxu0 0
      %3207 = vmatpush1.bf16.msra.mxu0 0
      %3208 = vmatprep.subr.bf16.mxu0 0
      %3209 = vmatpush1.bf16.msra.mxu0 0
      %3210 = vmatprep.subr.bf16.mxu0 0
      %3211 = vmatpush1.bf16.msra.mxu0 0
      %3212 = vmatprep.subr.bf16.mxu0 0
      %3213 = vmatpush1.bf16.msra.mxu0 0
      %3214 = vmatprep.subr.bf16.mxu0 0
      %3215 = vmatpush1.bf16.msra.mxu0 0
      %3216 = vmatprep.subr.bf16.mxu0 0
      %3217 = vmatpush1.bf16.msra.mxu0 0
      %3218 = vmatprep.subr.bf16.mxu0 0
      %3219 = vmatpush1.bf16.msra.mxu0 0
      %3220 = vmatprep.subr.bf16.mxu0 0
      %3221 = vmatpush1.bf16.msra.mxu0 0
      %3222 = vmatprep.subr.bf16.mxu0 0
      %3223 = vmatpush1.bf16.msra.mxu0 0
      %3224 = vmatprep.subr.bf16.mxu0 0
      %3225 = vmatpush1.bf16.msra.mxu0 0
      %3226 = vmatprep.subr.bf16.mxu0 0
      %3227 = vmatpush1.bf16.msra.mxu0 0
      %3228 = vmatprep.mubr.bf16.mxu0 0
      %3229 = vmatmul.mubr.bf16.gmra.mrb[0].mxu0 %v3140
      %v3230 = vpop.f32.mrb[0].mxu0
      %v3231 = vadd.f32 %v2957, %v3230
      %v3232 = vpop.f32.mrb[0].mxu0
      %v3233 = vpop.f32.mrb[0].mxu0
      %v3234 = vadd.f32 %v2960, %v3233
      %v3235 = vpop.f32.mrb[0].mxu0
      %3236 = vmatprep.mubr.bf16.mxu0 0
      %3237 = vmatmul.mubr.bf16.gmra.mrb[0].mxu0 %v3143
      %v3238 = vpop.f32.mrb[0].mxu0
      %v3239 = vadd.f32 %v2965, %v3238
      %v3240 = vpop.f32.mrb[0].mxu0
      %v3241 = vpop.f32.mrb[0].mxu0
      %v3242 = vadd.f32 %v2968, %v3241
      %v3243 = vpop.f32.mrb[0].mxu0
      %3244 = vmatprep.mubr.bf16.mxu0 0
      %3245 = vmatmul.mubr.bf16.gmra.mrb[0].mxu0 %v3146
      %v3246 = vpop.f32.mrb[0].mxu0
      %v3247 = vadd.f32 %v2973, %v3246
      %v3248 = vpop.f32.mrb[0].mxu0
      %v3249 = vpop.f32.mrb[0].mxu0
      %v3250 = vadd.f32 %v2976, %v3249
      %v3251 = vpop.f32.mrb[0].mxu0
      %3252 = vmatprep.mubr.bf16.mxu0 0
      %3253 = vmatmul.mubr.bf16.gmra.mrb[0].mxu0 %v3149
      %v3254 = vpop.f32.mrb[0].mxu0
      %v3255 = vadd.f32 %v2981, %v3254
      %v3256 = vpop.f32.mrb[0].mxu0
      %v3257 = vpop.f32.mrb[0].mxu0
      %v3258 = vadd.f32 %v2984, %v3257
      %v3259 = vpop.f32.mrb[0].mxu0
      %3260 = vmatprep.mubr.bf16.mxu0 0
      %3261 = vmatmul.mubr.bf16.gmra.mrb[0].mxu0 %v3152
      %v3262 = vpop.f32.mrb[0].mxu0
      %v3263 = vadd.f32 %v2989, %v3262
      %v3264 = vpop.f32.mrb[0].mxu0
      %v3265 = vpop.f32.mrb[0].mxu0
      %v3266 = vadd.f32 %v2992, %v3265
      %v3267 = vpop.f32.mrb[0].mxu0
      %3268 = vmatprep.mubr.bf16.mxu0 0
      %3269 = vmatmul.mubr.bf16.gmra.mrb[0].mxu0 %v3155
      %v3270 = vpop.f32.mrb[0].mxu0
      %v3271 = vadd.f32 %v2997, %v3270
      %v3272 = vpop.f32.mrb[0].mxu0
      %v3273 = vpop.f32.mrb[0].mxu0
      %v3274 = vadd.f32 %v3000, %v3273
      %v3275 = vpop.f32.mrb[0].mxu0
      %3276 = vmatprep.mubr.bf16.mxu0 0
      %3277 = vmatmul.mubr.bf16.gmra.mrb[0].mxu0 %v3158
      %v3278 = vpop.f32.mrb[0].mxu0
      %v3279 = vadd.f32 %v3005, %v3278
      %v3280 = vpop.f32.mrb[0].mxu0
      %v3281 = vpop.f32.mrb[0].mxu0
      %v3282 = vadd.f32 %v3008, %v3281
      %v3283 = vpop.f32.mrb[0].mxu0
      %3284 = vmatprep.mubr.bf16.mxu0 0
      %3285 = vmatmul.mubr.bf16.gmra.mrb[0].mxu0 %v3161
      %v3286 = vpop.f32.mrb[0].mxu0
      %v3287 = vadd.f32 %v3013, %v3286
      %v3288 = vpop.f32.mrb[0].mxu0
      %v3289 = vpop.f32.mrb[0].mxu0
      %v3290 = vadd.f32 %v3016, %v3289
      %v3291 = vpop.f32.mrb[0].mxu0
      %3292 = vmatprep.mubr.bf16.mxu0 0
      %3293 = vmatmul.mubr.bf16.gmra.mrb[0].mxu0 %v3164
      %v3294 = vpop.f32.mrb[0].mxu0
      %v3295 = vadd.f32 %v3021, %v3294
      %v3296 = vpop.f32.mrb[0].mxu0
      %v3297 = vpop.f32.mrb[0].mxu0
      %v3298 = vadd.f32 %v3024, %v3297
      %v3299 = vpop.f32.mrb[0].mxu0
      %3300 = vmatprep.mubr.bf16.mxu0 0
      %3301 = vmatmul.mubr.bf16.gmra.mrb[0].mxu0 %v3167
      %v3302 = vpop.f32.mrb[0].mxu0
      %v3303 = vadd.f32 %v3029, %v3302
      %v3304 = vpop.f32.mrb[0].mxu0
      %v3305 = vpop.f32.mrb[0].mxu0
      %v3306 = vadd.f32 %v3032, %v3305
      %v3307 = vpop.f32.mrb[0].mxu0
      %3308 = vmatprep.mubr.bf16.mxu0 0
      %3309 = vmatmul.mubr.bf16.gmra.mrb[0].mxu0 %v3170
      %v3310 = vpop.f32.mrb[0].mxu0
      %v3311 = vadd.f32 %v3037, %v3310
      %v3312 = vpop.f32.mrb[0].mxu0
      %v3313 = vpop.f32.mrb[0].mxu0
      %v3314 = vadd.f32 %v3040, %v3313
      %v3315 = vpop.f32.mrb[0].mxu0
      %3316 = vmatprep.mubr.bf16.mxu0 0
      %3317 = vmatmul.mubr.bf16.gmra.mrb[0].mxu0 %v3173
      %v3318 = vpop.f32.mrb[0].mxu0
      %v3319 = vadd.f32 %v3045, %v3318
      %v3320 = vpop.f32.mrb[0].mxu0
      %v3321 = vpop.f32.mrb[0].mxu0
      %v3322 = vadd.f32 %v3048, %v3321
      %v3323 = vpop.f32.mrb[0].mxu0
      %3324 = vmatprep.mubr.bf16.mxu0 0
      %3325 = vmatmul.mubr.bf16.gmra.mrb[0].mxu0 %v3176
      %v3326 = vpop.f32.mrb[0].mxu0
      %v3327 = vadd.f32 %v3053, %v3326
      %v3328 = vpop.f32.mrb[0].mxu0
      %v3329 = vpop.f32.mrb[0].mxu0
      %v3330 = vadd.f32 %v3056, %v3329
      %v3331 = vpop.f32.mrb[0].mxu0
      %3332 = vmatprep.mubr.bf16.mxu0 0
      %3333 = vmatmul.mubr.bf16.gmra.mrb[0].mxu0 %v3179
      %v3334 = vpop.f32.mrb[0].mxu0
      %v3335 = vadd.f32 %v3061, %v3334
      %v3336 = vpop.f32.mrb[0].mxu0
      %v3337 = vpop.f32.mrb[0].mxu0
      %v3338 = vadd.f32 %v3064, %v3337
      %v3339 = vpop.f32.mrb[0].mxu0
      %3340 = vmatprep.mubr.bf16.mxu0 0
      %3341 = vmatmul.mubr.bf16.gmra.mrb[0].mxu0 %v3182
      %v3342 = vpop.f32.mrb[0].mxu0
      %v3343 = vadd.f32 %v3069, %v3342
      %v3344 = vpop.f32.mrb[0].mxu0
      %v3345 = vpop.f32.mrb[0].mxu0
      %v3346 = vadd.f32 %v3072, %v3345
      %v3347 = vpop.f32.mrb[0].mxu0
      %3348 = vmatprep.mubr.bf16.mxu0 0
      %3349 = vmatmul.mubr.bf16.gmra.mrb[0].mxu0 %v3185
      %v3350 = vpop.f32.mrb[0].mxu0
      %v3351 = vadd.f32 %v3077, %v3350
      %v3352 = vpop.f32.mrb[0].mxu0
      %v3353 = vpop.f32.mrb[0].mxu0
      %v3354 = vadd.f32 %v3080, %v3353
      %v3355 = vpop.f32.mrb[0].mxu0
      %3356 = vmatprep.mubr.bf16.mxu0 0
      %3357 = vmatmul.mubr.bf16.gmra.mrb[0].mxu0 %v3188
      %v3358 = vpop.f32.mrb[0].mxu0
      %v3359 = vadd.f32 %v3085, %v3358
      %v3360 = vpop.f32.mrb[0].mxu0
      %v3361 = vpop.f32.mrb[0].mxu0
      %v3362 = vadd.f32 %v3088, %v3361
      %v3363 = vpop.f32.mrb[0].mxu0
      %3364 = vmatprep.mubr.bf16.mxu0 0
      %3365 = vmatmul.mubr.bf16.gmra.mrb[0].mxu0 %v3191
      %v3366 = vpop.f32.mrb[0].mxu0
      %v3367 = vadd.f32 %v3093, %v3366
      %v3368 = vpop.f32.mrb[0].mxu0
      %v3369 = vpop.f32.mrb[0].mxu0
      %v3370 = vadd.f32 %v3096, %v3369
      %v3371 = vpop.f32.mrb[0].mxu0
      %3372 = vdwg.mxu0
      %v3373 = vld [vmem:[%s233 + $0x10] sm:$0x8]
      %s3374 = scalar_lea.vmem %s237, 16
      %v3375 = vld [vmem:[%s3374] sm:$0x3]
      %v3377 = vunpack.c.l.b16 %v3373
      %v3378 = vpack.c.b16 %v2639, %v3377
      %vm3379 = vcmask 1044480
      %v3380 = vrot.slane %v3378, 3
      %v3381 = vrot.slane %v2676, 3
      %v3382 = vsel %vm3379, %v3380, %v3381
      %v3383 = vrot.slane %v2677, 3
      %v3384 = vsel %vm3379, %v3381, %v3383
      %v3385 = vrot.slane %v2678, 3
      %v3386 = vsel %vm3379, %v3383, %v3385
      %v3387 = vrot.slane %v2679, 3
      %v3388 = vsel %vm3379, %v3385, %v3387
      %v3389 = vrot.slane %v2680, 3
      %v3390 = vsel %vm3379, %v3387, %v3389
      %v3391 = vrot.slane %v2681, 3
      %v3392 = vsel %vm3379, %v3389, %v3391
      %v3393 = vrot.slane %v2682, 3
      %v3394 = vsel %vm3379, %v3391, %v3393
      %v3395 = vrot.slane %v2683, 3
      %v3396 = vsel %vm3379, %v3393, %v3395
      %v3397 = vrot.slane %v2684, 3
      %v3398 = vsel %vm3379, %v3395, %v3397
      %v3399 = vrot.slane %v2685, 3
      %v3400 = vsel %vm3379, %v3397, %v3399
      %v3401 = vrot.slane %v2686, 3
      %v3402 = vsel %vm3379, %v3399, %v3401
      %v3403 = vrot.slane %v2687, 3
      %v3404 = vsel %vm3379, %v3401, %v3403
      %v3405 = vrot.slane %v2688, 3
      %v3406 = vsel %vm3379, %v3403, %v3405
      %v3407 = vrot.slane %v2689, 3
      %v3408 = vsel %vm3379, %v3405, %v3407
      %v3409 = vrot.slane %v2690, 3
      %v3410 = vsel %vm3379, %v3407, %v3409
      %v3411 = vrot.slane %v2691, 3
      %v3412 = vsel %vm3379, %v3409, %v3411
      %v3413 = vrot.slane %v2692, 3
      %v3414 = vsel %vm3379, %v3411, %v3413
      %v3415 = vrot.slane %v2693, 3
      %v3416 = vsel %vm3379, %v3413, %v3415
      %v3418 = vsel %vm524, %v3382, 0
      %v3421 = vsel %vm524, %v3384, 0
      %v3424 = vsel %vm524, %v3386, 0
      %v3427 = vsel %vm524, %v3388, 0
      %v3430 = vsel %vm524, %v3390, 0
      %v3433 = vsel %vm524, %v3392, 0
      %v3436 = vsel %vm524, %v3394, 0
      %v3439 = vsel %vm524, %v3396, 0
      %v3442 = vsel %vm524, %v3398, 0
      %v3445 = vsel %vm524, %v3400, 0
      %v3448 = vsel %vm524, %v3402, 0
      %v3451 = vsel %vm524, %v3404, 0
      %v3454 = vsel %vm524, %v3406, 0
      %v3457 = vsel %vm524, %v3408, 0
      %v3460 = vsel %vm524, %v3410, 0
      %v3463 = vsel %vm524, %v3412, 0
      %v3466 = vsel %vm524, %v3414, 0
      %v3469 = vsel %vm524, %v3416, 0
      %v3472 = vand.u32 %v3375, %v582
      %3474 = vmatprep.subr.bf16.mxu0 0
      %3475 = vmatpush1.bf16.msra.mxu0 %v3472
      %3476 = vmatprep.subr.bf16.mxu0 0
      %3477 = vmatpush1.bf16.msra.mxu0 0
      %3478 = vmatprep.subr.bf16.mxu0 0
      %3479 = vmatpush1.bf16.msra.mxu0 0
      %3480 = vmatprep.subr.bf16.mxu0 0
      %3481 = vmatpush1.bf16.msra.mxu0 0
      %3482 = vmatprep.subr.bf16.mxu0 0
      %3483 = vmatpush1.bf16.msra.mxu0 0
      %3484 = vmatprep.subr.bf16.mxu0 0
      %3485 = vmatpush1.bf16.msra.mxu0 0
      %3486 = vmatprep.subr.bf16.mxu0 0
      %3487 = vmatpush1.bf16.msra.mxu0 0
      %3488 = vmatprep.subr.bf16.mxu0 0
      %3489 = vmatpush1.bf16.msra.mxu0 0
      %3490 = vmatprep.subr.bf16.mxu0 0
      %3491 = vmatpush1.bf16.msra.mxu0 0
      %3492 = vmatprep.subr.bf16.mxu0 0
      %3493 = vmatpush1.bf16.msra.mxu0 0
      %3494 = vmatprep.subr.bf16.mxu0 0
      %3495 = vmatpush1.bf16.msra.mxu0 0
      %3496 = vmatprep.subr.bf16.mxu0 0
      %3497 = vmatpush1.bf16.msra.mxu0 0
      %3498 = vmatprep.subr.bf16.mxu0 0
      %3499 = vmatpush1.bf16.msra.mxu0 0
      %3500 = vmatprep.subr.bf16.mxu0 0
      %3501 = vmatpush1.bf16.msra.mxu0 0
      %3502 = vmatprep.subr.bf16.mxu0 0
      %3503 = vmatpush1.bf16.msra.mxu0 0
      %3504 = vmatprep.subr.bf16.mxu0 0
      %3505 = vmatpush1.bf16.msra.mxu0 0
      %3506 = vmatprep.mubr.bf16.mxu0 0
      %3507 = vmatmul.mubr.bf16.gmra.mrb[0].mxu0 %v3418
      %v3508 = vpop.f32.mrb[0].mxu0
      %v3509 = vadd.f32 0.0, %v3508
      %v3510 = vpop.f32.mrb[0].mxu0
      %v3511 = vpop.f32.mrb[0].mxu0
      %v3512 = vadd.f32 0.0, %v3511
      %v3513 = vpop.f32.mrb[0].mxu0
      %3514 = vmatprep.mubr.bf16.mxu0 0
      %3515 = vmatmul.mubr.bf16.gmra.mrb[0].mxu0 %v3421
      %v3516 = vpop.f32.mrb[0].mxu0
      %v3517 = vadd.f32 0.0, %v3516
      %v3518 = vpop.f32.mrb[0].mxu0
      %v3519 = vpop.f32.mrb[0].mxu0
      %v3520 = vadd.f32 0.0, %v3519
      %v3521 = vpop.f32.mrb[0].mxu0
      %3522 = vmatprep.mubr.bf16.mxu0 0
      %3523 = vmatmul.mubr.bf16.gmra.mrb[0].mxu0 %v3424
      %v3524 = vpop.f32.mrb[0].mxu0
      %v3525 = vadd.f32 0.0, %v3524
      %v3526 = vpop.f32.mrb[0].mxu0
      %v3527 = vpop.f32.mrb[0].mxu0
      %v3528 = vadd.f32 0.0, %v3527
      %v3529 = vpop.f32.mrb[0].mxu0
      %3530 = vmatprep.mubr.bf16.mxu0 0
      %3531 = vmatmul.mubr.bf16.gmra.mrb[0].mxu0 %v3427
      %v3532 = vpop.f32.mrb[0].mxu0
      %v3533 = vadd.f32 0.0, %v3532
      %v3534 = vpop.f32.mrb[0].mxu0
      %v3535 = vpop.f32.mrb[0].mxu0
      %v3536 = vadd.f32 0.0, %v3535
      %v3537 = vpop.f32.mrb[0].mxu0
      %3538 = vmatprep.mubr.bf16.mxu0 0
      %3539 = vmatmul.mubr.bf16.gmra.mrb[0].mxu0 %v3430
      %v3540 = vpop.f32.mrb[0].mxu0
      %v3541 = vadd.f32 0.0, %v3540
      %v3542 = vpop.f32.mrb[0].mxu0
      %v3543 = vpop.f32.mrb[0].mxu0
      %v3544 = vadd.f32 0.0, %v3543
      %v3545 = vpop.f32.mrb[0].mxu0
      %3546 = vmatprep.mubr.bf16.mxu0 0
      %3547 = vmatmul.mubr.bf16.gmra.mrb[0].mxu0 %v3433
      %v3548 = vpop.f32.mrb[0].mxu0
      %v3549 = vadd.f32 0.0, %v3548
      %v3550 = vpop.f32.mrb[0].mxu0
      %v3551 = vpop.f32.mrb[0].mxu0
      %v3552 = vadd.f32 0.0, %v3551
      %v3553 = vpop.f32.mrb[0].mxu0
      %3554 = vmatprep.mubr.bf16.mxu0 0
      %3555 = vmatmul.mubr.bf16.gmra.mrb[0].mxu0 %v3436
      %v3556 = vpop.f32.mrb[0].mxu0
      %v3557 = vadd.f32 0.0, %v3556
      %v3558 = vpop.f32.mrb[0].mxu0
      %v3559 = vpop.f32.mrb[0].mxu0
      %v3560 = vadd.f32 0.0, %v3559
      %v3561 = vpop.f32.mrb[0].mxu0
      %3562 = vmatprep.mubr.bf16.mxu0 0
      %3563 = vmatmul.mubr.bf16.gmra.mrb[0].mxu0 %v3439
      %v3564 = vpop.f32.mrb[0].mxu0
      %v3565 = vadd.f32 0.0, %v3564
      %v3566 = vpop.f32.mrb[0].mxu0
      %v3567 = vpop.f32.mrb[0].mxu0
      %v3568 = vadd.f32 0.0, %v3567
      %v3569 = vpop.f32.mrb[0].mxu0
      %3570 = vmatprep.mubr.bf16.mxu0 0
      %3571 = vmatmul.mubr.bf16.gmra.mrb[0].mxu0 %v3442
      %v3572 = vpop.f32.mrb[0].mxu0
      %v3573 = vadd.f32 0.0, %v3572
      %v3574 = vpop.f32.mrb[0].mxu0
      %v3575 = vpop.f32.mrb[0].mxu0
      %v3576 = vadd.f32 0.0, %v3575
      %v3577 = vpop.f32.mrb[0].mxu0
      %3578 = vmatprep.mubr.bf16.mxu0 0
      %3579 = vmatmul.mubr.bf16.gmra.mrb[0].mxu0 %v3445
      %v3580 = vpop.f32.mrb[0].mxu0
      %v3581 = vadd.f32 0.0, %v3580
      %v3582 = vpop.f32.mrb[0].mxu0
      %v3583 = vpop.f32.mrb[0].mxu0
      %v3584 = vadd.f32 0.0, %v3583
      %v3585 = vpop.f32.mrb[0].mxu0
      %3586 = vmatprep.mubr.bf16.mxu0 0
      %3587 = vmatmul.mubr.bf16.gmra.mrb[0].mxu0 %v3448
      %v3588 = vpop.f32.mrb[0].mxu0
      %v3589 = vadd.f32 0.0, %v3588
      %v3590 = vpop.f32.mrb[0].mxu0
      %v3591 = vpop.f32.mrb[0].mxu0
      %v3592 = vadd.f32 0.0, %v3591
      %v3593 = vpop.f32.mrb[0].mxu0
      %3594 = vmatprep.mubr.bf16.mxu0 0
      %3595 = vmatmul.mubr.bf16.gmra.mrb[0].mxu0 %v3451
      %v3596 = vpop.f32.mrb[0].mxu0
      %v3597 = vadd.f32 0.0, %v3596
      %v3598 = vpop.f32.mrb[0].mxu0
      %v3599 = vpop.f32.mrb[0].mxu0
      %v3600 = vadd.f32 0.0, %v3599
      %v3601 = vpop.f32.mrb[0].mxu0
      %3602 = vmatprep.mubr.bf16.mxu0 0
      %3603 = vmatmul.mubr.bf16.gmra.mrb[0].mxu0 %v3454
      %v3604 = vpop.f32.mrb[0].mxu0
      %v3605 = vadd.f32 0.0, %v3604
      %v3606 = vpop.f32.mrb[0].mxu0
      %v3607 = vpop.f32.mrb[0].mxu0
      %v3608 = vadd.f32 0.0, %v3607
      %v3609 = vpop.f32.mrb[0].mxu0
      %3610 = vmatprep.mubr.bf16.mxu0 0
      %3611 = vmatmul.mubr.bf16.gmra.mrb[0].mxu0 %v3457
      %v3612 = vpop.f32.mrb[0].mxu0
      %v3613 = vadd.f32 0.0, %v3612
      %v3614 = vpop.f32.mrb[0].mxu0
      %v3615 = vpop.f32.mrb[0].mxu0
      %v3616 = vadd.f32 0.0, %v3615
      %v3617 = vpop.f32.mrb[0].mxu0
      %3618 = vmatprep.mubr.bf16.mxu0 0
      %3619 = vmatmul.mubr.bf16.gmra.mrb[0].mxu0 %v3460
      %v3620 = vpop.f32.mrb[0].mxu0
      %v3621 = vadd.f32 0.0, %v3620
      %v3622 = vpop.f32.mrb[0].mxu0
      %v3623 = vpop.f32.mrb[0].mxu0
      %v3624 = vadd.f32 0.0, %v3623
      %v3625 = vpop.f32.mrb[0].mxu0
      %3626 = vmatprep.mubr.bf16.mxu0 0
      %3627 = vmatmul.mubr.bf16.gmra.mrb[0].mxu0 %v3463
      %v3628 = vpop.f32.mrb[0].mxu0
      %v3629 = vadd.f32 0.0, %v3628
      %v3630 = vpop.f32.mrb[0].mxu0
      %v3631 = vpop.f32.mrb[0].mxu0
      %v3632 = vadd.f32 0.0, %v3631
      %v3633 = vpop.f32.mrb[0].mxu0
      %3634 = vmatprep.mubr.bf16.mxu0 0
      %3635 = vmatmul.mubr.bf16.gmra.mrb[0].mxu0 %v3466
      %v3636 = vpop.f32.mrb[0].mxu0
      %v3637 = vadd.f32 0.0, %v3636
      %v3638 = vpop.f32.mrb[0].mxu0
      %v3639 = vpop.f32.mrb[0].mxu0
      %v3640 = vadd.f32 0.0, %v3639
      %v3641 = vpop.f32.mrb[0].mxu0
      %3642 = vmatprep.mubr.bf16.mxu0 0
      %3643 = vmatmul.mubr.bf16.gmra.mrb[0].mxu0 %v3469
      %v3644 = vpop.f32.mrb[0].mxu0
      %v3645 = vadd.f32 0.0, %v3644
      %v3646 = vpop.f32.mrb[0].mxu0
      %v3647 = vpop.f32.mrb[0].mxu0
      %v3648 = vadd.f32 0.0, %v3647
      %v3649 = vpop.f32.mrb[0].mxu0
      %3650 = vdwg.mxu0
      %v3651 = vadd.f32 %v3231, %v3509
      %v3652 = vadd.f32 %v3234, %v3512
      %v3653 = vadd.f32 %v3239, %v3517
      %v3654 = vadd.f32 %v3242, %v3520
      %v3655 = vadd.f32 %v3247, %v3525
      %v3656 = vadd.f32 %v3250, %v3528
      %v3657 = vadd.f32 %v3255, %v3533
      %v3658 = vadd.f32 %v3258, %v3536
      %v3659 = vadd.f32 %v3263, %v3541
      %v3660 = vadd.f32 %v3266, %v3544
      %v3661 = vadd.f32 %v3271, %v3549
      %v3662 = vadd.f32 %v3274, %v3552
      %v3663 = vadd.f32 %v3279, %v3557
      %v3664 = vadd.f32 %v3282, %v3560
      %v3665 = vadd.f32 %v3287, %v3565
      %v3666 = vadd.f32 %v3290, %v3568
      %v3667 = vadd.f32 %v3295, %v3573
      %v3668 = vadd.f32 %v3298, %v3576
      %v3669 = vadd.f32 %v3303, %v3581
      %v3670 = vadd.f32 %v3306, %v3584
      %v3671 = vadd.f32 %v3311, %v3589
      %v3672 = vadd.f32 %v3314, %v3592
      %v3673 = vadd.f32 %v3319, %v3597
      %v3674 = vadd.f32 %v3322, %v3600
      %v3675 = vadd.f32 %v3327, %v3605
      %v3676 = vadd.f32 %v3330, %v3608
      %v3677 = vadd.f32 %v3335, %v3613
      %v3678 = vadd.f32 %v3338, %v3616
      %v3679 = vadd.f32 %v3343, %v3621
      %v3680 = vadd.f32 %v3346, %v3624
      %v3681 = vadd.f32 %v3351, %v3629
      %v3682 = vadd.f32 %v3354, %v3632
      %v3683 = vadd.f32 %v3359, %v3637
      %v3684 = vadd.f32 %v3362, %v3640
      %v3685 = vadd.f32 %v3367, %v3645
      %v3686 = vadd.f32 %v3370, %v3648
      %v3687 = vld [vmem:[#allocation2] sm:$0xff]
      %v3688 = vld [vmem:[#allocation2 + $0x8] sm:$0xff]
      %v3689 = vld [vmem:[#allocation2 + $0x10] sm:$0xff]
      %v3690 = vld [vmem:[#allocation2 + $0x18] sm:$0xff]
      %v3691 = vld [vmem:[#allocation2 + $0x20] sm:$0xff]
      %v3692 = vld [vmem:[#allocation2 + $0x28] sm:$0xff]
      %v3693 = vld [vmem:[#allocation2 + $0x30] sm:$0xff]
      %v3694 = vld [vmem:[#allocation2 + $0x38] sm:$0xff]
      %v3695 = vld [vmem:[#allocation2 + $0x40] sm:$0xff]
      %v3696 = vld [vmem:[#allocation2 + $0x48] sm:$0xff]
      %v3697 = vld [vmem:[#allocation2 + $0x50] sm:$0xff]
      %v3698 = vld [vmem:[#allocation2 + $0x58] sm:$0xff]
      %v3699 = vld [vmem:[#allocation2 + $0x60] sm:$0xff]
      %v3700 = vld [vmem:[#allocation2 + $0x68] sm:$0xff]
      %v3701 = vld [vmem:[#allocation2 + $0x70] sm:$0xff]
      %v3702 = vld [vmem:[#allocation2 + $0x78] sm:$0xff]
      %v3703 = vld [vmem:[#allocation2 + $0x80] sm:$0xff]
      %v3704 = vld [vmem:[#allocation2 + $0x88] sm:$0xff]
      %v3705 = vld [vmem:[#allocation2 + $0x90] sm:$0xff]
      %v3706 = vld [vmem:[#allocation2 + $0x98] sm:$0xff]
      %v3707 = vld [vmem:[#allocation2 + $0xa0] sm:$0xff]
      %v3708 = vld [vmem:[#allocation2 + $0xa8] sm:$0xff]
      %v3709 = vld [vmem:[#allocation2 + $0xb0] sm:$0xff]
      %v3710 = vld [vmem:[#allocation2 + $0xb8] sm:$0xff]
      %v3711 = vld [vmem:[#allocation2 + $0xc0] sm:$0xff]
      %v3712 = vld [vmem:[#allocation2 + $0xc8] sm:$0xff]
      %v3713 = vld [vmem:[#allocation2 + $0xd0] sm:$0xff]
      %v3714 = vld [vmem:[#allocation2 + $0xd8] sm:$0xff]
      %v3715 = vld [vmem:[#allocation2 + $0xe0] sm:$0xff]
      %v3716 = vld [vmem:[#allocation2 + $0xe8] sm:$0xff]
      %v3717 = vld [vmem:[#allocation2 + $0xf0] sm:$0xff]
      %v3718 = vld [vmem:[#allocation2 + $0xf8] sm:$0xff]
      %v3719 = vld [vmem:[#allocation2 + $0x100] sm:$0xff]
      %v3720 = vld [vmem:[#allocation2 + $0x108] sm:$0xff]
      %v3721 = vld [vmem:[#allocation2 + $0x110] sm:$0xff]
      %v3722 = vld [vmem:[#allocation2 + $0x118] sm:$0x3f]
      %v3723 = vadd.f32 %v3687, %v3651
      %v3724 = vadd.f32 %v3688, %v3652
      %v3725 = vadd.f32 %v3689, %v3653
      %v3726 = vadd.f32 %v3690, %v3654
      %v3727 = vadd.f32 %v3691, %v3655
      %v3728 = vadd.f32 %v3692, %v3656
      %v3729 = vadd.f32 %v3693, %v3657
      %v3730 = vadd.f32 %v3694, %v3658
      %v3731 = vadd.f32 %v3695, %v3659
      %v3732 = vadd.f32 %v3696, %v3660
      %v3733 = vadd.f32 %v3697, %v3661
      %v3734 = vadd.f32 %v3698, %v3662
      %v3735 = vadd.f32 %v3699, %v3663
      %v3736 = vadd.f32 %v3700, %v3664
      %v3737 = vadd.f32 %v3701, %v3665
      %v3738 = vadd.f32 %v3702, %v3666
      %v3739 = vadd.f32 %v3703, %v3667
      %v3740 = vadd.f32 %v3704, %v3668
      %v3741 = vadd.f32 %v3705, %v3669
      %v3742 = vadd.f32 %v3706, %v3670
      %v3743 = vadd.f32 %v3707, %v3671
      %v3744 = vadd.f32 %v3708, %v3672
      %v3745 = vadd.f32 %v3709, %v3673
      %v3746 = vadd.f32 %v3710, %v3674
      %v3747 = vadd.f32 %v3711, %v3675
      %v3748 = vadd.f32 %v3712, %v3676
      %v3749 = vadd.f32 %v3713, %v3677
      %v3750 = vadd.f32 %v3714, %v3678
      %v3751 = vadd.f32 %v3715, %v3679
      %v3752 = vadd.f32 %v3716, %v3680
      %v3753 = vadd.f32 %v3717, %v3681
      %v3754 = vadd.f32 %v3718, %v3682
      %v3755 = vadd.f32 %v3719, %v3683
      %v3756 = vadd.f32 %v3720, %v3684
      %v3757 = vadd.f32 %v3721, %v3685
      %v3758 = vadd.f32 %v3722, %v3686
      %3759 = vst.msk [vmem:[#allocation2] sm:$0xff] %vm1295, %v3723
      %3760 = vst.msk [vmem:[#allocation2 + $0x8] sm:$0xff] %vm1295, %v3724
      %3761 = vst.msk [vmem:[#allocation2 + $0x10] sm:$0xff] %vm1295, %v3725
      %3762 = vst.msk [vmem:[#allocation2 + $0x18] sm:$0xff] %vm1295, %v3726
      %3763 = vst.msk [vmem:[#allocation2 + $0x20] sm:$0xff] %vm1295, %v3727
      %3764 = vst.msk [vmem:[#allocation2 + $0x28] sm:$0xff] %vm1295, %v3728
      %3765 = vst.msk [vmem:[#allocation2 + $0x30] sm:$0xff] %vm1295, %v3729
      %3766 = vst.msk [vmem:[#allocation2 + $0x38] sm:$0xff] %vm1295, %v3730
      %3767 = vst.msk [vmem:[#allocation2 + $0x40] sm:$0xff] %vm1295, %v3731
      %3768 = vst.msk [vmem:[#allocation2 + $0x48] sm:$0xff] %vm1295, %v3732
      %3769 = vst.msk [vmem:[#allocation2 + $0x50] sm:$0xff] %vm1295, %v3733
      %3770 = vst.msk [vmem:[#allocation2 + $0x58] sm:$0xff] %vm1295, %v3734
      %3771 = vst.msk [vmem:[#allocation2 + $0x60] sm:$0xff] %vm1295, %v3735
      %3772 = vst.msk [vmem:[#allocation2 + $0x68] sm:$0xff] %vm1295, %v3736
      %3773 = vst.msk [vmem:[#allocation2 + $0x70] sm:$0xff] %vm1295, %v3737
      %3774 = vst.msk [vmem:[#allocation2 + $0x78] sm:$0xff] %vm1295, %v3738
      %3775 = vst.msk [vmem:[#allocation2 + $0x80] sm:$0xff] %vm1295, %v3739
      %3776 = vst.msk [vmem:[#allocation2 + $0x88] sm:$0xff] %vm1295, %v3740
      %3777 = vst.msk [vmem:[#allocation2 + $0x90] sm:$0xff] %vm1295, %v3741
      %3778 = vst.msk [vmem:[#allocation2 + $0x98] sm:$0xff] %vm1295, %v3742
      %3779 = vst.msk [vmem:[#allocation2 + $0xa0] sm:$0xff] %vm1295, %v3743
      %3780 = vst.msk [vmem:[#allocation2 + $0xa8] sm:$0xff] %vm1295, %v3744
      %3781 = vst.msk [vmem:[#allocation2 + $0xb0] sm:$0xff] %vm1295, %v3745
      %3782 = vst.msk [vmem:[#allocation2 + $0xb8] sm:$0xff] %vm1295, %v3746
      %3783 = vst.msk [vmem:[#allocation2 + $0xc0] sm:$0xff] %vm1295, %v3747
      %3784 = vst.msk [vmem:[#allocation2 + $0xc8] sm:$0xff] %vm1295, %v3748
      %3785 = vst.msk [vmem:[#allocation2 + $0xd0] sm:$0xff] %vm1295, %v3749
      %3786 = vst.msk [vmem:[#allocation2 + $0xd8] sm:$0xff] %vm1295, %v3750
      %3787 = vst.msk [vmem:[#allocation2 + $0xe0] sm:$0xff] %vm1295, %v3751
      %3788 = vst.msk [vmem:[#allocation2 + $0xe8] sm:$0xff] %vm1295, %v3752
      %3789 = vst.msk [vmem:[#allocation2 + $0xf0] sm:$0xff] %vm1295, %v3753
      %3790 = vst.msk [vmem:[#allocation2 + $0xf8] sm:$0xff] %vm1295, %v3754
      %3791 = vst.msk [vmem:[#allocation2 + $0x100] sm:$0xff] %vm1295, %v3755
      %3792 = vst.msk [vmem:[#allocation2 + $0x108] sm:$0xff] %vm1295, %v3756
      %3793 = vst.msk [vmem:[#allocation2 + $0x110] sm:$0xff] %vm1295, %v3757
      %3794 = vst.msk [vmem:[#allocation2 + $0x118] sm:$0x3f] %vm1331, %v3758
      %v3795 = vld [vmem:[#allocation2] sm:$0xff]
      %v3796 = vld [vmem:[#allocation2 + $0x8] sm:$0xff]
      %v3797 = vld [vmem:[#allocation2 + $0x10] sm:$0xff]
      %v3798 = vld [vmem:[#allocation2 + $0x18] sm:$0xff]
      %v3799 = vld [vmem:[#allocation2 + $0x20] sm:$0xff]
      %v3800 = vld [vmem:[#allocation2 + $0x28] sm:$0xff]
      %v3801 = vld [vmem:[#allocation2 + $0x30] sm:$0xff]
      %v3802 = vld [vmem:[#allocation2 + $0x38] sm:$0xff]
      %v3803 = vld [vmem:[#allocation2 + $0x40] sm:$0xff]
      %v3804 = vld [vmem:[#allocation2 + $0x48] sm:$0xff]
      %v3805 = vld [vmem:[#allocation2 + $0x50] sm:$0xff]
      %v3806 = vld [vmem:[#allocation2 + $0x58] sm:$0xff]
      %v3807 = vld [vmem:[#allocation2 + $0x60] sm:$0xff]
      %v3808 = vld [vmem:[#allocation2 + $0x68] sm:$0xff]
      %v3809 = vld [vmem:[#allocation2 + $0x70] sm:$0xff]
      %v3810 = vld [vmem:[#allocation2 + $0x78] sm:$0xff]
      %v3811 = vld [vmem:[#allocation2 + $0x80] sm:$0xff]
      %v3812 = vld [vmem:[#allocation2 + $0x88] sm:$0xff]
      %v3813 = vld [vmem:[#allocation2 + $0x90] sm:$0xff]
      %v3814 = vld [vmem:[#allocation2 + $0x98] sm:$0xff]
      %v3815 = vld [vmem:[#allocation2 + $0xa0] sm:$0xff]
      %v3816 = vld [vmem:[#allocation2 + $0xa8] sm:$0xff]
      %v3817 = vld [vmem:[#allocation2 + $0xb0] sm:$0xff]
      %v3818 = vld [vmem:[#allocation2 + $0xb8] sm:$0xff]
      %v3819 = vld [vmem:[#allocation2 + $0xc0] sm:$0xff]
      %v3820 = vld [vmem:[#allocation2 + $0xc8] sm:$0xff]
      %v3821 = vld [vmem:[#allocation2 + $0xd0] sm:$0xff]
      %v3822 = vld [vmem:[#allocation2 + $0xd8] sm:$0xff]
      %v3823 = vld [vmem:[#allocation2 + $0xe0] sm:$0xff]
      %v3824 = vld [vmem:[#allocation2 + $0xe8] sm:$0xff]
      %v3825 = vld [vmem:[#allocation2 + $0xf0] sm:$0xff]
      %v3826 = vld [vmem:[#allocation2 + $0xf8] sm:$0xff]
      %v3827 = vld [vmem:[#allocation2 + $0x100] sm:$0xff]
      %v3828 = vld [vmem:[#allocation2 + $0x108] sm:$0xff]
      %v3829 = vld [vmem:[#allocation2 + $0x110] sm:$0xff]
      %v3830 = vld [vmem:[#allocation2 + $0x118] sm:$0x3f]
      %v3831 = vld [vmem:[%s240] sm:$0x1]
      %v3833 = vlaneseq
      %v3834 = vshrl.u32 %v3833, 7
      %v3835 = vsub.s32 0, %v3834
      %v3836 = vrot.slane %v3831, %v3835
      %v3838 = vadd.f32 %v3795, %v3836
      %v3839 = vadd.f32 %v3796, %v3836
      %v3840 = vadd.f32 %v3797, %v3836
      %v3841 = vadd.f32 %v3798, %v3836
      %v3842 = vadd.f32 %v3799, %v3836
      %v3843 = vadd.f32 %v3800, %v3836
      %v3844 = vadd.f32 %v3801, %v3836
      %v3845 = vadd.f32 %v3802, %v3836
      %v3846 = vadd.f32 %v3803, %v3836
      %v3847 = vadd.f32 %v3804, %v3836
      %v3848 = vadd.f32 %v3805, %v3836
      %v3849 = vadd.f32 %v3806, %v3836
      %v3850 = vadd.f32 %v3807, %v3836
      %v3851 = vadd.f32 %v3808, %v3836
      %v3852 = vadd.f32 %v3809, %v3836
      %v3853 = vadd.f32 %v3810, %v3836
      %v3854 = vadd.f32 %v3811, %v3836
      %v3855 = vadd.f32 %v3812, %v3836
      %v3856 = vadd.f32 %v3813, %v3836
      %v3857 = vadd.f32 %v3814, %v3836
      %v3858 = vadd.f32 %v3815, %v3836
      %v3859 = vadd.f32 %v3816, %v3836
      %v3860 = vadd.f32 %v3817, %v3836
      %v3861 = vadd.f32 %v3818, %v3836
      %v3862 = vadd.f32 %v3819, %v3836
      %v3863 = vadd.f32 %v3820, %v3836
      %v3864 = vadd.f32 %v3821, %v3836
      %v3865 = vadd.f32 %v3822, %v3836
      %v3866 = vadd.f32 %v3823, %v3836
      %v3867 = vadd.f32 %v3824, %v3836
      %v3868 = vadd.f32 %v3825, %v3836
      %v3869 = vadd.f32 %v3826, %v3836
      %v3870 = vadd.f32 %v3827, %v3836
      %v3871 = vadd.f32 %v3828, %v3836
      %v3872 = vadd.f32 %v3829, %v3836
      %v3873 = vadd.f32 %v3830, %v3836
      %v3874 = vmax.f32 %v3838, 0.0
      %v3875 = vmax.f32 %v3839, 0.0
      %v3876 = vmax.f32 %v3840, 0.0
      %v3877 = vmax.f32 %v3841, 0.0
      %v3878 = vmax.f32 %v3842, 0.0
      %v3879 = vmax.f32 %v3843, 0.0
      %v3880 = vmax.f32 %v3844, 0.0
      %v3881 = vmax.f32 %v3845, 0.0
      %v3882 = vmax.f32 %v3846, 0.0
      %v3883 = vmax.f32 %v3847, 0.0
      %v3884 = vmax.f32 %v3848, 0.0
      %v3885 = vmax.f32 %v3849, 0.0
      %v3886 = vmax.f32 %v3850, 0.0
      %v3887 = vmax.f32 %v3851, 0.0
      %v3888 = vmax.f32 %v3852, 0.0
      %v3889 = vmax.f32 %v3853, 0.0
      %v3890 = vmax.f32 %v3854, 0.0
      %v3891 = vmax.f32 %v3855, 0.0
      %v3892 = vmax.f32 %v3856, 0.0
      %v3893 = vmax.f32 %v3857, 0.0
      %v3894 = vmax.f32 %v3858, 0.0
      %v3895 = vmax.f32 %v3859, 0.0
      %v3896 = vmax.f32 %v3860, 0.0
      %v3897 = vmax.f32 %v3861, 0.0
      %v3898 = vmax.f32 %v3862, 0.0
      %v3899 = vmax.f32 %v3863, 0.0
      %v3900 = vmax.f32 %v3864, 0.0
      %v3901 = vmax.f32 %v3865, 0.0
      %v3902 = vmax.f32 %v3866, 0.0
      %v3903 = vmax.f32 %v3867, 0.0
      %v3904 = vmax.f32 %v3868, 0.0
      %v3905 = vmax.f32 %v3869, 0.0
      %v3906 = vmax.f32 %v3870, 0.0
      %v3907 = vmax.f32 %v3871, 0.0
      %v3908 = vmax.f32 %v3872, 0.0
      %v3909 = vmax.f32 %v3873, 0.0
      %v3910 = vld [vmem:[%s3] sm:$0xff]
      %v3911 = vld [vmem:[%s3 + $0x8] sm:$0xff]
      %v3912 = vld [vmem:[%s3 + $0x10] sm:$0xff]
      %v3913 = vld [vmem:[%s3 + $0x18] sm:$0xff]
      %v3914 = vld [vmem:[%s3 + $0x20] sm:$0xff]
      %v3915 = vld [vmem:[%s3 + $0x28] sm:$0xff]
      %v3916 = vld [vmem:[%s3 + $0x30] sm:$0xff]
      %v3917 = vld [vmem:[%s3 + $0x38] sm:$0xff]
      %v3918 = vld [vmem:[%s3 + $0x40] sm:$0xff]
      %v3919 = vld [vmem:[%s3 + $0x48] sm:$0xff]
      %v3920 = vld [vmem:[%s3 + $0x50] sm:$0xff]
      %v3921 = vld [vmem:[%s3 + $0x58] sm:$0xff]
      %v3922 = vld [vmem:[%s3 + $0x60] sm:$0xff]
      %v3923 = vld [vmem:[%s3 + $0x68] sm:$0xff]
      %v3924 = vld [vmem:[%s3 + $0x70] sm:$0xff]
      %v3925 = vld [vmem:[%s3 + $0x78] sm:$0xff]
      %v3926 = vld [vmem:[%s3 + $0x80] sm:$0xff]
      %v3927 = vld [vmem:[%s3 + $0x88] sm:$0xff]
      %v3928 = vld [vmem:[%s3 + $0x90] sm:$0xff]
      %v3929 = vld [vmem:[%s3 + $0x98] sm:$0xff]
      %v3930 = vld [vmem:[%s3 + $0xa0] sm:$0xff]
      %v3931 = vld [vmem:[%s3 + $0xa8] sm:$0xff]
      %v3932 = vld [vmem:[%s3 + $0xb0] sm:$0xff]
      %v3933 = vld [vmem:[%s3 + $0xb8] sm:$0xff]
      %v3934 = vld [vmem:[%s3 + $0xc0] sm:$0xff]
      %v3935 = vld [vmem:[%s3 + $0xc8] sm:$0xff]
      %v3936 = vld [vmem:[%s3 + $0xd0] sm:$0xff]
      %v3937 = vld [vmem:[%s3 + $0xd8] sm:$0xff]
      %v3938 = vld [vmem:[%s3 + $0xe0] sm:$0xff]
      %v3939 = vld [vmem:[%s3 + $0xe8] sm:$0xff]
      %v3940 = vld [vmem:[%s3 + $0xf0] sm:$0xff]
      %v3941 = vld [vmem:[%s3 + $0xf8] sm:$0xff]
      %v3942 = vld [vmem:[%s3 + $0x100] sm:$0xff]
      %v3943 = vld [vmem:[%s3 + $0x108] sm:$0xff]
      %v3944 = vld [vmem:[%s3 + $0x110] sm:$0xff]
      %v3945 = vld [vmem:[%s3 + $0x118] sm:$0x3f]
      %3947 = vset.pattern.permute.xlu0 0
      %3948 = vperm.xlu0 %3947, %v3910
      %v3949 = vpop.permute.xlu0 %3948
      %3952 = vset.pattern.permute.xlu0 0
      %3953 = vperm.xlu0 %3952, %v3911
      %v3954 = vpop.permute.xlu0 %3953
      %3957 = vset.pattern.permute.xlu0 0
      %3958 = vperm.xlu0 %3957, %v3912
      %v3959 = vpop.permute.xlu0 %3958
      %3962 = vset.pattern.permute.xlu0 0
      %3963 = vperm.xlu0 %3962, %v3913
      %v3964 = vpop.permute.xlu0 %3963
      %3967 = vset.pattern.permute.xlu0 0
      %3968 = vperm.xlu0 %3967, %v3914
      %v3969 = vpop.permute.xlu0 %3968
      %3972 = vset.pattern.permute.xlu0 0
      %3973 = vperm.xlu0 %3972, %v3915
      %v3974 = vpop.permute.xlu0 %3973
      %3977 = vset.pattern.permute.xlu0 0
      %3978 = vperm.xlu0 %3977, %v3916
      %v3979 = vpop.permute.xlu0 %3978
      %3982 = vset.pattern.permute.xlu0 0
      %3983 = vperm.xlu0 %3982, %v3917
      %v3984 = vpop.permute.xlu0 %3983
      %3987 = vset.pattern.permute.xlu0 0
      %3988 = vperm.xlu0 %3987, %v3918
      %v3989 = vpop.permute.xlu0 %3988
      %3992 = vset.pattern.permute.xlu0 0
      %3993 = vperm.xlu0 %3992, %v3919
      %v3994 = vpop.permute.xlu0 %3993
      %3997 = vset.pattern.permute.xlu0 0
      %3998 = vperm.xlu0 %3997, %v3920
      %v3999 = vpop.permute.xlu0 %3998
      %4002 = vset.pattern.permute.xlu0 0
      %4003 = vperm.xlu0 %4002, %v3921
      %v4004 = vpop.permute.xlu0 %4003
      %4007 = vset.pattern.permute.xlu0 0
      %4008 = vperm.xlu0 %4007, %v3922
      %v4009 = vpop.permute.xlu0 %4008
      %4012 = vset.pattern.permute.xlu0 0
      %4013 = vperm.xlu0 %4012, %v3923
      %v4014 = vpop.permute.xlu0 %4013
      %4017 = vset.pattern.permute.xlu0 0
      %4018 = vperm.xlu0 %4017, %v3924
      %v4019 = vpop.permute.xlu0 %4018
      %4022 = vset.pattern.permute.xlu0 0
      %4023 = vperm.xlu0 %4022, %v3925
      %v4024 = vpop.permute.xlu0 %4023
      %4027 = vset.pattern.permute.xlu0 0
      %4028 = vperm.xlu0 %4027, %v3926
      %v4029 = vpop.permute.xlu0 %4028
      %4032 = vset.pattern.permute.xlu0 0
      %4033 = vperm.xlu0 %4032, %v3927
      %v4034 = vpop.permute.xlu0 %4033
      %4037 = vset.pattern.permute.xlu0 0
      %4038 = vperm.xlu0 %4037, %v3928
      %v4039 = vpop.permute.xlu0 %4038
      %4042 = vset.pattern.permute.xlu0 0
      %4043 = vperm.xlu0 %4042, %v3929
      %v4044 = vpop.permute.xlu0 %4043
      %4047 = vset.pattern.permute.xlu0 0
      %4048 = vperm.xlu0 %4047, %v3930
      %v4049 = vpop.permute.xlu0 %4048
      %4052 = vset.pattern.permute.xlu0 0
      %4053 = vperm.xlu0 %4052, %v3931
      %v4054 = vpop.permute.xlu0 %4053
      %4057 = vset.pattern.permute.xlu0 0
      %4058 = vperm.xlu0 %4057, %v3932
      %v4059 = vpop.permute.xlu0 %4058
      %4062 = vset.pattern.permute.xlu0 0
      %4063 = vperm.xlu0 %4062, %v3933
      %v4064 = vpop.permute.xlu0 %4063
      %4067 = vset.pattern.permute.xlu0 0
      %4068 = vperm.xlu0 %4067, %v3934
      %v4069 = vpop.permute.xlu0 %4068
      %4072 = vset.pattern.permute.xlu0 0
      %4073 = vperm.xlu0 %4072, %v3935
      %v4074 = vpop.permute.xlu0 %4073
      %4077 = vset.pattern.permute.xlu0 0
      %4078 = vperm.xlu0 %4077, %v3936
      %v4079 = vpop.permute.xlu0 %4078
      %4082 = vset.pattern.permute.xlu0 0
      %4083 = vperm.xlu0 %4082, %v3937
      %v4084 = vpop.permute.xlu0 %4083
      %4087 = vset.pattern.permute.xlu0 0
      %4088 = vperm.xlu0 %4087, %v3938
      %v4089 = vpop.permute.xlu0 %4088
      %4092 = vset.pattern.permute.xlu0 0
      %4093 = vperm.xlu0 %4092, %v3939
      %v4094 = vpop.permute.xlu0 %4093
      %4097 = vset.pattern.permute.xlu0 0
      %4098 = vperm.xlu0 %4097, %v3940
      %v4099 = vpop.permute.xlu0 %4098
      %4102 = vset.pattern.permute.xlu0 0
      %4103 = vperm.xlu0 %4102, %v3941
      %v4104 = vpop.permute.xlu0 %4103
      %4107 = vset.pattern.permute.xlu0 0
      %4108 = vperm.xlu0 %4107, %v3942
      %v4109 = vpop.permute.xlu0 %4108
      %4112 = vset.pattern.permute.xlu0 0
      %4113 = vperm.xlu0 %4112, %v3943
      %v4114 = vpop.permute.xlu0 %4113
      %4117 = vset.pattern.permute.xlu0 0
      %4118 = vperm.xlu0 %4117, %v3944
      %v4119 = vpop.permute.xlu0 %4118
      %4122 = vset.pattern.permute.xlu0 0
      %4123 = vperm.xlu0 %4122, %v3945
      %v4124 = vpop.permute.xlu0 %4123
      %v4126 = vmul.f32 %v3874, %v3949
      %v4127 = vmul.f32 %v3875, %v3954
      %v4128 = vmul.f32 %v3876, %v3959
      %v4129 = vmul.f32 %v3877, %v3964
      %v4130 = vmul.f32 %v3878, %v3969
      %v4131 = vmul.f32 %v3879, %v3974
      %v4132 = vmul.f32 %v3880, %v3979
      %v4133 = vmul.f32 %v3881, %v3984
      %v4134 = vmul.f32 %v3882, %v3989
      %v4135 = vmul.f32 %v3883, %v3994
      %v4136 = vmul.f32 %v3884, %v3999
      %v4137 = vmul.f32 %v3885, %v4004
      %v4138 = vmul.f32 %v3886, %v4009
      %v4139 = vmul.f32 %v3887, %v4014
      %v4140 = vmul.f32 %v3888, %v4019
      %v4141 = vmul.f32 %v3889, %v4024
      %v4142 = vmul.f32 %v3890, %v4029
      %v4143 = vmul.f32 %v3891, %v4034
      %v4144 = vmul.f32 %v3892, %v4039
      %v4145 = vmul.f32 %v3893, %v4044
      %v4146 = vmul.f32 %v3894, %v4049
      %v4147 = vmul.f32 %v3895, %v4054
      %v4148 = vmul.f32 %v3896, %v4059
      %v4149 = vmul.f32 %v3897, %v4064
      %v4150 = vmul.f32 %v3898, %v4069
      %v4151 = vmul.f32 %v3899, %v4074
      %v4152 = vmul.f32 %v3900, %v4079
      %v4153 = vmul.f32 %v3901, %v4084
      %v4154 = vmul.f32 %v3902, %v4089
      %v4155 = vmul.f32 %v3903, %v4094
      %v4156 = vmul.f32 %v3904, %v4099
      %v4157 = vmul.f32 %v3905, %v4104
      %v4158 = vmul.f32 %v3906, %v4109
      %v4159 = vmul.f32 %v3907, %v4114
      %v4160 = vmul.f32 %v3908, %v4119
      %v4161 = vmul.f32 %v3909, %v4124
      %v4162 = vpack.c.bf16 %v4127, %v4126
      %v4163 = vpack.c.bf16 %v4129, %v4128
      %v4164 = vpack.c.bf16 %v4131, %v4130
      %v4165 = vpack.c.bf16 %v4133, %v4132
      %v4166 = vpack.c.bf16 %v4135, %v4134
      %v4167 = vpack.c.bf16 %v4137, %v4136
      %v4168 = vpack.c.bf16 %v4139, %v4138
      %v4169 = vpack.c.bf16 %v4141, %v4140
      %v4170 = vpack.c.bf16 %v4143, %v4142
      %v4171 = vpack.c.bf16 %v4145, %v4144
      %v4172 = vpack.c.bf16 %v4147, %v4146
      %v4173 = vpack.c.bf16 %v4149, %v4148
      %v4174 = vpack.c.bf16 %v4151, %v4150
      %v4175 = vpack.c.bf16 %v4153, %v4152
      %v4176 = vpack.c.bf16 %v4155, %v4154
      %v4177 = vpack.c.bf16 %v4157, %v4156
      %v4178 = vpack.c.bf16 %v4159, %v4158
      %v4179 = vpack.c.bf16 %v4161, %v4160
      %v4198 = vunpack.c.l.b16 %v4162
      %v4199 = vunpack.c.h.b16 %v4162
      %v4200 = vunpack.c.l.b16 %v4163
      %v4201 = vunpack.c.h.b16 %v4163
      %v4202 = vunpack.c.l.b16 %v4164
      %v4203 = vunpack.c.h.b16 %v4164
      %v4204 = vunpack.c.l.b16 %v4165
      %v4205 = vunpack.c.h.b16 %v4165
      %v4206 = vunpack.c.l.b16 %v4166
      %v4207 = vunpack.c.h.b16 %v4166
      %v4208 = vunpack.c.l.b16 %v4167
      %v4209 = vunpack.c.h.b16 %v4167
      %v4210 = vunpack.c.l.b16 %v4168
      %v4211 = vunpack.c.h.b16 %v4168
      %v4212 = vunpack.c.l.b16 %v4169
      %v4213 = vunpack.c.h.b16 %v4169
      %v4214 = vunpack.c.l.b16 %v4170
      %v4215 = vunpack.c.h.b16 %v4170
      %v4216 = vunpack.c.l.b16 %v4171
      %v4217 = vunpack.c.h.b16 %v4171
      %v4218 = vunpack.c.l.b16 %v4172
      %v4219 = vunpack.c.h.b16 %v4172
      %v4220 = vunpack.c.l.b16 %v4173
      %v4221 = vunpack.c.h.b16 %v4173
      %v4222 = vunpack.c.l.b16 %v4174
      %v4223 = vunpack.c.h.b16 %v4174
      %v4224 = vunpack.c.l.b16 %v4175
      %v4225 = vunpack.c.h.b16 %v4175
      %v4226 = vunpack.c.l.b16 %v4176
      %v4227 = vunpack.c.h.b16 %v4176
      %v4228 = vunpack.c.l.b16 %v4177
      %v4229 = vunpack.c.h.b16 %v4177
      %v4230 = vunpack.c.l.b16 %v4178
      %v4231 = vunpack.c.h.b16 %v4178
      %v4232 = vunpack.c.l.b16 %v4179
      %v4233 = vunpack.c.h.b16 %v4179
      %v4234 = vpack.c.b16 %v4198, %v4198
      %v4235 = vpack.c.b16 %v4199, %v4199
      %v4236 = vpack.c.b16 %v4200, %v4200
      %v4237 = vpack.c.b16 %v4201, %v4201
      %v4238 = vpack.c.b16 %v4202, %v4202
      %v4239 = vpack.c.b16 %v4203, %v4203
      %v4240 = vpack.c.b16 %v4204, %v4204
      %v4241 = vpack.c.b16 %v4205, %v4205
      %v4242 = vpack.c.b16 %v4206, %v4206
      %v4243 = vpack.c.b16 %v4207, %v4207
      %v4244 = vpack.c.b16 %v4208, %v4208
      %v4245 = vpack.c.b16 %v4209, %v4209
      %v4246 = vpack.c.b16 %v4210, %v4210
      %v4247 = vpack.c.b16 %v4211, %v4211
      %v4248 = vpack.c.b16 %v4212, %v4212
      %v4249 = vpack.c.b16 %v4213, %v4213
      %v4250 = vpack.c.b16 %v4214, %v4214
      %v4251 = vpack.c.b16 %v4215, %v4215
      %v4252 = vpack.c.b16 %v4216, %v4216
      %v4253 = vpack.c.b16 %v4217, %v4217
      %v4254 = vpack.c.b16 %v4218, %v4218
      %v4255 = vpack.c.b16 %v4219, %v4219
      %v4256 = vpack.c.b16 %v4220, %v4220
      %v4257 = vpack.c.b16 %v4221, %v4221
      %v4258 = vpack.c.b16 %v4222, %v4222
      %v4259 = vpack.c.b16 %v4223, %v4223
      %v4260 = vpack.c.b16 %v4224, %v4224
      %v4261 = vpack.c.b16 %v4225, %v4225
      %v4262 = vpack.c.b16 %v4226, %v4226
      %v4263 = vpack.c.b16 %v4227, %v4227
      %v4264 = vpack.c.b16 %v4228, %v4228
      %v4265 = vpack.c.b16 %v4229, %v4229
      %v4266 = vpack.c.b16 %v4230, %v4230
      %v4267 = vpack.c.b16 %v4231, %v4231
      %v4268 = vpack.c.b16 %v4232, %v4232
      %v4269 = vpack.c.b16 %v4233, %v4233
      %vm4270 = vsmask.f32 1280
      %vm4271 = vsmask.f32 5392
      %vm4272 = vmor %vm4270, %vm4271
      %v4274 = vshrl.u32 %v4234, 16
      %v4276 = vrot.slane %v4274, 6
      %v4277 = vshll.u32 %v4234, 16
      %v4279 = vrot.slane %v4277, 7
      %v4280 = vor.u32 %v4276, %v4279
      %v4281 = vrot.slane %v4280, 4
      %v4283 = vshrl.u32 %v4235, 16
      %v4285 = vrot.slane %v4283, 6
      %v4286 = vshll.u32 %v4235, 16
      %v4288 = vrot.slane %v4286, 7
      %v4289 = vor.u32 %v4285, %v4288
      %v4290 = vsel %vm4272, %v4281, %v4289
      %v4291 = vrot.slane %v4289, 4
      %v4293 = vshrl.u32 %v4236, 16
      %v4295 = vrot.slane %v4293, 6
      %v4296 = vshll.u32 %v4236, 16
      %v4298 = vrot.slane %v4296, 7
      %v4299 = vor.u32 %v4295, %v4298
      %v4300 = vsel %vm4272, %v4291, %v4299
      %v4301 = vrot.slane %v4299, 4
      %v4303 = vshrl.u32 %v4237, 16
      %v4305 = vrot.slane %v4303, 6
      %v4306 = vshll.u32 %v4237, 16
      %v4308 = vrot.slane %v4306, 7
      %v4309 = vor.u32 %v4305, %v4308
      %v4310 = vsel %vm4272, %v4301, %v4309
      %v4311 = vrot.slane %v4309, 4
      %v4313 = vshrl.u32 %v4238, 16
      %v4315 = vrot.slane %v4313, 6
      %v4316 = vshll.u32 %v4238, 16
      %v4318 = vrot.slane %v4316, 7
      %v4319 = vor.u32 %v4315, %v4318
      %v4320 = vsel %vm4272, %v4311, %v4319
      %v4321 = vrot.slane %v4319, 4
      %v4323 = vshrl.u32 %v4239, 16
      %v4325 = vrot.slane %v4323, 6
      %v4326 = vshll.u32 %v4239, 16
      %v4328 = vrot.slane %v4326, 7
      %v4329 = vor.u32 %v4325, %v4328
      %v4330 = vsel %vm4272, %v4321, %v4329
      %v4331 = vrot.slane %v4329, 4
      %v4333 = vshrl.u32 %v4240, 16
      %v4335 = vrot.slane %v4333, 6
      %v4336 = vshll.u32 %v4240, 16
      %v4338 = vrot.slane %v4336, 7
      %v4339 = vor.u32 %v4335, %v4338
      %v4340 = vsel %vm4272, %v4331, %v4339
      %v4341 = vrot.slane %v4339, 4
      %v4343 = vshrl.u32 %v4241, 16
      %v4345 = vrot.slane %v4343, 6
      %v4346 = vshll.u32 %v4241, 16
      %v4348 = vrot.slane %v4346, 7
      %v4349 = vor.u32 %v4345, %v4348
      %v4350 = vsel %vm4272, %v4341, %v4349
      %v4351 = vrot.slane %v4349, 4
      %v4353 = vshrl.u32 %v4242, 16
      %v4355 = vrot.slane %v4353, 6
      %v4356 = vshll.u32 %v4242, 16
      %v4358 = vrot.slane %v4356, 7
      %v4359 = vor.u32 %v4355, %v4358
      %v4360 = vsel %vm4272, %v4351, %v4359
      %v4361 = vrot.slane %v4359, 4
      %v4363 = vshrl.u32 %v4243, 16
      %v4365 = vrot.slane %v4363, 6
      %v4366 = vshll.u32 %v4243, 16
      %v4368 = vrot.slane %v4366, 7
      %v4369 = vor.u32 %v4365, %v4368
      %v4370 = vsel %vm4272, %v4361, %v4369
      %v4371 = vrot.slane %v4369, 4
      %v4373 = vshrl.u32 %v4244, 16
      %v4375 = vrot.slane %v4373, 6
      %v4376 = vshll.u32 %v4244, 16
      %v4378 = vrot.slane %v4376, 7
      %v4379 = vor.u32 %v4375, %v4378
      %v4380 = vsel %vm4272, %v4371, %v4379
      %v4381 = vrot.slane %v4379, 4
      %v4383 = vshrl.u32 %v4245, 16
      %v4385 = vrot.slane %v4383, 6
      %v4386 = vshll.u32 %v4245, 16
      %v4388 = vrot.slane %v4386, 7
      %v4389 = vor.u32 %v4385, %v4388
      %v4390 = vsel %vm4272, %v4381, %v4389
      %v4391 = vrot.slane %v4389, 4
      %v4393 = vshrl.u32 %v4246, 16
      %v4395 = vrot.slane %v4393, 6
      %v4396 = vshll.u32 %v4246, 16
      %v4398 = vrot.slane %v4396, 7
      %v4399 = vor.u32 %v4395, %v4398
      %v4400 = vsel %vm4272, %v4391, %v4399
      %v4401 = vrot.slane %v4399, 4
      %v4403 = vshrl.u32 %v4247, 16
      %v4405 = vrot.slane %v4403, 6
      %v4406 = vshll.u32 %v4247, 16
      %v4408 = vrot.slane %v4406, 7
      %v4409 = vor.u32 %v4405, %v4408
      %v4410 = vsel %vm4272, %v4401, %v4409
      %v4411 = vrot.slane %v4409, 4
      %v4413 = vshrl.u32 %v4248, 16
      %v4415 = vrot.slane %v4413, 6
      %v4416 = vshll.u32 %v4248, 16
      %v4418 = vrot.slane %v4416, 7
      %v4419 = vor.u32 %v4415, %v4418
      %v4420 = vsel %vm4272, %v4411, %v4419
      %v4421 = vrot.slane %v4419, 4
      %v4423 = vshrl.u32 %v4249, 16
      %v4425 = vrot.slane %v4423, 6
      %v4426 = vshll.u32 %v4249, 16
      %v4428 = vrot.slane %v4426, 7
      %v4429 = vor.u32 %v4425, %v4428
      %v4430 = vsel %vm4272, %v4421, %v4429
      %v4431 = vrot.slane %v4429, 4
      %v4433 = vshrl.u32 %v4250, 16
      %v4435 = vrot.slane %v4433, 6
      %v4436 = vshll.u32 %v4250, 16
      %v4438 = vrot.slane %v4436, 7
      %v4439 = vor.u32 %v4435, %v4438
      %v4440 = vsel %vm4272, %v4431, %v4439
      %v4441 = vrot.slane %v4439, 4
      %v4443 = vshrl.u32 %v4251, 16
      %v4445 = vrot.slane %v4443, 6
      %v4446 = vshll.u32 %v4251, 16
      %v4448 = vrot.slane %v4446, 7
      %v4449 = vor.u32 %v4445, %v4448
      %v4450 = vsel %vm4272, %v4441, %v4449
      %v4451 = vrot.slane %v4449, 4
      %v4453 = vshrl.u32 %v4252, 16
      %v4455 = vrot.slane %v4453, 6
      %v4456 = vshll.u32 %v4252, 16
      %v4458 = vrot.slane %v4456, 7
      %v4459 = vor.u32 %v4455, %v4458
      %v4460 = vsel %vm4272, %v4451, %v4459
      %v4461 = vrot.slane %v4459, 4
      %v4463 = vshrl.u32 %v4253, 16
      %v4465 = vrot.slane %v4463, 6
      %v4466 = vshll.u32 %v4253, 16
      %v4468 = vrot.slane %v4466, 7
      %v4469 = vor.u32 %v4465, %v4468
      %v4470 = vsel %vm4272, %v4461, %v4469
      %v4471 = vrot.slane %v4469, 4
      %v4473 = vshrl.u32 %v4254, 16
      %v4475 = vrot.slane %v4473, 6
      %v4476 = vshll.u32 %v4254, 16
      %v4478 = vrot.slane %v4476, 7
      %v4479 = vor.u32 %v4475, %v4478
      %v4480 = vsel %vm4272, %v4471, %v4479
      %v4481 = vrot.slane %v4479, 4
      %v4483 = vshrl.u32 %v4255, 16
      %v4485 = vrot.slane %v4483, 6
      %v4486 = vshll.u32 %v4255, 16
      %v4488 = vrot.slane %v4486, 7
      %v4489 = vor.u32 %v4485, %v4488
      %v4490 = vsel %vm4272, %v4481, %v4489
      %v4491 = vrot.slane %v4489, 4
      %v4493 = vshrl.u32 %v4256, 16
      %v4495 = vrot.slane %v4493, 6
      %v4496 = vshll.u32 %v4256, 16
      %v4498 = vrot.slane %v4496, 7
      %v4499 = vor.u32 %v4495, %v4498
      %v4500 = vsel %vm4272, %v4491, %v4499
      %v4501 = vrot.slane %v4499, 4
      %v4503 = vshrl.u32 %v4257, 16
      %v4505 = vrot.slane %v4503, 6
      %v4506 = vshll.u32 %v4257, 16
      %v4508 = vrot.slane %v4506, 7
      %v4509 = vor.u32 %v4505, %v4508
      %v4510 = vsel %vm4272, %v4501, %v4509
      %v4511 = vrot.slane %v4509, 4
      %v4513 = vshrl.u32 %v4258, 16
      %v4515 = vrot.slane %v4513, 6
      %v4516 = vshll.u32 %v4258, 16
      %v4518 = vrot.slane %v4516, 7
      %v4519 = vor.u32 %v4515, %v4518
      %v4520 = vsel %vm4272, %v4511, %v4519
      %v4521 = vrot.slane %v4519, 4
      %v4523 = vshrl.u32 %v4259, 16
      %v4525 = vrot.slane %v4523, 6
      %v4526 = vshll.u32 %v4259, 16
      %v4528 = vrot.slane %v4526, 7
      %v4529 = vor.u32 %v4525, %v4528
      %v4530 = vsel %vm4272, %v4521, %v4529
      %v4531 = vrot.slane %v4529, 4
      %v4533 = vshrl.u32 %v4260, 16
      %v4535 = vrot.slane %v4533, 6
      %v4536 = vshll.u32 %v4260, 16
      %v4538 = vrot.slane %v4536, 7
      %v4539 = vor.u32 %v4535, %v4538
      %v4540 = vsel %vm4272, %v4531, %v4539
      %v4541 = vrot.slane %v4539, 4
      %v4543 = vshrl.u32 %v4261, 16
      %v4545 = vrot.slane %v4543, 6
      %v4546 = vshll.u32 %v4261, 16
      %v4548 = vrot.slane %v4546, 7
      %v4549 = vor.u32 %v4545, %v4548
      %v4550 = vsel %vm4272, %v4541, %v4549
      %v4551 = vrot.slane %v4549, 4
      %v4553 = vshrl.u32 %v4262, 16
      %v4555 = vrot.slane %v4553, 6
      %v4556 = vshll.u32 %v4262, 16
      %v4558 = vrot.slane %v4556, 7
      %v4559 = vor.u32 %v4555, %v4558
      %v4560 = vsel %vm4272, %v4551, %v4559
      %v4561 = vrot.slane %v4559, 4
      %v4563 = vshrl.u32 %v4263, 16
      %v4565 = vrot.slane %v4563, 6
      %v4566 = vshll.u32 %v4263, 16
      %v4568 = vrot.slane %v4566, 7
      %v4569 = vor.u32 %v4565, %v4568
      %v4570 = vsel %vm4272, %v4561, %v4569
      %v4571 = vrot.slane %v4569, 4
      %v4573 = vshrl.u32 %v4264, 16
      %v4575 = vrot.slane %v4573, 6
      %v4576 = vshll.u32 %v4264, 16
      %v4578 = vrot.slane %v4576, 7
      %v4579 = vor.u32 %v4575, %v4578
      %v4580 = vsel %vm4272, %v4571, %v4579
      %v4581 = vrot.slane %v4579, 4
      %v4583 = vshrl.u32 %v4265, 16
      %v4585 = vrot.slane %v4583, 6
      %v4586 = vshll.u32 %v4265, 16
      %v4588 = vrot.slane %v4586, 7
      %v4589 = vor.u32 %v4585, %v4588
      %v4590 = vsel %vm4272, %v4581, %v4589
      %v4591 = vrot.slane %v4589, 4
      %v4593 = vshrl.u32 %v4266, 16
      %v4595 = vrot.slane %v4593, 6
      %v4596 = vshll.u32 %v4266, 16
      %v4598 = vrot.slane %v4596, 7
      %v4599 = vor.u32 %v4595, %v4598
      %v4600 = vsel %vm4272, %v4591, %v4599
      %v4601 = vrot.slane %v4599, 4
      %v4603 = vshrl.u32 %v4267, 16
      %v4605 = vrot.slane %v4603, 6
      %v4606 = vshll.u32 %v4267, 16
      %v4608 = vrot.slane %v4606, 7
      %v4609 = vor.u32 %v4605, %v4608
      %v4610 = vsel %vm4272, %v4601, %v4609
      %v4611 = vrot.slane %v4609, 4
      %v4613 = vshrl.u32 %v4268, 16
      %v4615 = vrot.slane %v4613, 6
      %v4616 = vshll.u32 %v4268, 16
      %v4618 = vrot.slane %v4616, 7
      %v4619 = vor.u32 %v4615, %v4618
      %v4620 = vsel %vm4272, %v4611, %v4619
      %v4621 = vrot.slane %v4619, 4
      %v4623 = vshrl.u32 %v4269, 16
      %v4625 = vrot.slane %v4623, 6
      %v4626 = vshll.u32 %v4269, 16
      %v4628 = vrot.slane %v4626, 7
      %v4629 = vor.u32 %v4625, %v4628
      %v4630 = vsel %vm4272, %v4621, %v4629
      %v4631 = vrot.slane %v4625, 4
      %vm4669 = vcmask 519169
      %vm4670 = vsmask.f32 7942
      %vm4671 = vmand %vm4669, %vm4670
      %v4672 = vld [vmem:[%s248 + $0x8] sm:$0xe]
      %v4673 = vsel %vm4671, %v4280, %v4672
      %4674 = vst [vmem:[%s248 + $0x8] sm:$0xe] %v4673
      %vm4675 = vcmask 519168
      %4676 = vst.msk [vmem:[%s248 + $0xc] sm:$0xf] %vm4675, %v4290
      %4677 = vst.msk [vmem:[%s248 + $0x10] sm:$0xf] %vm4675, %v4300
      %4678 = vst.msk [vmem:[%s248 + $0x14] sm:$0xf] %vm4675, %v4310
      %4679 = vst.msk [vmem:[%s248 + $0x18] sm:$0xf] %vm4675, %v4320
      %4680 = vst.msk [vmem:[%s248 + $0x1c] sm:$0xf] %vm4675, %v4330
      %4681 = vst.msk [vmem:[%s248 + $0x20] sm:$0xf] %vm4675, %v4340
      %4682 = vst.msk [vmem:[%s248 + $0x24] sm:$0xf] %vm4675, %v4350
      %4683 = vst.msk [vmem:[%s248 + $0x28] sm:$0xf] %vm4675, %v4360
      %4684 = vst.msk [vmem:[%s248 + $0x2c] sm:$0xf] %vm4675, %v4370
      %4685 = vst.msk [vmem:[%s248 + $0x30] sm:$0xf] %vm4675, %v4380
      %4686 = vst.msk [vmem:[%s248 + $0x34] sm:$0xf] %vm4675, %v4390
      %4687 = vst.msk [vmem:[%s248 + $0x38] sm:$0xf] %vm4675, %v4400
      %4688 = vst.msk [vmem:[%s248 + $0x3c] sm:$0xf] %vm4675, %v4410
      %4689 = vst.msk [vmem:[%s248 + $0x40] sm:$0xf] %vm4675, %v4420
      %4690 = vst.msk [vmem:[%s248 + $0x44] sm:$0xf] %vm4675, %v4430
      %4691 = vst.msk [vmem:[%s248 + $0x48] sm:$0xf] %vm4675, %v4440
      %4692 = vst.msk [vmem:[%s248 + $0x4c] sm:$0xf] %vm4675, %v4450
      %4693 = vst.msk [vmem:[%s248 + $0x50] sm:$0xf] %vm4675, %v4460
      %4694 = vst.msk [vmem:[%s248 + $0x54] sm:$0xf] %vm4675, %v4470
      %4695 = vst.msk [vmem:[%s248 + $0x58] sm:$0xf] %vm4675, %v4480
      %4696 = vst.msk [vmem:[%s248 + $0x5c] sm:$0xf] %vm4675, %v4490
      %4697 = vst.msk [vmem:[%s248 + $0x60] sm:$0xf] %vm4675, %v4500
      %4698 = vst.msk [vmem:[%s248 + $0x64] sm:$0xf] %vm4675, %v4510
      %4699 = vst.msk [vmem:[%s248 + $0x68] sm:$0xf] %vm4675, %v4520
      %4700 = vst.msk [vmem:[%s248 + $0x6c] sm:$0xf] %vm4675, %v4530
      %4701 = vst.msk [vmem:[%s248 + $0x70] sm:$0xf] %vm4675, %v4540
      %4702 = vst.msk [vmem:[%s248 + $0x74] sm:$0xf] %vm4675, %v4550
      %4703 = vst.msk [vmem:[%s248 + $0x78] sm:$0xf] %vm4675, %v4560
      %4704 = vst.msk [vmem:[%s248 + $0x7c] sm:$0xf] %vm4675, %v4570
      %4705 = vst.msk [vmem:[%s248 + $0x80] sm:$0xf] %vm4675, %v4580
      %4706 = vst.msk [vmem:[%s248 + $0x84] sm:$0xf] %vm4675, %v4590
      %4707 = vst.msk [vmem:[%s248 + $0x88] sm:$0xf] %vm4675, %v4600
      %4708 = vst.msk [vmem:[%s248 + $0x8c] sm:$0xf] %vm4675, %v4610
      %4709 = vst.msk [vmem:[%s248 + $0x90] sm:$0xf] %vm4675, %v4620
      %4710 = vst.msk [vmem:[%s248 + $0x94] sm:$0xf] %vm4675, %v4630
      %vm4711 = vcmask 516096
      %vm4712 = vsmask.f32 256
      %vm4713 = vmand %vm4711, %vm4712
      %v4714 = vld [vmem:[%s248 + $0x98] sm:$0x1]
      %v4715 = vsel %vm4713, %v4631, %v4714
      %4716 = vst [vmem:[%s248 + $0x98] sm:$0x1] %v4715
      %4717 = vst.msk [vmem:[%s248] sm:$0xf] %vm4675, 0
      %4718 = vst.msk [vmem:[%s248 + $0x4] sm:$0xf] %vm4675, 0
      %vm4719 = vcmask 517120
      %vm4720 = vmand %vm4719, %vm4270
      %v4721 = vld [vmem:[%s248 + $0x8] sm:$0x3]
      %v4722 = vsel %vm4720, 0, %v4721
      %4723 = vst [vmem:[%s248 + $0x8] sm:$0x3] %v4722
      %vm4724 = vcmask 519168
      %vm4725 = vsmask.f32 7938
      %vm4726 = vmand %vm4724, %vm4725
      %v4727 = vld [vmem:[%s248 + $0x98] sm:$0xf]
      %v4728 = vsel %vm4726, 0, %v4727
      %4729 = vst [vmem:[%s248 + $0x98] sm:$0xf] %v4728
      %4730 = vst.msk [vmem:[%s248 + $0x9c] sm:$0xf] %vm4675, 0
      %vm4731 = vcmask 517120
      %4732 = vst.msk [vmem:[%s248 + $0xa0] sm:$0x3] %vm4731, 0
      %p4733 = scmp.lt.s32.totalorder %s20, 3
      %s4734 = scalar_select %p4733, %s20, 3
      %p4735 = scmp.lt.s32.totalorder %s19, 0
      %s4736 = scalar_select %p4735, %s19, 0
      %s4737 = smul.addr %s4734, 41
      %s4738 = sadd.s32 %s4736, %s4737
      %s4739 = smul.addr %s4738, 4
      %s4740 = scalar_lea.vmem %s4, %s4739
      // Predicated region
      $region37: #{tpu_custom_call.1} parent=35 // pred_check
        %p4741 = pneg %p146
      $region38: #{tpu_custom_call.1} parent=35 // pred_check_branch
        %4743 = sbr.rel (%p4741) target = $region40
      $region39: #{tpu_custom_call.1} parent=35 // pred_region
        _
      $region40: #{tpu_custom_call.1} parent=35 // pred_fallthru
        _
    $region36: #{tpu_custom_call.1} parent=5 // pred_fallthru
      _
    %p4744 = scmp.le.s32.totalorder 2, %s10
    // Predicated region
    $region41: #{tpu_custom_call.1} parent=5 // pred_check
      %p4745 = pneg %p4744
    $region42: #{tpu_custom_call.1} parent=5 // pred_check_branch
      %4747 = sbr.rel (%p4745) target = $region44
    $region43: #{tpu_custom_call.1} parent=5 // pred_region
      %s4748 = ssub.s32 %s10, 2
      // Predicated region
      $region45: #{tpu_custom_call.1} parent=43 // pred_check
        %p4749 = pneg %p152
      $region46: #{tpu_custom_call.1} parent=43 // pred_check_branch
        %4751 = sbr.rel (%p4749) target = $region48
      $region47: #{tpu_custom_call.1} parent=43 // pred_region
        %p4752 = scmp.lt.s32.totalorder %s22, 3
        %s4753 = scalar_select %p4752, %s22, 3
        %p4754 = scmp.lt.s32.totalorder %s21, 0
        %s4755 = scalar_select %p4754, %s21, 0
        %s4756 = smul.addr %s4753, 41
        %s4757 = sadd.s32 %s4755, %s4756
        %s4758 = smul.addr %s4757, 4
        %s4759 = scalar_lea.vmem %s4, %s4758
      $region48: #{tpu_custom_call.1} parent=43 // pred_fallthru
        _
    $region44: #{tpu_custom_call.1} parent=5 // pred_fallthru
      _
  $region6: #{tpu_custom_call.1} parent=0 // loop_footer
    %s14 = sadd.s32 1, %s10
  $region7: #{tpu_custom_call.1} parent=0 // loop_footer_branch
    %9 = sbr.rel target = $region3
  $region8: #{tpu_custom_call.1} parent=0 // loop_exit
    _

</llo_original>
